<compile_context>
chip_gen: v6e
topology: v6e:2x2x1
jax: 0.10.0
libtpu: 0.0.40
codegen_flags: <defaults>
</compile_context>

<pallas_src>
import jax
import jax.numpy as jnp
from jax import lax
from jax.experimental import pallas as pl
from jax.experimental.pallas import tpu as pltpu


def _round_up(n, m):
    return ((n + m - 1) // m) * m


# ------------------------- Pallas kernel (hot path) -------------------------

def _make_kernel(c_pad, n_valid_cols):
    """Fused 2x GatedGraphConv + ReLU + log_softmax; whole (padded) graph resident."""

    def kernel(a_ref, x_ref,
               w1_ref, wih1_ref, whh1_ref, bih1_ref, bhh1_ref,
               w2_ref, wih2_ref, whh2_ref, bih2_ref, bhh2_ref,
               out_ref, h_ref):
        # h_ref: f32 node-state scratch [N_pad, C_pad]; padded rows/cols stay 0.
        h_ref[...] = x_ref[...]

        def run_layer(w_ref, wih_ref, whh_ref, bih_ref, bhh_ref):
            num_steps = w_ref.shape[0]

            def step(i, carry):
                h = h_ref[...]                                  # f32 [Np, Cp]
                hb = h.astype(jnp.bfloat16)                     # bf16 MXU operand
                # m = A @ (x @ W[i])   (bf16 in, f32 accumulate)
                m = jnp.dot(hb, w_ref[i], preferred_element_type=jnp.float32)
                m = jnp.dot(a_ref[...], m.astype(jnp.bfloat16),
                            preferred_element_type=jnp.float32)
                # GRUCell(m, h): gates ordered [r | z | n] along the 3*Cp axis.
                gi = jnp.dot(m.astype(jnp.bfloat16), wih_ref[...],
                             preferred_element_type=jnp.float32) + bih_ref[...]
                gh = jnp.dot(hb, whh_ref[...],
                             preferred_element_type=jnp.float32) + bhh_ref[...]
                r = jax.nn.sigmoid(gi[:, 0:c_pad] + gh[:, 0:c_pad])
                z = jax.nn.sigmoid(gi[:, c_pad:2 * c_pad] + gh[:, c_pad:2 * c_pad])
                n = jnp.tanh(gi[:, 2 * c_pad:3 * c_pad] + r * gh[:, 2 * c_pad:3 * c_pad])
                h_ref[...] = (1.0 - z) * n + z * h
                return carry

            lax.fori_loop(0, num_steps, step, 0)

        # ---- GatedGraphConv layer 1 ----
        run_layer(w1_ref, wih1_ref, whh1_ref, bih1_ref, bhh1_ref)
        h_ref[...] = jnp.maximum(h_ref[...], 0.0)               # ReLU
        # TODO(synk): F.dropout(training=self.training) — identity in eval mode.

        # ---- GatedGraphConv layer 2 (input zero-padded to out_channels already) ----
        run_layer(w2_ref, wih2_ref, whh2_ref, bih2_ref, bhh2_ref)

        # ---- log_softmax over the real (unpadded) output channels ----
        zf = h_ref[...]
        col = lax.broadcasted_iota(jnp.int32, zf.shape, 1)
        valid = col < n_valid_cols
        mx = jnp.max(jnp.where(valid, zf, -1e30), axis=-1, keepdims=True)
        zc = zf - mx
        ex = jnp.where(valid, jnp.exp(zc), 0.0)
        lse = jnp.log(jnp.sum(ex, axis=-1, keepdims=True))
        out_ref[...] = zc - lse                                  # lane-dense full-width store

    return kernel


# --------------------------- padding / packing glue ---------------------------

def _pad2(a, rows, cols, dtype):
    out = jnp.zeros((rows, cols), jnp.float32)
    out = out.at[:a.shape[0], :a.shape[1]].set(a.astype(jnp.float32))
    return out.astype(dtype)


def _pack_step_weights(w, c, c_pad):
    # w: [L, c, c]  ->  [L, c_pad, c_pad] bf16
    L = w.shape[0]
    out = jnp.zeros((L, c_pad, c_pad), jnp.float32).at[:, :c, :c].set(w)
    return out.astype(jnp.bfloat16)


def _pack_gru_weight_t(w, c, c_pad):
    # torch GRUCell weight [3c, c] (gates r,z,n) -> per-gate padded transpose [c_pad, 3*c_pad] bf16
    out = jnp.zeros((c_pad, 3 * c_pad), jnp.float32)
    for g in range(3):
        out = out.at[:c, g * c_pad:g * c_pad + c].set(w[g * c:(g + 1) * c, :].T)
    return out.astype(jnp.bfloat16)


def _pack_gru_bias(b, c, c_pad):
    out = jnp.zeros((1, 3 * c_pad), jnp.float32)
    for g in range(3):
        out = out.at[0, g * c_pad:g * c_pad + c].set(b[g * c:(g + 1) * c])
    return out


def build_adjacency(edge_index, num_nodes):
    """A[dst, src] = number of edges src -> dst (scatter-ADD: duplicate edges accumulate,
    matching torch_geometric add-aggregation). No self-loops, no normalization."""
    src, dst = edge_index[0], edge_index[1]
    a = jnp.zeros((num_nodes, num_nodes), jnp.float32)
    return a.at[dst, src].add(1.0)


def gated_graph_net_forward(x, adj, params1, params2, feature, hidden, classes):
    """params_k = (w [L,C,C], w_ih [3C,C], w_hh [3C,C], b_ih [3C], b_hh [3C])."""
    n = x.shape[0]
    c1, c2 = feature, hidden                   # out_channels of layer1 / layer2
    c_pad = _round_up(max(c1, c2), 128)        # lane-dense channel dim
    n_pad = _round_up(n, 128)                  # lane-dense node / contraction dim

    a_p = _pad2(adj, n_pad, n_pad, jnp.bfloat16)
    x_p = _pad2(x, n_pad, c_pad, jnp.float32)

    def prep(params, c):
        w, wih, whh, bih, bhh = params
        return (_pack_step_weights(w, c, c_pad),
                _pack_gru_weight_t(wih, c, c_pad),
                _pack_gru_weight_t(whh, c, c_pad),
                _pack_gru_bias(bih, c, c_pad),
                _pack_gru_bias(bhh, c, c_pad))

    p1 = prep(params1, c1)
    p2 = prep(params2, c2)

    vmem = pl.BlockSpec(memory_space=pltpu.MemorySpace.VMEM)
    out_p = pl.pallas_call(
        _make_kernel(c_pad, c2),
        out_shape=jax.ShapeDtypeStruct((n_pad, c_pad), jnp.float32),
        in_specs=[vmem] * 12,                  # whole arrays resident, single block
        out_specs=vmem,
        scratch_shapes=[pltpu.VMEM((n_pad, c_pad), jnp.float32)],
    )(a_p, x_p, *p1, *p2)
    return out_p[:n, :c2]


# ----------------------------- pure-JAX reference -----------------------------

def _gated_conv_ref(x, adj, params, out_channels):
    w, wih, whh, bih, bhh = params
    c = out_channels
    n, d = x.shape
    if d < c:
        x = jnp.concatenate([x, jnp.zeros((n, c - d), x.dtype)], axis=1)
    bf = lambda v: v.astype(jnp.bfloat16)      # match the kernel's bf16 MXU operands
    for i in range(w.shape[0]):
        m = jnp.dot(bf(x), bf(w[i]), preferred_element_type=jnp.float32)
        m = jnp.dot(bf(adj), bf(m), preferred_element_type=jnp.float32)
        gi = jnp.dot(bf(m), bf(wih.T), preferred_element_type=jnp.float32) + bih
        gh = jnp.dot(bf(x), bf(whh.T), preferred_element_type=jnp.float32) + bhh
        r = jax.nn.sigmoid(gi[:, :c] + gh[:, :c])
        z = jax.nn.sigmoid(gi[:, c:2 * c] + gh[:, c:2 * c])
        nn_ = jnp.tanh(gi[:, 2 * c:] + r * gh[:, 2 * c:])
        x = (1.0 - z) * nn_ + z * x
    return x


def reference_forward(x, adj, params1, params2, feature, hidden, classes):
    h = _gated_conv_ref(x, adj, params1, feature)
    h = jnp.maximum(h, 0.0)
    z = _gated_conv_ref(h, adj, params2, hidden)
    return jax.nn.log_softmax(z, axis=1)


# ----------------------------------- main ------------------------------------

if __name__ == "__main__":
    key = jax.random.PRNGKey(0)
    keys = jax.random.split(key, 4)

    N_NODES = 16
    FEATURE = 8     # GatedGraphConv1 out_channels
    HIDDEN = 16     # GatedGraphConv1 num_layers AND GatedGraphConv2 out_channels
    CLASSES = 4     # GatedGraphConv2 num_layers
    N_EDGES = 40    # directed edges before symmetrization (duplicates possible)

    x = jax.random.normal(keys[0], (N_NODES, FEATURE), jnp.float32)
    e = jax.random.randint(keys[1], (2, N_EDGES), 0, N_NODES, dtype=jnp.int32)
    edge_index = jnp.concatenate([e, e[::-1]], axis=1)      # [2, 2*E], symmetric

    def init_conv(k, c, num_layers, scale=0.3):
        k1, k2, k3, k4, k5 = jax.random.split(k, 5)
        w = jax.random.normal(k1, (num_layers, c, c), jnp.float32) * scale
        wih = jax.random.normal(k2, (3 * c, c), jnp.float32) * scale
        whh = jax.random.normal(k3, (3 * c, c), jnp.float32) * scale
        bih = jax.random.normal(k4, (3 * c,), jnp.float32) * 0.1
        bhh = jax.random.normal(k5, (3 * c,), jnp.float32) * 0.1
        return (w, wih, whh, bih, bhh)

    params1 = init_conv(keys[2], FEATURE, HIDDEN)   # GatedGraphConv(feature, hidden)
    params2 = init_conv(keys[3], HIDDEN, CLASSES)   # GatedGraphConv(hidden, classes)

    adj = build_adjacency(edge_index, N_NODES)

    out = gated_graph_net_forward(x, adj, params1, params2, FEATURE, HIDDEN, CLASSES)
    out = jax.block_until_ready(out)

    ref = reference_forward(x, adj, params1, params2, FEATURE, HIDDEN, CLASSES)
    assert out.shape == (N_NODES, HIDDEN), out.shape
    # bf16 MXU operands -> compare against a matching-bf16 reference with loosened tolerance.
    assert jnp.allclose(out, ref, atol=1e-2, rtol=1e-2), \
        float(jnp.max(jnp.abs(out - ref)))

    print("KERNEL_OK")
</pallas_src>

<mosaic_0001>
module attributes {stable_mosaic.version = 11 : i64} {
  func.func @kernel(%arg0: memref<128x128xbf16, #tpu.memory_space<vmem>>, %arg1: memref<128x128xf32, #tpu.memory_space<vmem>>, %arg2: memref<16x128x128xbf16, #tpu.memory_space<vmem>>, %arg3: memref<128x384xbf16, #tpu.memory_space<vmem>>, %arg4: memref<128x384xbf16, #tpu.memory_space<vmem>>, %arg5: memref<1x384xf32, #tpu.memory_space<vmem>>, %arg6: memref<1x384xf32, #tpu.memory_space<vmem>>, %arg7: memref<4x128x128xbf16, #tpu.memory_space<vmem>>, %arg8: memref<128x384xbf16, #tpu.memory_space<vmem>>, %arg9: memref<128x384xbf16, #tpu.memory_space<vmem>>, %arg10: memref<1x384xf32, #tpu.memory_space<vmem>>, %arg11: memref<1x384xf32, #tpu.memory_space<vmem>>, %arg12: memref<128x128xf32, #tpu.memory_space<vmem>>, %arg13: memref<128x128xf32, #tpu.memory_space<vmem>>) attributes {dimension_semantics = [], scalar_prefetch = 0 : i64, scratch_operands = 1 : i64, tpu.core_type = #tpu.core_type<tc>} {
    %c0 = arith.constant 0 : index
    %c0_0 = arith.constant 0 : index
    %0 = vector.load %arg1[%c0, %c0_0] : memref<128x128xf32, #tpu.memory_space<vmem>>, vector<128x128xf32>
    %c0_1 = arith.constant 0 : index
    %c0_2 = arith.constant 0 : index
    %1 = vector.load %arg13[%c0_1, %c0_2] : memref<128x128xf32, #tpu.memory_space<vmem>>, vector<128x128xf32>
    tpu.vector_store %arg13[%c0_1, %c0_2], %0 {strides = array<i32>} : memref<128x128xf32, #tpu.memory_space<vmem>>, vector<128x128xf32>,
    %c0_i32 = arith.constant 0 : i32
    %c16_i32 = arith.constant 16 : i32
    %2 = arith.addi %c0_i32, %c16_i32 : i32
    %c1_i32 = arith.constant 1 : i32
    scf.for %arg14 = %c0_i32 to %2 step %c1_i32  : i32 {
      %c0_20 = arith.constant 0 : index
      %c0_21 = arith.constant 0 : index
      %27 = vector.load %arg13[%c0_20, %c0_21] : memref<128x128xf32, #tpu.memory_space<vmem>>, vector<128x128xf32>
      %28 = arith.truncf %27 : vector<128x128xf32> to vector<128x128xbf16>
      %29 = arith.index_cast %arg14 : i32 to index
      %c0_22 = arith.constant 0 : index
      %c0_23 = arith.constant 0 : index
      %30 = vector.load %arg2[%29, %c0_22, %c0_23] : memref<16x128x128xbf16, #tpu.memory_space<vmem>>, vector<1x128x128xbf16>
      %31 = vector.shape_cast %30 : vector<1x128x128xbf16> to vector<128x128xbf16>
      %cst_24 = arith.constant dense<0.000000e+00> : vector<128x128xf32>
      %32 = tpu.matmul %28, %31, %cst_24 {dimension_numbers = #tpu.dot_dimension_numbers<[1], [0], [0], [1], [0, 0, 1, 1], [], []>} : vector<128x128xbf16>, vector<128x128xbf16>, vector<128x128xf32> -> vector<128x128xf32>
      %c0_25 = arith.constant 0 : index
      %c0_26 = arith.constant 0 : index
      %33 = vector.load %arg0[%c0_25, %c0_26] : memref<128x128xbf16, #tpu.memory_space<vmem>>, vector<128x128xbf16>
      %34 = arith.truncf %32 : vector<128x128xf32> to vector<128x128xbf16>
      %cst_27 = arith.constant dense<0.000000e+00> : vector<128x128xf32>
      %35 = tpu.matmul %33, %34, %cst_27 {dimension_numbers = #tpu.dot_dimension_numbers<[1], [0], [0], [1], [0, 0, 1, 1], [], []>} : vector<128x128xbf16>, vector<128x128xbf16>, vector<128x128xf32> -> vector<128x128xf32>
      %36 = arith.truncf %35 : vector<128x128xf32> to vector<128x128xbf16>
      %c0_28 = arith.constant 0 : index
      %c0_29 = arith.constant 0 : index
      %37 = vector.load %arg3[%c0_28, %c0_29] : memref<128x384xbf16, #tpu.memory_space<vmem>>, vector<128x384xbf16>
      %cst_30 = arith.constant dense<0.000000e+00> : vector<128x384xf32>
      %38 = tpu.matmul %36, %37, %cst_30 {dimension_numbers = #tpu.dot_dimension_numbers<[1], [0], [0], [1], [0, 0, 1, 1], [], []>} : vector<128x128xbf16>, vector<128x384xbf16>, vector<128x384xf32> -> vector<128x384xf32>
      %c0_31 = arith.constant 0 : index
      %c0_32 = arith.constant 0 : index
      %39 = vector.load %arg5[%c0_31, %c0_32] : memref<1x384xf32, #tpu.memory_space<vmem>>, vector<1x384xf32>
      %40 = vector.broadcast %39 : vector<1x384xf32> to vector<128x384xf32>
      %41 = arith.addf %38, %40 : vector<128x384xf32>
      %c0_33 = arith.constant 0 : index
      %c0_34 = arith.constant 0 : index
      %42 = vector.load %arg4[%c0_33, %c0_34] : memref<128x384xbf16, #tpu.memory_space<vmem>>, vector<128x384xbf16>
      %cst_35 = arith.constant dense<0.000000e+00> : vector<128x384xf32>
      %43 = tpu.matmul %28, %42, %cst_35 {dimension_numbers = #tpu.dot_dimension_numbers<[1], [0], [0], [1], [0, 0, 1, 1], [], []>} : vector<128x128xbf16>, vector<128x384xbf16>, vector<128x384xf32> -> vector<128x384xf32>
      %c0_36 = arith.constant 0 : index
      %c0_37 = arith.constant 0 : index
      %44 = vector.load %arg6[%c0_36, %c0_37] : memref<1x384xf32, #tpu.memory_space<vmem>>, vector<1x384xf32>
      %45 = vector.broadcast %44 : vector<1x384xf32> to vector<128x384xf32>
      %46 = arith.addf %43, %45 : vector<128x384xf32>
      %47 = vector.extract_strided_slice %41 {offsets = [0, 0], sizes = [128, 128], strides = [1, 1]} : vector<128x384xf32> to vector<128x128xf32>
      %48 = vector.extract_strided_slice %46 {offsets = [0, 0], sizes = [128, 128], strides = [1, 1]} : vector<128x384xf32> to vector<128x128xf32>
      %49 = arith.addf %47, %48 : vector<128x128xf32>
      %50 = arith.negf %49 : vector<128x128xf32>
      %51 = math.exp %50 : vector<128x128xf32>
      %cst_38 = arith.constant 1.000000e+00 : f32
      %52 = vector.broadcast %cst_38 : f32 to vector<128x128xf32>
      %53 = arith.addf %52, %51 : vector<128x128xf32>
      %54 = arith.divf %52, %53 : vector<128x128xf32>
      %55 = vector.extract_strided_slice %41 {offsets = [0, 128], sizes = [128, 128], strides = [1, 1]} : vector<128x384xf32> to vector<128x128xf32>
      %56 = vector.extract_strided_slice %46 {offsets = [0, 128], sizes = [128, 128], strides = [1, 1]} : vector<128x384xf32> to vector<128x128xf32>
      %57 = arith.addf %55, %56 : vector<128x128xf32>
      %58 = arith.negf %57 : vector<128x128xf32>
      %59 = math.exp %58 : vector<128x128xf32>
      %cst_39 = arith.constant 1.000000e+00 : f32
      %60 = vector.broadcast %cst_39 : f32 to vector<128x128xf32>
      %61 = arith.addf %60, %59 : vector<128x128xf32>
      %62 = arith.divf %60, %61 : vector<128x128xf32>
      %63 = vector.extract_strided_slice %41 {offsets = [0, 256], sizes = [128, 128], strides = [1, 1]} : vector<128x384xf32> to vector<128x128xf32>
      %64 = vector.extract_strided_slice %46 {offsets = [0, 256], sizes = [128, 128], strides = [1, 1]} : vector<128x384xf32> to vector<128x128xf32>
      %65 = arith.mulf %54, %64 : vector<128x128xf32>
      %66 = arith.addf %63, %65 : vector<128x128xf32>
      %67 = math.tanh %66 : vector<128x128xf32>
      %cst_40 = arith.constant 1.000000e+00 : f32
      %68 = vector.broadcast %cst_40 : f32 to vector<128x128xf32>
      %69 = arith.subf %68, %62 : vector<128x128xf32>
      %70 = arith.mulf %69, %67 : vector<128x128xf32>
      %71 = arith.mulf %62, %27 : vector<128x128xf32>
      %72 = arith.addf %70, %71 : vector<128x128xf32>
      %c0_41 = arith.constant 0 : index
      %c0_42 = arith.constant 0 : index
      %73 = vector.load %arg13[%c0_41, %c0_42] : memref<128x128xf32, #tpu.memory_space<vmem>>, vector<128x128xf32>
      tpu.vector_store %arg13[%c0_41, %c0_42], %72 {strides = array<i32>} : memref<128x128xf32, #tpu.memory_space<vmem>>, vector<128x128xf32>,
    }
    %c16_i32_3 = arith.constant 16 : i32
    %c0_4 = arith.constant 0 : index
    %c0_5 = arith.constant 0 : index
    %3 = vector.load %arg13[%c0_4, %c0_5] : memref<128x128xf32, #tpu.memory_space<vmem>>, vector<128x128xf32>
    %cst = arith.constant 0.000000e+00 : f32
    %4 = vector.broadcast %cst : f32 to vector<128x128xf32>
    %5 = arith.maximumf %3, %4 : vector<128x128xf32>
    %c0_6 = arith.constant 0 : index
    %c0_7 = arith.constant 0 : index
    %6 = vector.load %arg13[%c0_6, %c0_7] : memref<128x128xf32, #tpu.memory_space<vmem>>, vector<128x128xf32>
    tpu.vector_store %arg13[%c0_6, %c0_7], %5 {strides = array<i32>} : memref<128x128xf32, #tpu.memory_space<vmem>>, vector<128x128xf32>,
    %c0_i32_8 = arith.constant 0 : i32
    %c4_i32 = arith.constant 4 : i32
    %7 = arith.addi %c0_i32_8, %c4_i32 : i32
    %c1_i32_9 = arith.constant 1 : i32
    scf.for %arg14 = %c0_i32_8 to %7 step %c1_i32_9  : i32 {
      %c0_20 = arith.constant 0 : index
      %c0_21 = arith.constant 0 : index
      %27 = vector.load %arg13[%c0_20, %c0_21] : memref<128x128xf32, #tpu.memory_space<vmem>>, vector<128x128xf32>
      %28 = arith.truncf %27 : vector<128x128xf32> to vector<128x128xbf16>
      %29 = arith.index_cast %arg14 : i32 to index
      %c0_22 = arith.constant 0 : index
      %c0_23 = arith.constant 0 : index
      %30 = vector.load %arg7[%29, %c0_22, %c0_23] : memref<4x128x128xbf16, #tpu.memory_space<vmem>>, vector<1x128x128xbf16>
      %31 = vector.shape_cast %30 : vector<1x128x128xbf16> to vector<128x128xbf16>
      %cst_24 = arith.constant dense<0.000000e+00> : vector<128x128xf32>
      %32 = tpu.matmul %28, %31, %cst_24 {dimension_numbers = #tpu.dot_dimension_numbers<[1], [0], [0], [1], [0, 0, 1, 1], [], []>} : vector<128x128xbf16>, vector<128x128xbf16>, vector<128x128xf32> -> vector<128x128xf32>
      %c0_25 = arith.constant 0 : index
      %c0_26 = arith.constant 0 : index
      %33 = vector.load %arg0[%c0_25, %c0_26] : memref<128x128xbf16, #tpu.memory_space<vmem>>, vector<128x128xbf16>
      %34 = arith.truncf %32 : vector<128x128xf32> to vector<128x128xbf16>
      %cst_27 = arith.constant dense<0.000000e+00> : vector<128x128xf32>
      %35 = tpu.matmul %33, %34, %cst_27 {dimension_numbers = #tpu.dot_dimension_numbers<[1], [0], [0], [1], [0, 0, 1, 1], [], []>} : vector<128x128xbf16>, vector<128x128xbf16>, vector<128x128xf32> -> vector<128x128xf32>
      %36 = arith.truncf %35 : vector<128x128xf32> to vector<128x128xbf16>
      %c0_28 = arith.constant 0 : index
      %c0_29 = arith.constant 0 : index
      %37 = vector.load %arg8[%c0_28, %c0_29] : memref<128x384xbf16, #tpu.memory_space<vmem>>, vector<128x384xbf16>
      %cst_30 = arith.constant dense<0.000000e+00> : vector<128x384xf32>
      %38 = tpu.matmul %36, %37, %cst_30 {dimension_numbers = #tpu.dot_dimension_numbers<[1], [0], [0], [1], [0, 0, 1, 1], [], []>} : vector<128x128xbf16>, vector<128x384xbf16>, vector<128x384xf32> -> vector<128x384xf32>
      %c0_31 = arith.constant 0 : index
      %c0_32 = arith.constant 0 : index
      %39 = vector.load %arg10[%c0_31, %c0_32] : memref<1x384xf32, #tpu.memory_space<vmem>>, vector<1x384xf32>
      %40 = vector.broadcast %39 : vector<1x384xf32> to vector<128x384xf32>
      %41 = arith.addf %38, %40 : vector<128x384xf32>
      %c0_33 = arith.constant 0 : index
      %c0_34 = arith.constant 0 : index
      %42 = vector.load %arg9[%c0_33, %c0_34] : memref<128x384xbf16, #tpu.memory_space<vmem>>, vector<128x384xbf16>
      %cst_35 = arith.constant dense<0.000000e+00> : vector<128x384xf32>
      %43 = tpu.matmul %28, %42, %cst_35 {dimension_numbers = #tpu.dot_dimension_numbers<[1], [0], [0], [1], [0, 0, 1, 1], [], []>} : vector<128x128xbf16>, vector<128x384xbf16>, vector<128x384xf32> -> vector<128x384xf32>
      %c0_36 = arith.constant 0 : index
      %c0_37 = arith.constant 0 : index
      %44 = vector.load %arg11[%c0_36, %c0_37] : memref<1x384xf32, #tpu.memory_space<vmem>>, vector<1x384xf32>
      %45 = vector.broadcast %44 : vector<1x384xf32> to vector<128x384xf32>
      %46 = arith.addf %43, %45 : vector<128x384xf32>
      %47 = vector.extract_strided_slice %41 {offsets = [0, 0], sizes = [128, 128], strides = [1, 1]} : vector<128x384xf32> to vector<128x128xf32>
      %48 = vector.extract_strided_slice %46 {offsets = [0, 0], sizes = [128, 128], strides = [1, 1]} : vector<128x384xf32> to vector<128x128xf32>
      %49 = arith.addf %47, %48 : vector<128x128xf32>
      %50 = arith.negf %49 : vector<128x128xf32>
      %51 = math.exp %50 : vector<128x128xf32>
      %cst_38 = arith.constant 1.000000e+00 : f32
      %52 = vector.broadcast %cst_38 : f32 to vector<128x128xf32>
      %53 = arith.addf %52, %51 : vector<128x128xf32>
      %54 = arith.divf %52, %53 : vector<128x128xf32>
      %55 = vector.extract_strided_slice %41 {offsets = [0, 128], sizes = [128, 128], strides = [1, 1]} : vector<128x384xf32> to vector<128x128xf32>
      %56 = vector.extract_strided_slice %46 {offsets = [0, 128], sizes = [128, 128], strides = [1, 1]} : vector<128x384xf32> to vector<128x128xf32>
      %57 = arith.addf %55, %56 : vector<128x128xf32>
      %58 = arith.negf %57 : vector<128x128xf32>
      %59 = math.exp %58 : vector<128x128xf32>
      %cst_39 = arith.constant 1.000000e+00 : f32
      %60 = vector.broadcast %cst_39 : f32 to vector<128x128xf32>
      %61 = arith.addf %60, %59 : vector<128x128xf32>
      %62 = arith.divf %60, %61 : vector<128x128xf32>
      %63 = vector.extract_strided_slice %41 {offsets = [0, 256], sizes = [128, 128], strides = [1, 1]} : vector<128x384xf32> to vector<128x128xf32>
      %64 = vector.extract_strided_slice %46 {offsets = [0, 256], sizes = [128, 128], strides = [1, 1]} : vector<128x384xf32> to vector<128x128xf32>
      %65 = arith.mulf %54, %64 : vector<128x128xf32>
      %66 = arith.addf %63, %65 : vector<128x128xf32>
      %67 = math.tanh %66 : vector<128x128xf32>
      %cst_40 = arith.constant 1.000000e+00 : f32
      %68 = vector.broadcast %cst_40 : f32 to vector<128x128xf32>
      %69 = arith.subf %68, %62 : vector<128x128xf32>
      %70 = arith.mulf %69, %67 : vector<128x128xf32>
      %71 = arith.mulf %62, %27 : vector<128x128xf32>
      %72 = arith.addf %70, %71 : vector<128x128xf32>
      %c0_41 = arith.constant 0 : index
      %c0_42 = arith.constant 0 : index
      %73 = vector.load %arg13[%c0_41, %c0_42] : memref<128x128xf32, #tpu.memory_space<vmem>>, vector<128x128xf32>
      tpu.vector_store %arg13[%c0_41, %c0_42], %72 {strides = array<i32>} : memref<128x128xf32, #tpu.memory_space<vmem>>, vector<128x128xf32>,
    }
    %c4_i32_10 = arith.constant 4 : i32
    %c0_11 = arith.constant 0 : index
    %c0_12 = arith.constant 0 : index
    %8 = vector.load %arg13[%c0_11, %c0_12] : memref<128x128xf32, #tpu.memory_space<vmem>>, vector<128x128xf32>
    %9 = tpu.iota {dimensions = array<i32: 1>} : vector<128x128xi32>
    %c16_i32_13 = arith.constant 16 : i32
    %10 = vector.broadcast %c16_i32_13 : i32 to vector<128x128xi32>
    %11 = arith.cmpi slt, %9, %10 : vector<128x128xi32>
    %cst_14 = arith.constant -1.000000e+30 : f32
    %12 = vector.broadcast %cst_14 : f32 to vector<128x128xf32>
    %13 = arith.select %11, %8, %12 : vector<128x128xi1>, vector<128x128xf32>
    %cst_15 = arith.constant dense<0xFF800000> : vector<128xf32>
    %14 = vector.multi_reduction <maximumf>, %13, %cst_15 [1] : vector<128x128xf32> to vector<128xf32>
    %15 = vector.shape_cast %14 : vector<128xf32> to vector<128x1xf32>
    %16 = vector.broadcast %15 : vector<128x1xf32> to vector<128x128xf32>
    %17 = arith.subf %8, %16 : vector<128x128xf32>
    %18 = math.exp %17 : vector<128x128xf32>
    %cst_16 = arith.constant 0.000000e+00 : f32
    %19 = vector.broadcast %cst_16 : f32 to vector<128x128xf32>
    %20 = arith.select %11, %18, %19 : vector<128x128xi1>, vector<128x128xf32>
    %cst_17 = arith.constant dense<0.000000e+00> : vector<128xf32>
    %21 = vector.multi_reduction <add>, %20, %cst_17 [1] : vector<128x128xf32> to vector<128xf32>
    %22 = vector.shape_cast %21 : vector<128xf32> to vector<128x1xf32>
    %23 = math.log %22 : vector<128x1xf32>
    %24 = vector.broadcast %23 : vector<128x1xf32> to vector<128x128xf32>
    %25 = arith.subf %17, %24 : vector<128x128xf32>
    %c0_18 = arith.constant 0 : index
    %c0_19 = arith.constant 0 : index
    %26 = vector.load %arg12[%c0_18, %c0_19] : memref<128x128xf32, #tpu.memory_space<vmem>>, vector<128x128xf32>
    tpu.vector_store %arg12[%c0_18, %c0_19], %25 {strides = array<i32>} : memref<128x128xf32, #tpu.memory_space<vmem>>, vector<128x128xf32>,
    return
  }
}

</mosaic_0001>

<llo_original>
// kernel: tpu_custom_call.1
$region0: #{tpu_custom_call.1}
  #allocation0 [shape = 'u32[]', space=smem, size = 0x4, offset = 0x4, fixed_abs, tag = 'smem constant byte address 0x4 - core index']
  #allocation1 [shape = 'u32[144,128]{1,0:T(1,128)}', space=vmem, size = 0x12000, scoped, tag = 'internal scratch']
  #allocation2 [shape = 'f32[128,128]{1,0:T(8,128)}', space=vmem, size = 0x10000, scoped, tag = 'scratch operand']
  %s0 = inlined_call_operand.hbm [shape: bf16[128,128], index: 0, kind: input, shape index: {}]
  %s1 = inlined_call_operand.hbm [shape: f32[128,128], index: 1, kind: input, shape index: {}]
  %s2 = inlined_call_operand.hbm [shape: bf16[16,128,128], index: 2, kind: input, shape index: {}]
  %s3 = inlined_call_operand.hbm [shape: bf16[128,384], index: 3, kind: input, shape index: {}]
  %s4 = inlined_call_operand.hbm [shape: bf16[128,384], index: 4, kind: input, shape index: {}]
  %s5 = inlined_call_operand.vmem [shape: f32[1,384], index: 5, kind: input, shape index: {}]
  %s6 = inlined_call_operand.vmem [shape: f32[1,384], index: 6, kind: input, shape index: {}]
  %s7 = inlined_call_operand.hbm [shape: bf16[4,128,128], index: 7, kind: input, shape index: {}]
  %s8 = inlined_call_operand.hbm [shape: bf16[128,384], index: 8, kind: input, shape index: {}]
  %s9 = inlined_call_operand.hbm [shape: bf16[128,384], index: 9, kind: input, shape index: {}]
  %s10 = inlined_call_operand.vmem [shape: f32[1,384], index: 10, kind: input, shape index: {}]
  %s11 = inlined_call_operand.vmem [shape: f32[1,384], index: 11, kind: input, shape index: {}]
  %s12 = inlined_call_operand.hbm [shape: f32[128,128], index: 12, kind: output, shape index: {}]
  %s13 = sld [smem:[#allocation0]]
  $region104: #{tpu_custom_call.1} parent=0
    _
  %s15 = ssub.s32 1, %s13
  %s16 = scalar_select 0, %s15, %s13
  $region1: #{tpu_custom_call.1} parent=0
    #allocation3 [shape = 'u8[32768]{0}', space=vmem, size = 0x8000, scoped, tag = 'input window, operand 0, single buffered']
    #allocation4 [shape = 's32[1]{0}', space=sflag, size = 0x4, scoped, tag = 'scoped memory for tpu_custom_call.1']
    #allocation5 [shape = 's32[1]{0}', space=sflag, size = 0x4, scoped, tag = 'scoped memory for tpu_custom_call.1']
    #allocation6 [shape = 'u8[65536]{0}', space=vmem, size = 0x10000, scoped, tag = 'input window, operand 1, single buffered']
    #allocation7 [shape = 's32[1]{0}', space=sflag, size = 0x4, scoped, tag = 'scoped memory for tpu_custom_call.1']
    #allocation8 [shape = 'u8[524288]{0}', space=vmem, size = 0x80000, scoped, tag = 'input window, operand 2, single buffered']
    #allocation9 [shape = 'u8[98304]{0}', space=vmem, size = 0x18000, scoped, tag = 'input window, operand 3, single buffered']
    #allocation10 [shape = 's32[1]{0}', space=sflag, size = 0x4, scoped, tag = 'scoped memory for tpu_custom_call.1']
    #allocation11 [shape = 'u8[98304]{0}', space=vmem, size = 0x18000, scoped, tag = 'input window, operand 4, single buffered']
    #allocation12 [shape = 'u8[131072]{0}', space=vmem, size = 0x20000, scoped, tag = 'input window, operand 7, single buffered']
    #allocation13 [shape = 's32[1]{0}', space=sflag, size = 0x4, scoped, tag = 'scoped memory for tpu_custom_call.1']
    #allocation14 [shape = 'u8[98304]{0}', space=vmem, size = 0x18000, scoped, tag = 'input window, operand 8, single buffered']
    #allocation15 [shape = 'u8[98304]{0}', space=vmem, size = 0x18000, scoped, tag = 'input window, operand 9, single buffered']
    #allocation16 [shape = 's32[1]{0}', space=sflag, size = 0x4, scoped, tag = 'scoped memory for tpu_custom_call.1']
    #allocation17 [shape = 'u8[65536]{0}', space=vmem, size = 0x10000, scoped, tag = 'output window, operand 0, single buffered']
    %17 = vsyncpa [#allocation4], 0
    %18 = vsyncpa [#allocation7], 0
    %19 = vsyncpa [#allocation10], 0
    %20 = vsyncpa [#allocation13], 0
    %21 = vsyncpa [#allocation16], 0
    %22 = vsyncpa [#allocation5], 0
    // Predicated region
    $region2: #{tpu_custom_call.1} parent=1 // pred_check
      _
    $region3: #{tpu_custom_call.1} parent=1 // pred_check_branch
      %24 = sbr.rel (0) target = $region5
    $region4: #{tpu_custom_call.1} parent=1 // pred_region
      %s26 = ssub.s32 1024, 1024
      %27 = vsyncadd [#allocation4], %s26
      %s28 = sshll.u32 [#allocation3], 4
      %s29 = int_to_ptr.vmem [resolvable:$true] %s28
      %34 = dma.hbm_to_vmem [thread:$0]  %s0, 1024, %s29, [#allocation4], 64, 64, 4
    $region5: #{tpu_custom_call.1} parent=1 // pred_fallthru
      _
    // Predicated region
    $region6: #{tpu_custom_call.1} parent=1 // pred_check
      _
    $region7: #{tpu_custom_call.1} parent=1 // pred_check_branch
      %36 = sbr.rel (0) target = $region9
    $region8: #{tpu_custom_call.1} parent=1 // pred_region
      %s38 = ssub.s32 2048, 2048
      %39 = vsyncadd [#allocation7], %s38
      %s40 = sshll.u32 [#allocation6], 4
      %s41 = int_to_ptr.vmem [resolvable:$true] %s40
      %46 = dma.hbm_to_vmem [thread:$0]  %s1, 2048, %s41, [#allocation7], 128, 128, 8
    $region9: #{tpu_custom_call.1} parent=1 // pred_fallthru
      _
    // Predicated region
    $region10: #{tpu_custom_call.1} parent=1 // pred_check
      _
    $region11: #{tpu_custom_call.1} parent=1 // pred_check_branch
      %48 = sbr.rel (0) target = $region13
    $region12: #{tpu_custom_call.1} parent=1 // pred_region
      %s50 = ssub.s32 16384, 16384
      %51 = vsyncadd [#allocation7], %s50
      %s52 = sshll.u32 [#allocation8], 4
      %s53 = int_to_ptr.vmem [resolvable:$true] %s52
      %58 = dma.hbm_to_vmem [thread:$0]  %s2, 16384, %s53, [#allocation7], 64, 64, 4
    $region13: #{tpu_custom_call.1} parent=1 // pred_fallthru
      _
    // Predicated region
    $region14: #{tpu_custom_call.1} parent=1 // pred_check
      _
    $region15: #{tpu_custom_call.1} parent=1 // pred_check_branch
      %60 = sbr.rel (0) target = $region17
    $region16: #{tpu_custom_call.1} parent=1 // pred_region
      %s62 = ssub.s32 3072, 3072
      %63 = vsyncadd [#allocation10], %s62
      %s64 = sshll.u32 [#allocation9], 4
      %s65 = int_to_ptr.vmem [resolvable:$true] %s64
      %70 = dma.hbm_to_vmem [thread:$0]  %s3, 3072, %s65, [#allocation10], 192, 192, 12
    $region17: #{tpu_custom_call.1} parent=1 // pred_fallthru
      _
    // Predicated region
    $region18: #{tpu_custom_call.1} parent=1 // pred_check
      _
    $region19: #{tpu_custom_call.1} parent=1 // pred_check_branch
      %72 = sbr.rel (0) target = $region21
    $region20: #{tpu_custom_call.1} parent=1 // pred_region
      %s74 = ssub.s32 3072, 3072
      %75 = vsyncadd [#allocation10], %s74
      %s76 = sshll.u32 [#allocation11], 4
      %s77 = int_to_ptr.vmem [resolvable:$true] %s76
      %82 = dma.hbm_to_vmem [thread:$0]  %s4, 3072, %s77, [#allocation10], 192, 192, 12
    $region21: #{tpu_custom_call.1} parent=1 // pred_fallthru
      _
    // Predicated region
    $region22: #{tpu_custom_call.1} parent=1 // pred_check
      _
    $region23: #{tpu_custom_call.1} parent=1 // pred_check_branch
      %84 = sbr.rel (0) target = $region25
    $region24: #{tpu_custom_call.1} parent=1 // pred_region
      _
    $region25: #{tpu_custom_call.1} parent=1 // pred_fallthru
      _
    // Predicated region
    $region26: #{tpu_custom_call.1} parent=1 // pred_check
      _
    $region27: #{tpu_custom_call.1} parent=1 // pred_check_branch
      %86 = sbr.rel (0) target = $region29
    $region28: #{tpu_custom_call.1} parent=1 // pred_region
      _
    $region29: #{tpu_custom_call.1} parent=1 // pred_fallthru
      _
    // Predicated region
    $region30: #{tpu_custom_call.1} parent=1 // pred_check
      _
    $region31: #{tpu_custom_call.1} parent=1 // pred_check_branch
      %88 = sbr.rel (0) target = $region33
    $region32: #{tpu_custom_call.1} parent=1 // pred_region
      %s90 = ssub.s32 4096, 4096
      %91 = vsyncadd [#allocation13], %s90
      %s92 = sshll.u32 [#allocation12], 4
      %s93 = int_to_ptr.vmem [resolvable:$true] %s92
      %98 = dma.hbm_to_vmem [thread:$0]  %s7, 4096, %s93, [#allocation13], 64, 64, 4
    $region33: #{tpu_custom_call.1} parent=1 // pred_fallthru
      _
    // Predicated region
    $region34: #{tpu_custom_call.1} parent=1 // pred_check
      _
    $region35: #{tpu_custom_call.1} parent=1 // pred_check_branch
      %100 = sbr.rel (0) target = $region37
    $region36: #{tpu_custom_call.1} parent=1 // pred_region
      %s102 = ssub.s32 3072, 3072
      %103 = vsyncadd [#allocation13], %s102
      %s104 = sshll.u32 [#allocation14], 4
      %s105 = int_to_ptr.vmem [resolvable:$true] %s104
      %110 = dma.hbm_to_vmem [thread:$0]  %s8, 3072, %s105, [#allocation13], 192, 192, 12
    $region37: #{tpu_custom_call.1} parent=1 // pred_fallthru
      _
    // Predicated region
    $region38: #{tpu_custom_call.1} parent=1 // pred_check
      _
    $region39: #{tpu_custom_call.1} parent=1 // pred_check_branch
      %112 = sbr.rel (0) target = $region41
    $region40: #{tpu_custom_call.1} parent=1 // pred_region
      %s114 = ssub.s32 3072, 3072
      %115 = vsyncadd [#allocation16], %s114
      %s116 = sshll.u32 [#allocation15], 4
      %s117 = int_to_ptr.vmem [resolvable:$true] %s116
      %122 = dma.hbm_to_vmem [thread:$0]  %s9, 3072, %s117, [#allocation16], 192, 192, 12
    $region41: #{tpu_custom_call.1} parent=1 // pred_fallthru
      _
    // Predicated region
    $region42: #{tpu_custom_call.1} parent=1 // pred_check
      _
    $region43: #{tpu_custom_call.1} parent=1 // pred_check_branch
      %124 = sbr.rel (0) target = $region45
    $region44: #{tpu_custom_call.1} parent=1 // pred_region
      _
    $region45: #{tpu_custom_call.1} parent=1 // pred_fallthru
      _
    // Predicated region
    $region46: #{tpu_custom_call.1} parent=1 // pred_check
      _
    $region47: #{tpu_custom_call.1} parent=1 // pred_check_branch
      %126 = sbr.rel (0) target = $region49
    $region48: #{tpu_custom_call.1} parent=1 // pred_region
      _
    $region49: #{tpu_custom_call.1} parent=1 // pred_fallthru
      _
    // Predicated region
    $region50: #{tpu_custom_call.1} parent=1 // pred_check
      _
    $region51: #{tpu_custom_call.1} parent=1 // pred_check_branch
      %128 = sbr.rel (0) target = $region53
    $region52: #{tpu_custom_call.1} parent=1 // pred_region
      %129 = dma.done [#allocation4], 1024
    $region53: #{tpu_custom_call.1} parent=1 // pred_fallthru
      _
    // Predicated region
    $region54: #{tpu_custom_call.1} parent=1 // pred_check
      _
    $region55: #{tpu_custom_call.1} parent=1 // pred_check_branch
      %131 = sbr.rel (0) target = $region57
    $region56: #{tpu_custom_call.1} parent=1 // pred_region
      %132 = dma.done [#allocation7], 2048
    $region57: #{tpu_custom_call.1} parent=1 // pred_fallthru
      _
    // Predicated region
    $region58: #{tpu_custom_call.1} parent=1 // pred_check
      _
    $region59: #{tpu_custom_call.1} parent=1 // pred_check_branch
      %134 = sbr.rel (0) target = $region61
    $region60: #{tpu_custom_call.1} parent=1 // pred_region
      %135 = dma.done [#allocation7], 16384
    $region61: #{tpu_custom_call.1} parent=1 // pred_fallthru
      _
    // Predicated region
    $region62: #{tpu_custom_call.1} parent=1 // pred_check
      _
    $region63: #{tpu_custom_call.1} parent=1 // pred_check_branch
      %137 = sbr.rel (0) target = $region65
    $region64: #{tpu_custom_call.1} parent=1 // pred_region
      %138 = dma.done [#allocation10], 3072
    $region65: #{tpu_custom_call.1} parent=1 // pred_fallthru
      _
    // Predicated region
    $region66: #{tpu_custom_call.1} parent=1 // pred_check
      _
    $region67: #{tpu_custom_call.1} parent=1 // pred_check_branch
      %140 = sbr.rel (0) target = $region69
    $region68: #{tpu_custom_call.1} parent=1 // pred_region
      %141 = dma.done [#allocation10], 3072
    $region69: #{tpu_custom_call.1} parent=1 // pred_fallthru
      _
    // Predicated region
    $region70: #{tpu_custom_call.1} parent=1 // pred_check
      _
    $region71: #{tpu_custom_call.1} parent=1 // pred_check_branch
      %143 = sbr.rel (0) target = $region73
    $region72: #{tpu_custom_call.1} parent=1 // pred_region
      %144 = dma.done [#allocation13], 4096
    $region73: #{tpu_custom_call.1} parent=1 // pred_fallthru
      _
    // Predicated region
    $region74: #{tpu_custom_call.1} parent=1 // pred_check
      _
    $region75: #{tpu_custom_call.1} parent=1 // pred_check_branch
      %146 = sbr.rel (0) target = $region77
    $region76: #{tpu_custom_call.1} parent=1 // pred_region
      %147 = dma.done [#allocation13], 3072
    $region77: #{tpu_custom_call.1} parent=1 // pred_fallthru
      _
    // Predicated region
    $region78: #{tpu_custom_call.1} parent=1 // pred_check
      _
    $region79: #{tpu_custom_call.1} parent=1 // pred_check_branch
      %149 = sbr.rel (0) target = $region81
    $region80: #{tpu_custom_call.1} parent=1 // pred_region
      %150 = dma.done [#allocation16], 3072
    $region81: #{tpu_custom_call.1} parent=1 // pred_fallthru
      _
    %v152 = vld [vmem:[#allocation6] sm:$0xff]
    %v153 = vld [vmem:[#allocation6 + $0x8] sm:$0xff]
    %v154 = vld [vmem:[#allocation6 + $0x10] sm:$0xff]
    %v155 = vld [vmem:[#allocation6 + $0x18] sm:$0xff]
    %v156 = vld [vmem:[#allocation6 + $0x20] sm:$0xff]
    %v157 = vld [vmem:[#allocation6 + $0x28] sm:$0xff]
    %v158 = vld [vmem:[#allocation6 + $0x30] sm:$0xff]
    %v159 = vld [vmem:[#allocation6 + $0x38] sm:$0xff]
    %v160 = vld [vmem:[#allocation6 + $0x40] sm:$0xff]
    %v161 = vld [vmem:[#allocation6 + $0x48] sm:$0xff]
    %v162 = vld [vmem:[#allocation6 + $0x50] sm:$0xff]
    %v163 = vld [vmem:[#allocation6 + $0x58] sm:$0xff]
    %v164 = vld [vmem:[#allocation6 + $0x60] sm:$0xff]
    %v165 = vld [vmem:[#allocation6 + $0x68] sm:$0xff]
    %v166 = vld [vmem:[#allocation6 + $0x70] sm:$0xff]
    %v167 = vld [vmem:[#allocation6 + $0x78] sm:$0xff]
    %168 = vst [vmem:[#allocation2] sm:$0xff] %v152
    %169 = vst [vmem:[#allocation2 + $0x8] sm:$0xff] %v153
    %170 = vst [vmem:[#allocation2 + $0x10] sm:$0xff] %v154
    %171 = vst [vmem:[#allocation2 + $0x18] sm:$0xff] %v155
    %172 = vst [vmem:[#allocation2 + $0x20] sm:$0xff] %v156
    %173 = vst [vmem:[#allocation2 + $0x28] sm:$0xff] %v157
    %174 = vst [vmem:[#allocation2 + $0x30] sm:$0xff] %v158
    %175 = vst [vmem:[#allocation2 + $0x38] sm:$0xff] %v159
    %176 = vst [vmem:[#allocation2 + $0x40] sm:$0xff] %v160
    %177 = vst [vmem:[#allocation2 + $0x48] sm:$0xff] %v161
    %178 = vst [vmem:[#allocation2 + $0x50] sm:$0xff] %v162
    %179 = vst [vmem:[#allocation2 + $0x58] sm:$0xff] %v163
    %180 = vst [vmem:[#allocation2 + $0x60] sm:$0xff] %v164
    %181 = vst [vmem:[#allocation2 + $0x68] sm:$0xff] %v165
    %182 = vst [vmem:[#allocation2 + $0x70] sm:$0xff] %v166
    %183 = vst [vmem:[#allocation2 + $0x78] sm:$0xff] %v167
    loop: start=0, step=1, limit=16
    $region82: #{tpu_custom_call.1} parent=1 // loop_pre_header
      _
    $region83: #{tpu_custom_call.1} parent=1 // loop_header
      %s185 = sphi 0, %s189
      %p186 = scmp.ge.s32.totalorder %s185, 16
    $region84: #{tpu_custom_call.1} parent=1 // loop_header_branch
      %188 = sbr.rel (%p186) target = $region88
    $region85: #{tpu_custom_call.1} parent=1 // loop_body
      %v190 = vld [vmem:[#allocation2] sm:$0xff]
      %v191 = vld [vmem:[#allocation2 + $0x8] sm:$0xff]
      %v192 = vld [vmem:[#allocation2 + $0x10] sm:$0xff]
      %v193 = vld [vmem:[#allocation2 + $0x18] sm:$0xff]
      %v194 = vld [vmem:[#allocation2 + $0x20] sm:$0xff]
      %v195 = vld [vmem:[#allocation2 + $0x28] sm:$0xff]
      %v196 = vld [vmem:[#allocation2 + $0x30] sm:$0xff]
      %v197 = vld [vmem:[#allocation2 + $0x38] sm:$0xff]
      %v198 = vld [vmem:[#allocation2 + $0x40] sm:$0xff]
      %v199 = vld [vmem:[#allocation2 + $0x48] sm:$0xff]
      %v200 = vld [vmem:[#allocation2 + $0x50] sm:$0xff]
      %v201 = vld [vmem:[#allocation2 + $0x58] sm:$0xff]
      %v202 = vld [vmem:[#allocation2 + $0x60] sm:$0xff]
      %v203 = vld [vmem:[#allocation2 + $0x68] sm:$0xff]
      %v204 = vld [vmem:[#allocation2 + $0x70] sm:$0xff]
      %v205 = vld [vmem:[#allocation2 + $0x78] sm:$0xff]
      %v206 = vpack.c.bf16 %v191, %v190
      %v207 = vpack.c.bf16 %v193, %v192
      %v208 = vpack.c.bf16 %v195, %v194
      %v209 = vpack.c.bf16 %v197, %v196
      %v210 = vpack.c.bf16 %v199, %v198
      %v211 = vpack.c.bf16 %v201, %v200
      %v212 = vpack.c.bf16 %v203, %v202
      %v213 = vpack.c.bf16 %v205, %v204
      %s214 = smul.u32 %s185, 16
      %s215 = smul.addr %s214, 4
      %s216 = scalar_lea.vmem [#allocation8], %s215
      %v217 = vld [vmem:[%s216] sm:$0xf]
      %v218 = vld [vmem:[%s216 + $0x4] sm:$0xf]
      %v219 = vld [vmem:[%s216 + $0x8] sm:$0xf]
      %v220 = vld [vmem:[%s216 + $0xc] sm:$0xf]
      %v221 = vld [vmem:[%s216 + $0x10] sm:$0xf]
      %v222 = vld [vmem:[%s216 + $0x14] sm:$0xf]
      %v223 = vld [vmem:[%s216 + $0x18] sm:$0xf]
      %v224 = vld [vmem:[%s216 + $0x1c] sm:$0xf]
      %v225 = vld [vmem:[%s216 + $0x20] sm:$0xf]
      %v226 = vld [vmem:[%s216 + $0x24] sm:$0xf]
      %v227 = vld [vmem:[%s216 + $0x28] sm:$0xf]
      %v228 = vld [vmem:[%s216 + $0x2c] sm:$0xf]
      %v229 = vld [vmem:[%s216 + $0x30] sm:$0xf]
      %v230 = vld [vmem:[%s216 + $0x34] sm:$0xf]
      %v231 = vld [vmem:[%s216 + $0x38] sm:$0xf]
      %v232 = vld [vmem:[%s216 + $0x3c] sm:$0xf]
      %v249 = vunpack.c.l.b16 %v217
      %v250 = vunpack.c.l.b16 %v218
      %v251 = vunpack.c.l.b16 %v219
      %v252 = vunpack.c.l.b16 %v220
      %v253 = vunpack.c.l.b16 %v221
      %v254 = vunpack.c.l.b16 %v222
      %v255 = vunpack.c.l.b16 %v223
      %v256 = vunpack.c.l.b16 %v224
      %v257 = vunpack.c.l.b16 %v225
      %v258 = vunpack.c.l.b16 %v226
      %v259 = vunpack.c.l.b16 %v227
      %v260 = vunpack.c.l.b16 %v228
      %v261 = vunpack.c.l.b16 %v229
      %v262 = vunpack.c.l.b16 %v230
      %v263 = vunpack.c.l.b16 %v231
      %v264 = vunpack.c.l.b16 %v232
      %v265 = vpack.c.b16 %v250, %v249
      %v266 = vpack.c.b16 %v252, %v251
      %v267 = vpack.c.b16 %v254, %v253
      %v268 = vpack.c.b16 %v256, %v255
      %v269 = vpack.c.b16 %v258, %v257
      %v270 = vpack.c.b16 %v260, %v259
      %v271 = vpack.c.b16 %v262, %v261
      %v272 = vpack.c.b16 %v264, %v263
      %281 = vmatprep.subr.bf16.mxu0 0
      %282 = vmatpush1.bf16.msra.mxu0 %v272
      %283 = vmatprep.subr.bf16.mxu0 0
      %284 = vmatpush1.bf16.msra.mxu0 %v271
      %285 = vmatprep.subr.bf16.mxu0 0
      %286 = vmatpush1.bf16.msra.mxu0 %v270
      %287 = vmatprep.subr.bf16.mxu0 0
      %288 = vmatpush1.bf16.msra.mxu0 %v269
      %289 = vmatprep.subr.bf16.mxu0 0
      %290 = vmatpush1.bf16.msra.mxu0 %v268
      %291 = vmatprep.subr.bf16.mxu0 0
      %292 = vmatpush1.bf16.msra.mxu0 %v267
      %293 = vmatprep.subr.bf16.mxu0 0
      %294 = vmatpush1.bf16.msra.mxu0 %v266
      %295 = vmatprep.subr.bf16.mxu0 0
      %296 = vmatpush1.bf16.msra.mxu0 %v265
      %297 = vmatprep.subr.bf16.mxu0 0
      %298 = vmatpush2.bf16.msra.mxu0 0
      %299 = vmatprep.subr.bf16.mxu0 0
      %300 = vmatpush2.bf16.msra.mxu0 0
      %301 = vmatprep.subr.bf16.mxu0 0
      %302 = vmatpush2.bf16.msra.mxu0 0
      %303 = vmatprep.subr.bf16.mxu0 0
      %304 = vmatpush2.bf16.msra.mxu0 0
      %305 = vmatprep.subr.bf16.mxu0 0
      %306 = vmatpush2.bf16.msra.mxu0 0
      %307 = vmatprep.subr.bf16.mxu0 0
      %308 = vmatpush2.bf16.msra.mxu0 0
      %309 = vmatprep.subr.bf16.mxu0 0
      %310 = vmatpush2.bf16.msra.mxu0 0
      %311 = vmatprep.subr.bf16.mxu0 0
      %312 = vmatpush2.bf16.msra.mxu0 0
      %313 = vmatprep.mubr.bf16.mxu0 0
      %314 = vmatmul.mubr.bf16.gmra.mxu0 %v206
      %v315 = vpop.f32.mrf.mxu0
      %v316 = vadd.f32 0.0, %v315
      %v317 = vpop.f32.mrf.mxu0
      %v318 = vpop.f32.mrf.mxu0
      %v319 = vadd.f32 0.0, %v318
      %v320 = vpop.f32.mrf.mxu0
      %321 = vmatprep.mubr.bf16.mxu0 0
      %322 = vmatmul.mubr.bf16.gmra.mxu0 %v207
      %v323 = vpop.f32.mrf.mxu0
      %v324 = vadd.f32 0.0, %v323
      %v325 = vpop.f32.mrf.mxu0
      %v326 = vpop.f32.mrf.mxu0
      %v327 = vadd.f32 0.0, %v326
      %v328 = vpop.f32.mrf.mxu0
      %329 = vmatprep.mubr.bf16.mxu0 0
      %330 = vmatmul.mubr.bf16.gmra.mxu0 %v208
      %v331 = vpop.f32.mrf.mxu0
      %v332 = vadd.f32 0.0, %v331
      %v333 = vpop.f32.mrf.mxu0
      %v334 = vpop.f32.mrf.mxu0
      %v335 = vadd.f32 0.0, %v334
      %v336 = vpop.f32.mrf.mxu0
      %337 = vmatprep.mubr.bf16.mxu0 0
      %338 = vmatmul.mubr.bf16.gmra.mxu0 %v209
      %v339 = vpop.f32.mrf.mxu0
      %v340 = vadd.f32 0.0, %v339
      %v341 = vpop.f32.mrf.mxu0
      %v342 = vpop.f32.mrf.mxu0
      %v343 = vadd.f32 0.0, %v342
      %v344 = vpop.f32.mrf.mxu0
      %345 = vmatprep.mubr.bf16.mxu0 0
      %346 = vmatmul.mubr.bf16.gmra.mxu0 %v210
      %v347 = vpop.f32.mrf.mxu0
      %v348 = vadd.f32 0.0, %v347
      %v349 = vpop.f32.mrf.mxu0
      %v350 = vpop.f32.mrf.mxu0
      %v351 = vadd.f32 0.0, %v350
      %v352 = vpop.f32.mrf.mxu0
      %353 = vmatprep.mubr.bf16.mxu0 0
      %354 = vmatmul.mubr.bf16.gmra.mxu0 %v211
      %v355 = vpop.f32.mrf.mxu0
      %v356 = vadd.f32 0.0, %v355
      %v357 = vpop.f32.mrf.mxu0
      %v358 = vpop.f32.mrf.mxu0
      %v359 = vadd.f32 0.0, %v358
      %v360 = vpop.f32.mrf.mxu0
      %361 = vmatprep.mubr.bf16.mxu0 0
      %362 = vmatmul.mubr.bf16.gmra.mxu0 %v212
      %v363 = vpop.f32.mrf.mxu0
      %v364 = vadd.f32 0.0, %v363
      %v365 = vpop.f32.mrf.mxu0
      %v366 = vpop.f32.mrf.mxu0
      %v367 = vadd.f32 0.0, %v366
      %v368 = vpop.f32.mrf.mxu0
      %369 = vmatprep.mubr.bf16.mxu0 0
      %370 = vmatmul.mubr.bf16.gmra.mxu0 %v213
      %v371 = vpop.f32.mrf.mxu0
      %v372 = vadd.f32 0.0, %v371
      %v373 = vpop.f32.mrf.mxu0
      %v374 = vpop.f32.mrf.mxu0
      %v375 = vadd.f32 0.0, %v374
      %v376 = vpop.f32.mrf.mxu0
      %377 = vdwg.mxu0
      %v378 = vld [vmem:[#allocation3] sm:$0xf]
      %v379 = vld [vmem:[#allocation3 + $0x4] sm:$0xf]
      %v380 = vld [vmem:[#allocation3 + $0x8] sm:$0xf]
      %v381 = vld [vmem:[#allocation3 + $0xc] sm:$0xf]
      %v382 = vld [vmem:[#allocation3 + $0x10] sm:$0xf]
      %v383 = vld [vmem:[#allocation3 + $0x14] sm:$0xf]
      %v384 = vld [vmem:[#allocation3 + $0x18] sm:$0xf]
      %v385 = vld [vmem:[#allocation3 + $0x1c] sm:$0xf]
      %v386 = vld [vmem:[#allocation3 + $0x20] sm:$0xf]
      %v387 = vld [vmem:[#allocation3 + $0x24] sm:$0xf]
      %v388 = vld [vmem:[#allocation3 + $0x28] sm:$0xf]
      %v389 = vld [vmem:[#allocation3 + $0x2c] sm:$0xf]
      %v390 = vld [vmem:[#allocation3 + $0x30] sm:$0xf]
      %v391 = vld [vmem:[#allocation3 + $0x34] sm:$0xf]
      %v392 = vld [vmem:[#allocation3 + $0x38] sm:$0xf]
      %v393 = vld [vmem:[#allocation3 + $0x3c] sm:$0xf]
      %v394 = vpack.c.bf16 %v319, %v316
      %v395 = vpack.c.bf16 %v327, %v324
      %v396 = vpack.c.bf16 %v335, %v332
      %v397 = vpack.c.bf16 %v343, %v340
      %v398 = vpack.c.bf16 %v351, %v348
      %v399 = vpack.c.bf16 %v359, %v356
      %v400 = vpack.c.bf16 %v367, %v364
      %v401 = vpack.c.bf16 %v375, %v372
      %v418 = vunpack.c.l.b16 %v378
      %v419 = vunpack.c.l.b16 %v379
      %v420 = vunpack.c.l.b16 %v380
      %v421 = vunpack.c.l.b16 %v381
      %v422 = vunpack.c.l.b16 %v382
      %v423 = vunpack.c.l.b16 %v383
      %v424 = vunpack.c.l.b16 %v384
      %v425 = vunpack.c.l.b16 %v385
      %v426 = vunpack.c.l.b16 %v386
      %v427 = vunpack.c.l.b16 %v387
      %v428 = vunpack.c.l.b16 %v388
      %v429 = vunpack.c.l.b16 %v389
      %v430 = vunpack.c.l.b16 %v390
      %v431 = vunpack.c.l.b16 %v391
      %v432 = vunpack.c.l.b16 %v392
      %v433 = vunpack.c.l.b16 %v393
      %v434 = vpack.c.b16 %v419, %v418
      %v435 = vpack.c.b16 %v421, %v420
      %v436 = vpack.c.b16 %v423, %v422
      %v437 = vpack.c.b16 %v425, %v424
      %v438 = vpack.c.b16 %v427, %v426
      %v439 = vpack.c.b16 %v429, %v428
      %v440 = vpack.c.b16 %v431, %v430
      %v441 = vpack.c.b16 %v433, %v432
      %450 = vmatprep.subr.bf16.mxu0 0
      %451 = vmatpush1.bf16.msra.mxu0 %v401
      %452 = vmatprep.subr.bf16.mxu0 0
      %453 = vmatpush1.bf16.msra.mxu0 %v400
      %454 = vmatprep.subr.bf16.mxu0 0
      %455 = vmatpush1.bf16.msra.mxu0 %v399
      %456 = vmatprep.subr.bf16.mxu0 0
      %457 = vmatpush1.bf16.msra.mxu0 %v398
      %458 = vmatprep.subr.bf16.mxu0 0
      %459 = vmatpush1.bf16.msra.mxu0 %v397
      %460 = vmatprep.subr.bf16.mxu0 0
      %461 = vmatpush1.bf16.msra.mxu0 %v396
      %462 = vmatprep.subr.bf16.mxu0 0
      %463 = vmatpush1.bf16.msra.mxu0 %v395
      %464 = vmatprep.subr.bf16.mxu0 0
      %465 = vmatpush1.bf16.msra.mxu0 %v394
      %466 = vmatprep.subr.bf16.mxu0 0
      %467 = vmatpush2.bf16.msra.mxu0 0
      %468 = vmatprep.subr.bf16.mxu0 0
      %469 = vmatpush2.bf16.msra.mxu0 0
      %470 = vmatprep.subr.bf16.mxu0 0
      %471 = vmatpush2.bf16.msra.mxu0 0
      %472 = vmatprep.subr.bf16.mxu0 0
      %473 = vmatpush2.bf16.msra.mxu0 0
      %474 = vmatprep.subr.bf16.mxu0 0
      %475 = vmatpush2.bf16.msra.mxu0 0
      %476 = vmatprep.subr.bf16.mxu0 0
      %477 = vmatpush2.bf16.msra.mxu0 0
      %478 = vmatprep.subr.bf16.mxu0 0
      %479 = vmatpush2.bf16.msra.mxu0 0
      %480 = vmatprep.subr.bf16.mxu0 0
      %481 = vmatpush2.bf16.msra.mxu0 0
      %482 = vmatprep.mubr.bf16.mxu0 0
      %483 = vmatmul.mubr.bf16.gmra.mxu0 %v434
      %v484 = vpop.f32.mrf.mxu0
      %v485 = vadd.f32 0.0, %v484
      %v486 = vpop.f32.mrf.mxu0
      %v487 = vpop.f32.mrf.mxu0
      %v488 = vadd.f32 0.0, %v487
      %v489 = vpop.f32.mrf.mxu0
      %490 = vmatprep.mubr.bf16.mxu0 0
      %491 = vmatmul.mubr.bf16.gmra.mxu0 %v435
      %v492 = vpop.f32.mrf.mxu0
      %v493 = vadd.f32 0.0, %v492
      %v494 = vpop.f32.mrf.mxu0
      %v495 = vpop.f32.mrf.mxu0
      %v496 = vadd.f32 0.0, %v495
      %v497 = vpop.f32.mrf.mxu0
      %498 = vmatprep.mubr.bf16.mxu0 0
      %499 = vmatmul.mubr.bf16.gmra.mxu0 %v436
      %v500 = vpop.f32.mrf.mxu0
      %v501 = vadd.f32 0.0, %v500
      %v502 = vpop.f32.mrf.mxu0
      %v503 = vpop.f32.mrf.mxu0
      %v504 = vadd.f32 0.0, %v503
      %v505 = vpop.f32.mrf.mxu0
      %506 = vmatprep.mubr.bf16.mxu0 0
      %507 = vmatmul.mubr.bf16.gmra.mxu0 %v437
      %v508 = vpop.f32.mrf.mxu0
      %v509 = vadd.f32 0.0, %v508
      %v510 = vpop.f32.mrf.mxu0
      %v511 = vpop.f32.mrf.mxu0
      %v512 = vadd.f32 0.0, %v511
      %v513 = vpop.f32.mrf.mxu0
      %514 = vmatprep.mubr.bf16.mxu0 0
      %515 = vmatmul.mubr.bf16.gmra.mxu0 %v438
      %v516 = vpop.f32.mrf.mxu0
      %v517 = vadd.f32 0.0, %v516
      %v518 = vpop.f32.mrf.mxu0
      %v519 = vpop.f32.mrf.mxu0
      %v520 = vadd.f32 0.0, %v519
      %v521 = vpop.f32.mrf.mxu0
      %522 = vmatprep.mubr.bf16.mxu0 0
      %523 = vmatmul.mubr.bf16.gmra.mxu0 %v439
      %v524 = vpop.f32.mrf.mxu0
      %v525 = vadd.f32 0.0, %v524
      %v526 = vpop.f32.mrf.mxu0
      %v527 = vpop.f32.mrf.mxu0
      %v528 = vadd.f32 0.0, %v527
      %v529 = vpop.f32.mrf.mxu0
      %530 = vmatprep.mubr.bf16.mxu0 0
      %531 = vmatmul.mubr.bf16.gmra.mxu0 %v440
      %v532 = vpop.f32.mrf.mxu0
      %v533 = vadd.f32 0.0, %v532
      %v534 = vpop.f32.mrf.mxu0
      %v535 = vpop.f32.mrf.mxu0
      %v536 = vadd.f32 0.0, %v535
      %v537 = vpop.f32.mrf.mxu0
      %538 = vmatprep.mubr.bf16.mxu0 0
      %539 = vmatmul.mubr.bf16.gmra.mxu0 %v441
      %v540 = vpop.f32.mrf.mxu0
      %v541 = vadd.f32 0.0, %v540
      %v542 = vpop.f32.mrf.mxu0
      %v543 = vpop.f32.mrf.mxu0
      %v544 = vadd.f32 0.0, %v543
      %v545 = vpop.f32.mrf.mxu0
      %546 = vdwg.mxu0
      %v547 = vpack.c.bf16 %v488, %v485
      %v548 = vpack.c.bf16 %v496, %v493
      %v549 = vpack.c.bf16 %v504, %v501
      %v550 = vpack.c.bf16 %v512, %v509
      %v551 = vpack.c.bf16 %v520, %v517
      %v552 = vpack.c.bf16 %v528, %v525
      %v553 = vpack.c.bf16 %v536, %v533
      %v554 = vpack.c.bf16 %v544, %v541
      %v555 = vld [vmem:[#allocation9] sm:$0xff]
      %v556 = vld [vmem:[#allocation9 + $0x8] sm:$0xf]
      %v557 = vld [vmem:[#allocation9 + $0xc] sm:$0xff]
      %v558 = vld [vmem:[#allocation9 + $0x14] sm:$0xf]
      %v559 = vld [vmem:[#allocation9 + $0x18] sm:$0xff]
      %v560 = vld [vmem:[#allocation9 + $0x20] sm:$0xf]
      %v561 = vld [vmem:[#allocation9 + $0x24] sm:$0xff]
      %v562 = vld [vmem:[#allocation9 + $0x2c] sm:$0xf]
      %v563 = vld [vmem:[#allocation9 + $0x30] sm:$0xff]
      %v564 = vld [vmem:[#allocation9 + $0x38] sm:$0xf]
      %v565 = vld [vmem:[#allocation9 + $0x3c] sm:$0xff]
      %v566 = vld [vmem:[#allocation9 + $0x44] sm:$0xf]
      %v567 = vld [vmem:[#allocation9 + $0x48] sm:$0xff]
      %v568 = vld [vmem:[#allocation9 + $0x50] sm:$0xf]
      %v569 = vld [vmem:[#allocation9 + $0x54] sm:$0xff]
      %v570 = vld [vmem:[#allocation9 + $0x5c] sm:$0xf]
      %v571 = vld [vmem:[#allocation9 + $0x60] sm:$0xff]
      %v572 = vld [vmem:[#allocation9 + $0x68] sm:$0xf]
      %v573 = vld [vmem:[#allocation9 + $0x6c] sm:$0xff]
      %v574 = vld [vmem:[#allocation9 + $0x74] sm:$0xf]
      %v575 = vld [vmem:[#allocation9 + $0x78] sm:$0xff]
      %v576 = vld [vmem:[#allocation9 + $0x80] sm:$0xf]
      %v577 = vld [vmem:[#allocation9 + $0x84] sm:$0xff]
      %v578 = vld [vmem:[#allocation9 + $0x8c] sm:$0xf]
      %v579 = vld [vmem:[#allocation9 + $0x90] sm:$0xff]
      %v580 = vld [vmem:[#allocation9 + $0x98] sm:$0xf]
      %v581 = vld [vmem:[#allocation9 + $0x9c] sm:$0xff]
      %v582 = vld [vmem:[#allocation9 + $0xa4] sm:$0xf]
      %v583 = vld [vmem:[#allocation9 + $0xa8] sm:$0xff]
      %v584 = vld [vmem:[#allocation9 + $0xb0] sm:$0xf]
      %v585 = vld [vmem:[#allocation9 + $0xb4] sm:$0xff]
      %v586 = vld [vmem:[#allocation9 + $0xbc] sm:$0xf]
      %v587 = vld [vmem:[%s5] sm:$0x7]
      %v589 = vlaneseq
      %v590 = vshrl.u32 %v589, 7
      %v591 = vsub.s32 0, %v590
      %v592 = vrot.slane %v587, %v591
      %v593 = vlaneseq
      %v594 = vshrl.u32 %v593, 7
      %v595 = vsub.s32 1, %v594
      %v596 = vrot.slane %v587, %v595
      %v597 = vlaneseq
      %v598 = vshrl.u32 %v597, 7
      %v599 = vsub.s32 2, %v598
      %v600 = vrot.slane %v587, %v599
      %v636 = vunpack.c.l.b16 %v555
      %v637 = vunpack.c.h.b16 %v555
      %v638 = vunpack.c.l.b16 %v556
      %v639 = vunpack.c.l.b16 %v557
      %v640 = vunpack.c.h.b16 %v557
      %v641 = vunpack.c.l.b16 %v558
      %v642 = vunpack.c.l.b16 %v559
      %v643 = vunpack.c.h.b16 %v559
      %v644 = vunpack.c.l.b16 %v560
      %v645 = vunpack.c.l.b16 %v561
      %v646 = vunpack.c.h.b16 %v561
      %v647 = vunpack.c.l.b16 %v562
      %v648 = vunpack.c.l.b16 %v563
      %v649 = vunpack.c.h.b16 %v563
      %v650 = vunpack.c.l.b16 %v564
      %v651 = vunpack.c.l.b16 %v565
      %v652 = vunpack.c.h.b16 %v565
      %v653 = vunpack.c.l.b16 %v566
      %v654 = vunpack.c.l.b16 %v567
      %v655 = vunpack.c.h.b16 %v567
      %v656 = vunpack.c.l.b16 %v568
      %v657 = vunpack.c.l.b16 %v569
      %v658 = vunpack.c.h.b16 %v569
      %v659 = vunpack.c.l.b16 %v570
      %v660 = vunpack.c.l.b16 %v571
      %v661 = vunpack.c.h.b16 %v571
      %v662 = vunpack.c.l.b16 %v572
      %v663 = vunpack.c.l.b16 %v573
      %v664 = vunpack.c.h.b16 %v573
      %v665 = vunpack.c.l.b16 %v574
      %v666 = vunpack.c.l.b16 %v575
      %v667 = vunpack.c.h.b16 %v575
      %v668 = vunpack.c.l.b16 %v576
      %v669 = vunpack.c.l.b16 %v577
      %v670 = vunpack.c.h.b16 %v577
      %v671 = vunpack.c.l.b16 %v578
      %v672 = vunpack.c.l.b16 %v579
      %v673 = vunpack.c.h.b16 %v579
      %v674 = vunpack.c.l.b16 %v580
      %v675 = vunpack.c.l.b16 %v581
      %v676 = vunpack.c.h.b16 %v581
      %v677 = vunpack.c.l.b16 %v582
      %v678 = vunpack.c.l.b16 %v583
      %v679 = vunpack.c.h.b16 %v583
      %v680 = vunpack.c.l.b16 %v584
      %v681 = vunpack.c.l.b16 %v585
      %v682 = vunpack.c.h.b16 %v585
      %v683 = vunpack.c.l.b16 %v586
      %v684 = vpack.c.b16 %v639, %v636
      %v685 = vpack.c.b16 %v640, %v637
      %v686 = vpack.c.b16 %v641, %v638
      %v687 = vpack.c.b16 %v645, %v642
      %v688 = vpack.c.b16 %v646, %v643
      %v689 = vpack.c.b16 %v647, %v644
      %v690 = vpack.c.b16 %v651, %v648
      %v691 = vpack.c.b16 %v652, %v649
      %v692 = vpack.c.b16 %v653, %v650
      %v693 = vpack.c.b16 %v657, %v654
      %v694 = vpack.c.b16 %v658, %v655
      %v695 = vpack.c.b16 %v659, %v656
      %v696 = vpack.c.b16 %v663, %v660
      %v697 = vpack.c.b16 %v664, %v661
      %v698 = vpack.c.b16 %v665, %v662
      %v699 = vpack.c.b16 %v669, %v666
      %v700 = vpack.c.b16 %v670, %v667
      %v701 = vpack.c.b16 %v671, %v668
      %v702 = vpack.c.b16 %v675, %v672
      %v703 = vpack.c.b16 %v676, %v673
      %v704 = vpack.c.b16 %v677, %v674
      %v705 = vpack.c.b16 %v681, %v678
      %v706 = vpack.c.b16 %v682, %v679
      %v707 = vpack.c.b16 %v683, %v680
      %732 = vmatprep.subr.bf16.mxu0 %v706
      %733 = vmatpush1.bf16.msra.mxu0 %v705
      %734 = vmatprep.subr.bf16.mxu0 %v703
      %735 = vmatpush1.bf16.msra.mxu0 %v702
      %736 = vmatprep.subr.bf16.mxu0 %v700
      %737 = vmatpush1.bf16.msra.mxu0 %v699
      %738 = vmatprep.subr.bf16.mxu0 %v697
      %739 = vmatpush1.bf16.msra.mxu0 %v696
      %740 = vmatprep.subr.bf16.mxu0 %v694
      %741 = vmatpush1.bf16.msra.mxu0 %v693
      %742 = vmatprep.subr.bf16.mxu0 %v691
      %743 = vmatpush1.bf16.msra.mxu0 %v690
      %744 = vmatprep.subr.bf16.mxu0 %v688
      %745 = vmatpush1.bf16.msra.mxu0 %v687
      %746 = vmatprep.subr.bf16.mxu0 %v685
      %747 = vmatpush1.bf16.msra.mxu0 %v684
      %748 = vmatprep.subr.bf16.mxu0 0
      %749 = vmatpush2.bf16.msra.mxu0 0
      %750 = vmatprep.subr.bf16.mxu0 0
      %751 = vmatpush2.bf16.msra.mxu0 0
      %752 = vmatprep.subr.bf16.mxu0 0
      %753 = vmatpush2.bf16.msra.mxu0 0
      %754 = vmatprep.subr.bf16.mxu0 0
      %755 = vmatpush2.bf16.msra.mxu0 0
      %756 = vmatprep.subr.bf16.mxu0 0
      %757 = vmatpush2.bf16.msra.mxu0 0
      %758 = vmatprep.subr.bf16.mxu0 0
      %759 = vmatpush2.bf16.msra.mxu0 0
      %760 = vmatprep.subr.bf16.mxu0 0
      %761 = vmatpush2.bf16.msra.mxu0 0
      %762 = vmatprep.subr.bf16.mxu0 0
      %763 = vmatpush2.bf16.msra.mxu0 0
      %764 = vmatprep.mubr.bf16.mxu0 0
      %765 = vmatmul.mubr.bf16.gmra.mxu0 %v547
      %v766 = vpop.f32.mrf.mxu0
      %v767 = vadd.f32 %v592, %v766
      %v768 = vpop.f32.mrf.mxu0
      %v769 = vadd.f32 %v596, %v768
      %v770 = vpop.f32.mrf.mxu0
      %v771 = vadd.f32 %v592, %v770
      %v772 = vpop.f32.mrf.mxu0
      %v773 = vadd.f32 %v596, %v772
      %774 = vmatprep.mubr.bf16.mxu0 0
      %775 = vmatmul.mubr.bf16.gmra.mxu0 %v548
      %v776 = vpop.f32.mrf.mxu0
      %v777 = vadd.f32 %v592, %v776
      %v778 = vpop.f32.mrf.mxu0
      %v779 = vadd.f32 %v596, %v778
      %v780 = vpop.f32.mrf.mxu0
      %v781 = vadd.f32 %v592, %v780
      %v782 = vpop.f32.mrf.mxu0
      %v783 = vadd.f32 %v596, %v782
      %784 = vmatprep.mubr.bf16.mxu0 0
      %785 = vmatmul.mubr.bf16.gmra.mxu0 %v549
      %v786 = vpop.f32.mrf.mxu0
      %v787 = vadd.f32 %v592, %v786
      %v788 = vpop.f32.mrf.mxu0
      %v789 = vadd.f32 %v596, %v788
      %v790 = vpop.f32.mrf.mxu0
      %v791 = vadd.f32 %v592, %v790
      %v792 = vpop.f32.mrf.mxu0
      %v793 = vadd.f32 %v596, %v792
      %794 = vmatprep.mubr.bf16.mxu0 0
      %795 = vmatmul.mubr.bf16.gmra.mxu0 %v550
      %v796 = vpop.f32.mrf.mxu0
      %v797 = vadd.f32 %v592, %v796
      %v798 = vpop.f32.mrf.mxu0
      %v799 = vadd.f32 %v596, %v798
      %v800 = vpop.f32.mrf.mxu0
      %v801 = vadd.f32 %v592, %v800
      %v802 = vpop.f32.mrf.mxu0
      %v803 = vadd.f32 %v596, %v802
      %804 = vmatprep.mubr.bf16.mxu0 0
      %805 = vmatmul.mubr.bf16.gmra.mxu0 %v551
      %v806 = vpop.f32.mrf.mxu0
      %v807 = vadd.f32 %v592, %v806
      %v808 = vpop.f32.mrf.mxu0
      %v809 = vadd.f32 %v596, %v808
      %v810 = vpop.f32.mrf.mxu0
      %v811 = vadd.f32 %v592, %v810
      %v812 = vpop.f32.mrf.mxu0
      %v813 = vadd.f32 %v596, %v812
      %814 = vmatprep.mubr.bf16.mxu0 0
      %815 = vmatmul.mubr.bf16.gmra.mxu0 %v552
      %v816 = vpop.f32.mrf.mxu0
      %v817 = vadd.f32 %v592, %v816
      %v818 = vpop.f32.mrf.mxu0
      %v819 = vadd.f32 %v596, %v818
      %v820 = vpop.f32.mrf.mxu0
      %v821 = vadd.f32 %v592, %v820
      %v822 = vpop.f32.mrf.mxu0
      %v823 = vadd.f32 %v596, %v822
      %824 = vmatprep.mubr.bf16.mxu0 0
      %825 = vmatmul.mubr.bf16.gmra.mxu0 %v553
      %v826 = vpop.f32.mrf.mxu0
      %v827 = vadd.f32 %v592, %v826
      %v828 = vpop.f32.mrf.mxu0
      %v829 = vadd.f32 %v596, %v828
      %v830 = vpop.f32.mrf.mxu0
      %v831 = vadd.f32 %v592, %v830
      %v832 = vpop.f32.mrf.mxu0
      %v833 = vadd.f32 %v596, %v832
      %834 = vmatprep.mubr.bf16.mxu0 0
      %835 = vmatmul.mubr.bf16.gmra.mxu0 %v554
      %v836 = vpop.f32.mrf.mxu0
      %v837 = vadd.f32 %v592, %v836
      %v838 = vpop.f32.mrf.mxu0
      %v839 = vadd.f32 %v596, %v838
      %v840 = vpop.f32.mrf.mxu0
      %v841 = vadd.f32 %v592, %v840
      %v842 = vpop.f32.mrf.mxu0
      %v843 = vadd.f32 %v596, %v842
      %844 = vdwg.mxu0
      %845 = vmatprep.subr.bf16.mxu0 0
      %846 = vmatpush1.bf16.msra.mxu0 %v707
      %847 = vmatprep.subr.bf16.mxu0 0
      %848 = vmatpush1.bf16.msra.mxu0 %v704
      %849 = vmatprep.subr.bf16.mxu0 0
      %850 = vmatpush1.bf16.msra.mxu0 %v701
      %851 = vmatprep.subr.bf16.mxu0 0
      %852 = vmatpush1.bf16.msra.mxu0 %v698
      %853 = vmatprep.subr.bf16.mxu0 0
      %854 = vmatpush1.bf16.msra.mxu0 %v695
      %855 = vmatprep.subr.bf16.mxu0 0
      %856 = vmatpush1.bf16.msra.mxu0 %v692
      %857 = vmatprep.subr.bf16.mxu0 0
      %858 = vmatpush1.bf16.msra.mxu0 %v689
      %859 = vmatprep.subr.bf16.mxu0 0
      %860 = vmatpush1.bf16.msra.mxu0 %v686
      %861 = vmatprep.subr.bf16.mxu0 0
      %862 = vmatpush2.bf16.msra.mxu0 0
      %863 = vmatprep.subr.bf16.mxu0 0
      %864 = vmatpush2.bf16.msra.mxu0 0
      %865 = vmatprep.subr.bf16.mxu0 0
      %866 = vmatpush2.bf16.msra.mxu0 0
      %867 = vmatprep.subr.bf16.mxu0 0
      %868 = vmatpush2.bf16.msra.mxu0 0
      %869 = vmatprep.subr.bf16.mxu0 0
      %870 = vmatpush2.bf16.msra.mxu0 0
      %871 = vmatprep.subr.bf16.mxu0 0
      %872 = vmatpush2.bf16.msra.mxu0 0
      %873 = vmatprep.subr.bf16.mxu0 0
      %874 = vmatpush2.bf16.msra.mxu0 0
      %875 = vmatprep.subr.bf16.mxu0 0
      %876 = vmatpush2.bf16.msra.mxu0 0
      %877 = vmatprep.mubr.bf16.mxu0 0
      %878 = vmatmul.mubr.bf16.gmra.mxu0 %v547
      %v879 = vpop.f32.mrf.mxu0
      %v880 = vadd.f32 %v600, %v879
      %v881 = vpop.f32.mrf.mxu0
      %v882 = vpop.f32.mrf.mxu0
      %v883 = vadd.f32 %v600, %v882
      %v884 = vpop.f32.mrf.mxu0
      %885 = vmatprep.mubr.bf16.mxu0 0
      %886 = vmatmul.mubr.bf16.gmra.mxu0 %v548
      %v887 = vpop.f32.mrf.mxu0
      %v888 = vadd.f32 %v600, %v887
      %v889 = vpop.f32.mrf.mxu0
      %v890 = vpop.f32.mrf.mxu0
      %v891 = vadd.f32 %v600, %v890
      %v892 = vpop.f32.mrf.mxu0
      %893 = vmatprep.mubr.bf16.mxu0 0
      %894 = vmatmul.mubr.bf16.gmra.mxu0 %v549
      %v895 = vpop.f32.mrf.mxu0
      %v896 = vadd.f32 %v600, %v895
      %v897 = vpop.f32.mrf.mxu0
      %v898 = vpop.f32.mrf.mxu0
      %v899 = vadd.f32 %v600, %v898
      %v900 = vpop.f32.mrf.mxu0
      %901 = vmatprep.mubr.bf16.mxu0 0
      %902 = vmatmul.mubr.bf16.gmra.mxu0 %v550
      %v903 = vpop.f32.mrf.mxu0
      %v904 = vadd.f32 %v600, %v903
      %v905 = vpop.f32.mrf.mxu0
      %v906 = vpop.f32.mrf.mxu0
      %v907 = vadd.f32 %v600, %v906
      %v908 = vpop.f32.mrf.mxu0
      %909 = vmatprep.mubr.bf16.mxu0 0
      %910 = vmatmul.mubr.bf16.gmra.mxu0 %v551
      %v911 = vpop.f32.mrf.mxu0
      %v912 = vadd.f32 %v600, %v911
      %v913 = vpop.f32.mrf.mxu0
      %v914 = vpop.f32.mrf.mxu0
      %v915 = vadd.f32 %v600, %v914
      %v916 = vpop.f32.mrf.mxu0
      %917 = vmatprep.mubr.bf16.mxu0 0
      %918 = vmatmul.mubr.bf16.gmra.mxu0 %v552
      %v919 = vpop.f32.mrf.mxu0
      %v920 = vadd.f32 %v600, %v919
      %v921 = vpop.f32.mrf.mxu0
      %v922 = vpop.f32.mrf.mxu0
      %v923 = vadd.f32 %v600, %v922
      %v924 = vpop.f32.mrf.mxu0
      %925 = vmatprep.mubr.bf16.mxu0 0
      %926 = vmatmul.mubr.bf16.gmra.mxu0 %v553
      %v927 = vpop.f32.mrf.mxu0
      %v928 = vadd.f32 %v600, %v927
      %v929 = vpop.f32.mrf.mxu0
      %v930 = vpop.f32.mrf.mxu0
      %v931 = vadd.f32 %v600, %v930
      %v932 = vpop.f32.mrf.mxu0
      %933 = vmatprep.mubr.bf16.mxu0 0
      %934 = vmatmul.mubr.bf16.gmra.mxu0 %v554
      %v935 = vpop.f32.mrf.mxu0
      %v936 = vadd.f32 %v600, %v935
      %v937 = vpop.f32.mrf.mxu0
      %v938 = vpop.f32.mrf.mxu0
      %v939 = vadd.f32 %v600, %v938
      %v940 = vpop.f32.mrf.mxu0
      %941 = vdwg.mxu0
      %v942 = vld [vmem:[#allocation11] sm:$0xff]
      %v943 = vld [vmem:[#allocation11 + $0x8] sm:$0xf]
      %v944 = vld [vmem:[#allocation11 + $0xc] sm:$0xff]
      %v945 = vld [vmem:[#allocation11 + $0x14] sm:$0xf]
      %v946 = vld [vmem:[#allocation11 + $0x18] sm:$0xff]
      %v947 = vld [vmem:[#allocation11 + $0x20] sm:$0xf]
      %v948 = vld [vmem:[#allocation11 + $0x24] sm:$0xff]
      %v949 = vld [vmem:[#allocation11 + $0x2c] sm:$0xf]
      %v950 = vld [vmem:[#allocation11 + $0x30] sm:$0xff]
      %v951 = vld [vmem:[#allocation11 + $0x38] sm:$0xf]
      %v952 = vld [vmem:[#allocation11 + $0x3c] sm:$0xff]
      %v953 = vld [vmem:[#allocation11 + $0x44] sm:$0xf]
      %v954 = vld [vmem:[#allocation11 + $0x48] sm:$0xff]
      %v955 = vld [vmem:[#allocation11 + $0x50] sm:$0xf]
      %v956 = vld [vmem:[#allocation11 + $0x54] sm:$0xff]
      %v957 = vld [vmem:[#allocation11 + $0x5c] sm:$0xf]
      %v958 = vld [vmem:[#allocation11 + $0x60] sm:$0xff]
      %v959 = vld [vmem:[#allocation11 + $0x68] sm:$0xf]
      %v960 = vld [vmem:[#allocation11 + $0x6c] sm:$0xff]
      %v961 = vld [vmem:[#allocation11 + $0x74] sm:$0xf]
      %v962 = vld [vmem:[#allocation11 + $0x78] sm:$0xff]
      %v963 = vld [vmem:[#allocation11 + $0x80] sm:$0xf]
      %v964 = vld [vmem:[#allocation11 + $0x84] sm:$0xff]
      %v965 = vld [vmem:[#allocation11 + $0x8c] sm:$0xf]
      %v966 = vld [vmem:[#allocation11 + $0x90] sm:$0xff]
      %v967 = vld [vmem:[#allocation11 + $0x98] sm:$0xf]
      %v968 = vld [vmem:[#allocation11 + $0x9c] sm:$0xff]
      %v969 = vld [vmem:[#allocation11 + $0xa4] sm:$0xf]
      %v970 = vld [vmem:[#allocation11 + $0xa8] sm:$0xff]
      %v971 = vld [vmem:[#allocation11 + $0xb0] sm:$0xf]
      %v972 = vld [vmem:[#allocation11 + $0xb4] sm:$0xff]
      %v973 = vld [vmem:[#allocation11 + $0xbc] sm:$0xf]
      %v974 = vld [vmem:[%s6] sm:$0x7]
      %v976 = vlaneseq
      %v977 = vshrl.u32 %v976, 7
      %v978 = vsub.s32 0, %v977
      %v979 = vrot.slane %v974, %v978
      %v980 = vlaneseq
      %v981 = vshrl.u32 %v980, 7
      %v982 = vsub.s32 1, %v981
      %v983 = vrot.slane %v974, %v982
      %v984 = vlaneseq
      %v985 = vshrl.u32 %v984, 7
      %v986 = vsub.s32 2, %v985
      %v987 = vrot.slane %v974, %v986
      %v1023 = vunpack.c.l.b16 %v942
      %v1024 = vunpack.c.h.b16 %v942
      %v1025 = vunpack.c.l.b16 %v943
      %v1026 = vunpack.c.l.b16 %v944
      %v1027 = vunpack.c.h.b16 %v944
      %v1028 = vunpack.c.l.b16 %v945
      %v1029 = vunpack.c.l.b16 %v946
      %v1030 = vunpack.c.h.b16 %v946
      %v1031 = vunpack.c.l.b16 %v947
      %v1032 = vunpack.c.l.b16 %v948
      %v1033 = vunpack.c.h.b16 %v948
      %v1034 = vunpack.c.l.b16 %v949
      %v1035 = vunpack.c.l.b16 %v950
      %v1036 = vunpack.c.h.b16 %v950
      %v1037 = vunpack.c.l.b16 %v951
      %v1038 = vunpack.c.l.b16 %v952
      %v1039 = vunpack.c.h.b16 %v952
      %v1040 = vunpack.c.l.b16 %v953
      %v1041 = vunpack.c.l.b16 %v954
      %v1042 = vunpack.c.h.b16 %v954
      %v1043 = vunpack.c.l.b16 %v955
      %v1044 = vunpack.c.l.b16 %v956
      %v1045 = vunpack.c.h.b16 %v956
      %v1046 = vunpack.c.l.b16 %v957
      %v1047 = vunpack.c.l.b16 %v958
      %v1048 = vunpack.c.h.b16 %v958
      %v1049 = vunpack.c.l.b16 %v959
      %v1050 = vunpack.c.l.b16 %v960
      %v1051 = vunpack.c.h.b16 %v960
      %v1052 = vunpack.c.l.b16 %v961
      %v1053 = vunpack.c.l.b16 %v962
      %v1054 = vunpack.c.h.b16 %v962
      %v1055 = vunpack.c.l.b16 %v963
      %v1056 = vunpack.c.l.b16 %v964
      %v1057 = vunpack.c.h.b16 %v964
      %v1058 = vunpack.c.l.b16 %v965
      %v1059 = vunpack.c.l.b16 %v966
      %v1060 = vunpack.c.h.b16 %v966
      %v1061 = vunpack.c.l.b16 %v967
      %v1062 = vunpack.c.l.b16 %v968
      %v1063 = vunpack.c.h.b16 %v968
      %v1064 = vunpack.c.l.b16 %v969
      %v1065 = vunpack.c.l.b16 %v970
      %v1066 = vunpack.c.h.b16 %v970
      %v1067 = vunpack.c.l.b16 %v971
      %v1068 = vunpack.c.l.b16 %v972
      %v1069 = vunpack.c.h.b16 %v972
      %v1070 = vunpack.c.l.b16 %v973
      %v1071 = vpack.c.b16 %v1026, %v1023
      %v1072 = vpack.c.b16 %v1027, %v1024
      %v1073 = vpack.c.b16 %v1028, %v1025
      %v1074 = vpack.c.b16 %v1032, %v1029
      %v1075 = vpack.c.b16 %v1033, %v1030
      %v1076 = vpack.c.b16 %v1034, %v1031
      %v1077 = vpack.c.b16 %v1038, %v1035
      %v1078 = vpack.c.b16 %v1039, %v1036
      %v1079 = vpack.c.b16 %v1040, %v1037
      %v1080 = vpack.c.b16 %v1044, %v1041
      %v1081 = vpack.c.b16 %v1045, %v1042
      %v1082 = vpack.c.b16 %v1046, %v1043
      %v1083 = vpack.c.b16 %v1050, %v1047
      %v1084 = vpack.c.b16 %v1051, %v1048
      %v1085 = vpack.c.b16 %v1052, %v1049
      %v1086 = vpack.c.b16 %v1056, %v1053
      %v1087 = vpack.c.b16 %v1057, %v1054
      %v1088 = vpack.c.b16 %v1058, %v1055
      %v1089 = vpack.c.b16 %v1062, %v1059
      %v1090 = vpack.c.b16 %v1063, %v1060
      %v1091 = vpack.c.b16 %v1064, %v1061
      %v1092 = vpack.c.b16 %v1068, %v1065
      %v1093 = vpack.c.b16 %v1069, %v1066
      %v1094 = vpack.c.b16 %v1070, %v1067
      %1119 = vmatprep.subr.bf16.mxu0 %v1093
      %1120 = vmatpush1.bf16.msra.mxu0 %v1092
      %1121 = vmatprep.subr.bf16.mxu0 %v1090
      %1122 = vmatpush1.bf16.msra.mxu0 %v1089
      %1123 = vmatprep.subr.bf16.mxu0 %v1087
      %1124 = vmatpush1.bf16.msra.mxu0 %v1086
      %1125 = vmatprep.subr.bf16.mxu0 %v1084
      %1126 = vmatpush1.bf16.msra.mxu0 %v1083
      %1127 = vmatprep.subr.bf16.mxu0 %v1081
      %1128 = vmatpush1.bf16.msra.mxu0 %v1080
      %1129 = vmatprep.subr.bf16.mxu0 %v1078
      %1130 = vmatpush1.bf16.msra.mxu0 %v1077
      %1131 = vmatprep.subr.bf16.mxu0 %v1075
      %1132 = vmatpush1.bf16.msra.mxu0 %v1074
      %1133 = vmatprep.subr.bf16.mxu0 %v1072
      %1134 = vmatpush1.bf16.msra.mxu0 %v1071
      %1135 = vmatprep.subr.bf16.mxu0 0
      %1136 = vmatpush2.bf16.msra.mxu0 0
      %1137 = vmatprep.subr.bf16.mxu0 0
      %1138 = vmatpush2.bf16.msra.mxu0 0
      %1139 = vmatprep.subr.bf16.mxu0 0
      %1140 = vmatpush2.bf16.msra.mxu0 0
      %1141 = vmatprep.subr.bf16.mxu0 0
      %1142 = vmatpush2.bf16.msra.mxu0 0
      %1143 = vmatprep.subr.bf16.mxu0 0
      %1144 = vmatpush2.bf16.msra.mxu0 0
      %1145 = vmatprep.subr.bf16.mxu0 0
      %1146 = vmatpush2.bf16.msra.mxu0 0
      %1147 = vmatprep.subr.bf16.mxu0 0
      %1148 = vmatpush2.bf16.msra.mxu0 0
      %1149 = vmatprep.subr.bf16.mxu0 0
      %1150 = vmatpush2.bf16.msra.mxu0 0
      %1151 = vmatprep.mubr.bf16.mxu0 0
      %1152 = vmatmul.mubr.bf16.gmra.mxu0 %v206
      %v1153 = vpop.f32.mrf.mxu0
      %v1154 = vadd.f32 %v979, %v1153
      %v1155 = vpop.f32.mrf.mxu0
      %v1156 = vadd.f32 %v983, %v1155
      %v1157 = vpop.f32.mrf.mxu0
      %v1158 = vadd.f32 %v979, %v1157
      %v1159 = vpop.f32.mrf.mxu0
      %v1160 = vadd.f32 %v983, %v1159
      %1161 = vmatprep.mubr.bf16.mxu0 0
      %1162 = vmatmul.mubr.bf16.gmra.mxu0 %v207
      %v1163 = vpop.f32.mrf.mxu0
      %v1164 = vadd.f32 %v979, %v1163
      %v1165 = vpop.f32.mrf.mxu0
      %v1166 = vadd.f32 %v983, %v1165
      %v1167 = vpop.f32.mrf.mxu0
      %v1168 = vadd.f32 %v979, %v1167
      %v1169 = vpop.f32.mrf.mxu0
      %v1170 = vadd.f32 %v983, %v1169
      %1171 = vmatprep.mubr.bf16.mxu0 0
      %1172 = vmatmul.mubr.bf16.gmra.mxu0 %v208
      %v1173 = vpop.f32.mrf.mxu0
      %v1174 = vadd.f32 %v979, %v1173
      %v1175 = vpop.f32.mrf.mxu0
      %v1176 = vadd.f32 %v983, %v1175
      %v1177 = vpop.f32.mrf.mxu0
      %v1178 = vadd.f32 %v979, %v1177
      %v1179 = vpop.f32.mrf.mxu0
      %v1180 = vadd.f32 %v983, %v1179
      %1181 = vmatprep.mubr.bf16.mxu0 0
      %1182 = vmatmul.mubr.bf16.gmra.mxu0 %v209
      %v1183 = vpop.f32.mrf.mxu0
      %v1184 = vadd.f32 %v979, %v1183
      %v1185 = vpop.f32.mrf.mxu0
      %v1186 = vadd.f32 %v983, %v1185
      %v1187 = vpop.f32.mrf.mxu0
      %v1188 = vadd.f32 %v979, %v1187
      %v1189 = vpop.f32.mrf.mxu0
      %v1190 = vadd.f32 %v983, %v1189
      %1191 = vmatprep.mubr.bf16.mxu0 0
      %1192 = vmatmul.mubr.bf16.gmra.mxu0 %v210
      %v1193 = vpop.f32.mrf.mxu0
      %v1194 = vadd.f32 %v979, %v1193
      %v1195 = vpop.f32.mrf.mxu0
      %v1196 = vadd.f32 %v983, %v1195
      %v1197 = vpop.f32.mrf.mxu0
      %v1198 = vadd.f32 %v979, %v1197
      %v1199 = vpop.f32.mrf.mxu0
      %v1200 = vadd.f32 %v983, %v1199
      %1201 = vmatprep.mubr.bf16.mxu0 0
      %1202 = vmatmul.mubr.bf16.gmra.mxu0 %v211
      %v1203 = vpop.f32.mrf.mxu0
      %v1204 = vadd.f32 %v979, %v1203
      %v1205 = vpop.f32.mrf.mxu0
      %v1206 = vadd.f32 %v983, %v1205
      %v1207 = vpop.f32.mrf.mxu0
      %v1208 = vadd.f32 %v979, %v1207
      %v1209 = vpop.f32.mrf.mxu0
      %v1210 = vadd.f32 %v983, %v1209
      %1211 = vmatprep.mubr.bf16.mxu0 0
      %1212 = vmatmul.mubr.bf16.gmra.mxu0 %v212
      %v1213 = vpop.f32.mrf.mxu0
      %v1214 = vadd.f32 %v979, %v1213
      %v1215 = vpop.f32.mrf.mxu0
      %v1216 = vadd.f32 %v983, %v1215
      %v1217 = vpop.f32.mrf.mxu0
      %v1218 = vadd.f32 %v979, %v1217
      %v1219 = vpop.f32.mrf.mxu0
      %v1220 = vadd.f32 %v983, %v1219
      %1221 = vmatprep.mubr.bf16.mxu0 0
      %1222 = vmatmul.mubr.bf16.gmra.mxu0 %v213
      %v1223 = vpop.f32.mrf.mxu0
      %v1224 = vadd.f32 %v979, %v1223
      %v1225 = vpop.f32.mrf.mxu0
      %v1226 = vadd.f32 %v983, %v1225
      %v1227 = vpop.f32.mrf.mxu0
      %v1228 = vadd.f32 %v979, %v1227
      %v1229 = vpop.f32.mrf.mxu0
      %v1230 = vadd.f32 %v983, %v1229
      %1231 = vdwg.mxu0
      %1232 = vmatprep.subr.bf16.mxu0 0
      %1233 = vmatpush1.bf16.msra.mxu0 %v1094
      %1234 = vmatprep.subr.bf16.mxu0 0
      %1235 = vmatpush1.bf16.msra.mxu0 %v1091
      %1236 = vmatprep.subr.bf16.mxu0 0
      %1237 = vmatpush1.bf16.msra.mxu0 %v1088
      %1238 = vmatprep.subr.bf16.mxu0 0
      %1239 = vmatpush1.bf16.msra.mxu0 %v1085
      %1240 = vmatprep.subr.bf16.mxu0 0
      %1241 = vmatpush1.bf16.msra.mxu0 %v1082
      %1242 = vmatprep.subr.bf16.mxu0 0
      %1243 = vmatpush1.bf16.msra.mxu0 %v1079
      %1244 = vmatprep.subr.bf16.mxu0 0
      %1245 = vmatpush1.bf16.msra.mxu0 %v1076
      %1246 = vmatprep.subr.bf16.mxu0 0
      %1247 = vmatpush1.bf16.msra.mxu0 %v1073
      %1248 = vmatprep.subr.bf16.mxu0 0
      %1249 = vmatpush2.bf16.msra.mxu0 0
      %1250 = vmatprep.subr.bf16.mxu0 0
      %1251 = vmatpush2.bf16.msra.mxu0 0
      %1252 = vmatprep.subr.bf16.mxu0 0
      %1253 = vmatpush2.bf16.msra.mxu0 0
      %1254 = vmatprep.subr.bf16.mxu0 0
      %1255 = vmatpush2.bf16.msra.mxu0 0
      %1256 = vmatprep.subr.bf16.mxu0 0
      %1257 = vmatpush2.bf16.msra.mxu0 0
      %1258 = vmatprep.subr.bf16.mxu0 0
      %1259 = vmatpush2.bf16.msra.mxu0 0
      %1260 = vmatprep.subr.bf16.mxu0 0
      %1261 = vmatpush2.bf16.msra.mxu0 0
      %1262 = vmatprep.subr.bf16.mxu0 0
      %1263 = vmatpush2.bf16.msra.mxu0 0
      %1264 = vmatprep.mubr.bf16.mxu0 0
      %1265 = vmatmul.mubr.bf16.gmra.mxu0 %v206
      %v1266 = vpop.f32.mrf.mxu0
      %v1267 = vadd.f32 %v987, %v1266
      %v1268 = vpop.f32.mrf.mxu0
      %v1269 = vpop.f32.mrf.mxu0
      %v1270 = vadd.f32 %v987, %v1269
      %v1271 = vpop.f32.mrf.mxu0
      %1272 = vmatprep.mubr.bf16.mxu0 0
      %1273 = vmatmul.mubr.bf16.gmra.mxu0 %v207
      %v1274 = vpop.f32.mrf.mxu0
      %v1275 = vadd.f32 %v987, %v1274
      %v1276 = vpop.f32.mrf.mxu0
      %v1277 = vpop.f32.mrf.mxu0
      %v1278 = vadd.f32 %v987, %v1277
      %v1279 = vpop.f32.mrf.mxu0
      %1280 = vmatprep.mubr.bf16.mxu0 0
      %1281 = vmatmul.mubr.bf16.gmra.mxu0 %v208
      %v1282 = vpop.f32.mrf.mxu0
      %v1283 = vadd.f32 %v987, %v1282
      %v1284 = vpop.f32.mrf.mxu0
      %v1285 = vpop.f32.mrf.mxu0
      %v1286 = vadd.f32 %v987, %v1285
      %v1287 = vpop.f32.mrf.mxu0
      %1288 = vmatprep.mubr.bf16.mxu0 0
      %1289 = vmatmul.mubr.bf16.gmra.mxu0 %v209
      %v1290 = vpop.f32.mrf.mxu0
      %v1291 = vadd.f32 %v987, %v1290
      %v1292 = vpop.f32.mrf.mxu0
      %v1293 = vpop.f32.mrf.mxu0
      %v1294 = vadd.f32 %v987, %v1293
      %v1295 = vpop.f32.mrf.mxu0
      %1296 = vmatprep.mubr.bf16.mxu0 0
      %1297 = vmatmul.mubr.bf16.gmra.mxu0 %v210
      %v1298 = vpop.f32.mrf.mxu0
      %v1299 = vadd.f32 %v987, %v1298
      %v1300 = vpop.f32.mrf.mxu0
      %v1301 = vpop.f32.mrf.mxu0
      %v1302 = vadd.f32 %v987, %v1301
      %v1303 = vpop.f32.mrf.mxu0
      %1304 = vmatprep.mubr.bf16.mxu0 0
      %1305 = vmatmul.mubr.bf16.gmra.mxu0 %v211
      %v1306 = vpop.f32.mrf.mxu0
      %v1307 = vadd.f32 %v987, %v1306
      %v1308 = vpop.f32.mrf.mxu0
      %v1309 = vpop.f32.mrf.mxu0
      %v1310 = vadd.f32 %v987, %v1309
      %v1311 = vpop.f32.mrf.mxu0
      %1312 = vmatprep.mubr.bf16.mxu0 0
      %1313 = vmatmul.mubr.bf16.gmra.mxu0 %v212
      %v1314 = vpop.f32.mrf.mxu0
      %v1315 = vadd.f32 %v987, %v1314
      %v1316 = vpop.f32.mrf.mxu0
      %v1317 = vpop.f32.mrf.mxu0
      %v1318 = vadd.f32 %v987, %v1317
      %v1319 = vpop.f32.mrf.mxu0
      %1320 = vmatprep.mubr.bf16.mxu0 0
      %1321 = vmatmul.mubr.bf16.gmra.mxu0 %v213
      %v1322 = vpop.f32.mrf.mxu0
      %v1323 = vadd.f32 %v987, %v1322
      %v1324 = vpop.f32.mrf.mxu0
      %v1325 = vpop.f32.mrf.mxu0
      %v1326 = vadd.f32 %v987, %v1325
      %v1327 = vpop.f32.mrf.mxu0
      %1328 = vdwg.mxu0
      %v1329 = vadd.f32 %v767, %v1154
      %v1330 = vadd.f32 %v771, %v1158
      %v1331 = vadd.f32 %v777, %v1164
      %v1332 = vadd.f32 %v781, %v1168
      %v1333 = vadd.f32 %v787, %v1174
      %v1334 = vadd.f32 %v791, %v1178
      %v1335 = vadd.f32 %v797, %v1184
      %v1336 = vadd.f32 %v801, %v1188
      %v1337 = vadd.f32 %v807, %v1194
      %v1338 = vadd.f32 %v811, %v1198
      %v1339 = vadd.f32 %v817, %v1204
      %v1340 = vadd.f32 %v821, %v1208
      %v1341 = vadd.f32 %v827, %v1214
      %v1342 = vadd.f32 %v831, %v1218
      %v1343 = vadd.f32 %v837, %v1224
      %v1344 = vadd.f32 %v841, %v1228
      %v1345 = vxor.u32 %v1329, 2147483648
      %v1346 = vxor.u32 %v1330, 2147483648
      %v1347 = vxor.u32 %v1331, 2147483648
      %v1348 = vxor.u32 %v1332, 2147483648
      %v1349 = vxor.u32 %v1333, 2147483648
      %v1350 = vxor.u32 %v1334, 2147483648
      %v1351 = vxor.u32 %v1335, 2147483648
      %v1352 = vxor.u32 %v1336, 2147483648
      %v1353 = vxor.u32 %v1337, 2147483648
      %v1354 = vxor.u32 %v1338, 2147483648
      %v1355 = vxor.u32 %v1339, 2147483648
      %v1356 = vxor.u32 %v1340, 2147483648
      %v1357 = vxor.u32 %v1341, 2147483648
      %v1358 = vxor.u32 %v1342, 2147483648
      %v1359 = vxor.u32 %v1343, 2147483648
      %v1360 = vxor.u32 %v1344, 2147483648
      %v1361 = vmul.f32 %v1345, 1.442695
      %v1362 = vpow.pop %v1361
      %v1363 = vmul.f32 %v1346, 1.442695
      %v1364 = vpow.pop %v1363
      %v1365 = vmul.f32 %v1347, 1.442695
      %v1366 = vpow.pop %v1365
      %v1367 = vmul.f32 %v1348, 1.442695
      %v1368 = vpow.pop %v1367
      %v1369 = vmul.f32 %v1349, 1.442695
      %v1370 = vpow.pop %v1369
      %v1371 = vmul.f32 %v1350, 1.442695
      %v1372 = vpow.pop %v1371
      %v1373 = vmul.f32 %v1351, 1.442695
      %v1374 = vpow.pop %v1373
      %v1375 = vmul.f32 %v1352, 1.442695
      %v1376 = vpow.pop %v1375
      %v1377 = vmul.f32 %v1353, 1.442695
      %v1378 = vpow.pop %v1377
      %v1379 = vmul.f32 %v1354, 1.442695
      %v1380 = vpow.pop %v1379
      %v1381 = vmul.f32 %v1355, 1.442695
      %v1382 = vpow.pop %v1381
      %v1383 = vmul.f32 %v1356, 1.442695
      %v1384 = vpow.pop %v1383
      %v1385 = vmul.f32 %v1357, 1.442695
      %v1386 = vpow.pop %v1385
      %v1387 = vmul.f32 %v1358, 1.442695
      %v1388 = vpow.pop %v1387
      %v1389 = vmul.f32 %v1359, 1.442695
      %v1390 = vpow.pop %v1389
      %v1391 = vmul.f32 %v1360, 1.442695
      %v1392 = vpow.pop %v1391
      %v1393 = vadd.f32 %v1362, 1.0
      %v1394 = vadd.f32 %v1364, 1.0
      %v1395 = vadd.f32 %v1366, 1.0
      %v1396 = vadd.f32 %v1368, 1.0
      %v1397 = vadd.f32 %v1370, 1.0
      %v1398 = vadd.f32 %v1372, 1.0
      %v1399 = vadd.f32 %v1374, 1.0
      %v1400 = vadd.f32 %v1376, 1.0
      %v1401 = vadd.f32 %v1378, 1.0
      %v1402 = vadd.f32 %v1380, 1.0
      %v1403 = vadd.f32 %v1382, 1.0
      %v1404 = vadd.f32 %v1384, 1.0
      %v1405 = vadd.f32 %v1386, 1.0
      %v1406 = vadd.f32 %v1388, 1.0
      %v1407 = vadd.f32 %v1390, 1.0
      %v1408 = vadd.f32 %v1392, 1.0
      %v1409 = vrcp.pop %v1393
      %v1410 = vmul.f32 1.0, %v1409
      %v1411 = vrcp.pop %v1394
      %v1412 = vmul.f32 1.0, %v1411
      %v1413 = vrcp.pop %v1395
      %v1414 = vmul.f32 1.0, %v1413
      %v1415 = vrcp.pop %v1396
      %v1416 = vmul.f32 1.0, %v1415
      %v1417 = vrcp.pop %v1397
      %v1418 = vmul.f32 1.0, %v1417
      %v1419 = vrcp.pop %v1398
      %v1420 = vmul.f32 1.0, %v1419
      %v1421 = vrcp.pop %v1399
      %v1422 = vmul.f32 1.0, %v1421
      %v1423 = vrcp.pop %v1400
      %v1424 = vmul.f32 1.0, %v1423
      %v1425 = vrcp.pop %v1401
      %v1426 = vmul.f32 1.0, %v1425
      %v1427 = vrcp.pop %v1402
      %v1428 = vmul.f32 1.0, %v1427
      %v1429 = vrcp.pop %v1403
      %v1430 = vmul.f32 1.0, %v1429
      %v1431 = vrcp.pop %v1404
      %v1432 = vmul.f32 1.0, %v1431
      %v1433 = vrcp.pop %v1405
      %v1434 = vmul.f32 1.0, %v1433
      %v1435 = vrcp.pop %v1406
      %v1436 = vmul.f32 1.0, %v1435
      %v1437 = vrcp.pop %v1407
      %v1438 = vmul.f32 1.0, %v1437
      %v1439 = vrcp.pop %v1408
      %v1440 = vmul.f32 1.0, %v1439
      %v1441 = vadd.f32 %v769, %v1156
      %v1442 = vadd.f32 %v773, %v1160
      %v1443 = vadd.f32 %v779, %v1166
      %v1444 = vadd.f32 %v783, %v1170
      %v1445 = vadd.f32 %v789, %v1176
      %v1446 = vadd.f32 %v793, %v1180
      %v1447 = vadd.f32 %v799, %v1186
      %v1448 = vadd.f32 %v803, %v1190
      %v1449 = vadd.f32 %v809, %v1196
      %v1450 = vadd.f32 %v813, %v1200
      %v1451 = vadd.f32 %v819, %v1206
      %v1452 = vadd.f32 %v823, %v1210
      %v1453 = vadd.f32 %v829, %v1216
      %v1454 = vadd.f32 %v833, %v1220
      %v1455 = vadd.f32 %v839, %v1226
      %v1456 = vadd.f32 %v843, %v1230
      %v1457 = vxor.u32 %v1441, 2147483648
      %v1458 = vxor.u32 %v1442, 2147483648
      %v1459 = vxor.u32 %v1443, 2147483648
      %v1460 = vxor.u32 %v1444, 2147483648
      %v1461 = vxor.u32 %v1445, 2147483648
      %v1462 = vxor.u32 %v1446, 2147483648
      %v1463 = vxor.u32 %v1447, 2147483648
      %v1464 = vxor.u32 %v1448, 2147483648
      %v1465 = vxor.u32 %v1449, 2147483648
      %v1466 = vxor.u32 %v1450, 2147483648
      %v1467 = vxor.u32 %v1451, 2147483648
      %v1468 = vxor.u32 %v1452, 2147483648
      %v1469 = vxor.u32 %v1453, 2147483648
      %v1470 = vxor.u32 %v1454, 2147483648
      %v1471 = vxor.u32 %v1455, 2147483648
      %v1472 = vxor.u32 %v1456, 2147483648
      %v1473 = vmul.f32 %v1457, 1.442695
      %v1474 = vpow.pop %v1473
      %v1475 = vmul.f32 %v1458, 1.442695
      %v1476 = vpow.pop %v1475
      %v1477 = vmul.f32 %v1459, 1.442695
      %v1478 = vpow.pop %v1477
      %v1479 = vmul.f32 %v1460, 1.442695
      %v1480 = vpow.pop %v1479
      %v1481 = vmul.f32 %v1461, 1.442695
      %v1482 = vpow.pop %v1481
      %v1483 = vmul.f32 %v1462, 1.442695
      %v1484 = vpow.pop %v1483
      %v1485 = vmul.f32 %v1463, 1.442695
      %v1486 = vpow.pop %v1485
      %v1487 = vmul.f32 %v1464, 1.442695
      %v1488 = vpow.pop %v1487
      %v1489 = vmul.f32 %v1465, 1.442695
      %v1490 = vpow.pop %v1489
      %v1491 = vmul.f32 %v1466, 1.442695
      %v1492 = vpow.pop %v1491
      %v1493 = vmul.f32 %v1467, 1.442695
      %v1494 = vpow.pop %v1493
      %v1495 = vmul.f32 %v1468, 1.442695
      %v1496 = vpow.pop %v1495
      %v1497 = vmul.f32 %v1469, 1.442695
      %v1498 = vpow.pop %v1497
      %v1499 = vmul.f32 %v1470, 1.442695
      %v1500 = vpow.pop %v1499
      %v1501 = vmul.f32 %v1471, 1.442695
      %v1502 = vpow.pop %v1501
      %v1503 = vmul.f32 %v1472, 1.442695
      %v1504 = vpow.pop %v1503
      %v1505 = vadd.f32 %v1474, 1.0
      %v1506 = vadd.f32 %v1476, 1.0
      %v1507 = vadd.f32 %v1478, 1.0
      %v1508 = vadd.f32 %v1480, 1.0
      %v1509 = vadd.f32 %v1482, 1.0
      %v1510 = vadd.f32 %v1484, 1.0
      %v1511 = vadd.f32 %v1486, 1.0
      %v1512 = vadd.f32 %v1488, 1.0
      %v1513 = vadd.f32 %v1490, 1.0
      %v1514 = vadd.f32 %v1492, 1.0
      %v1515 = vadd.f32 %v1494, 1.0
      %v1516 = vadd.f32 %v1496, 1.0
      %v1517 = vadd.f32 %v1498, 1.0
      %v1518 = vadd.f32 %v1500, 1.0
      %v1519 = vadd.f32 %v1502, 1.0
      %v1520 = vadd.f32 %v1504, 1.0
      %v1521 = vrcp.pop %v1505
      %v1522 = vmul.f32 1.0, %v1521
      %v1523 = vrcp.pop %v1506
      %v1524 = vmul.f32 1.0, %v1523
      %v1525 = vrcp.pop %v1507
      %v1526 = vmul.f32 1.0, %v1525
      %v1527 = vrcp.pop %v1508
      %v1528 = vmul.f32 1.0, %v1527
      %v1529 = vrcp.pop %v1509
      %v1530 = vmul.f32 1.0, %v1529
      %v1531 = vrcp.pop %v1510
      %v1532 = vmul.f32 1.0, %v1531
      %v1533 = vrcp.pop %v1511
      %v1534 = vmul.f32 1.0, %v1533
      %v1535 = vrcp.pop %v1512
      %v1536 = vmul.f32 1.0, %v1535
      %v1537 = vrcp.pop %v1513
      %v1538 = vmul.f32 1.0, %v1537
      %v1539 = vrcp.pop %v1514
      %v1540 = vmul.f32 1.0, %v1539
      %v1541 = vrcp.pop %v1515
      %v1542 = vmul.f32 1.0, %v1541
      %v1543 = vrcp.pop %v1516
      %v1544 = vmul.f32 1.0, %v1543
      %v1545 = vrcp.pop %v1517
      %v1546 = vmul.f32 1.0, %v1545
      %v1547 = vrcp.pop %v1518
      %v1548 = vmul.f32 1.0, %v1547
      %v1549 = vrcp.pop %v1519
      %v1550 = vmul.f32 1.0, %v1549
      %v1551 = vrcp.pop %v1520
      %v1552 = vmul.f32 1.0, %v1551
      %v1553 = vmul.f32 %v1410, %v1267
      %v1554 = vmul.f32 %v1412, %v1270
      %v1555 = vmul.f32 %v1414, %v1275
      %v1556 = vmul.f32 %v1416, %v1278
      %v1557 = vmul.f32 %v1418, %v1283
      %v1558 = vmul.f32 %v1420, %v1286
      %v1559 = vmul.f32 %v1422, %v1291
      %v1560 = vmul.f32 %v1424, %v1294
      %v1561 = vmul.f32 %v1426, %v1299
      %v1562 = vmul.f32 %v1428, %v1302
      %v1563 = vmul.f32 %v1430, %v1307
      %v1564 = vmul.f32 %v1432, %v1310
      %v1565 = vmul.f32 %v1434, %v1315
      %v1566 = vmul.f32 %v1436, %v1318
      %v1567 = vmul.f32 %v1438, %v1323
      %v1568 = vmul.f32 %v1440, %v1326
      %v1569 = vadd.f32 %v880, %v1553
      %v1570 = vadd.f32 %v883, %v1554
      %v1571 = vadd.f32 %v888, %v1555
      %v1572 = vadd.f32 %v891, %v1556
      %v1573 = vadd.f32 %v896, %v1557
      %v1574 = vadd.f32 %v899, %v1558
      %v1575 = vadd.f32 %v904, %v1559
      %v1576 = vadd.f32 %v907, %v1560
      %v1577 = vadd.f32 %v912, %v1561
      %v1578 = vadd.f32 %v915, %v1562
      %v1579 = vadd.f32 %v920, %v1563
      %v1580 = vadd.f32 %v923, %v1564
      %v1581 = vadd.f32 %v928, %v1565
      %v1582 = vadd.f32 %v931, %v1566
      %v1583 = vadd.f32 %v936, %v1567
      %v1584 = vadd.f32 %v939, %v1568
      %v1585 = vtanh.pop %v1569
      %v1586 = vtanh.pop %v1570
      %v1587 = vtanh.pop %v1571
      %v1588 = vtanh.pop %v1572
      %v1589 = vtanh.pop %v1573
      %v1590 = vtanh.pop %v1574
      %v1591 = vtanh.pop %v1575
      %v1592 = vtanh.pop %v1576
      %v1593 = vtanh.pop %v1577
      %v1594 = vtanh.pop %v1578
      %v1595 = vtanh.pop %v1579
      %v1596 = vtanh.pop %v1580
      %v1597 = vtanh.pop %v1581
      %v1598 = vtanh.pop %v1582
      %v1599 = vtanh.pop %v1583
      %v1600 = vtanh.pop %v1584
      %v1601 = vsub.f32 1.0, %v1522
      %v1602 = vsub.f32 1.0, %v1524
      %v1603 = vsub.f32 1.0, %v1526
      %v1604 = vsub.f32 1.0, %v1528
      %v1605 = vsub.f32 1.0, %v1530
      %v1606 = vsub.f32 1.0, %v1532
      %v1607 = vsub.f32 1.0, %v1534
      %v1608 = vsub.f32 1.0, %v1536
      %v1609 = vsub.f32 1.0, %v1538
      %v1610 = vsub.f32 1.0, %v1540
      %v1611 = vsub.f32 1.0, %v1542
      %v1612 = vsub.f32 1.0, %v1544
      %v1613 = vsub.f32 1.0, %v1546
      %v1614 = vsub.f32 1.0, %v1548
      %v1615 = vsub.f32 1.0, %v1550
      %v1616 = vsub.f32 1.0, %v1552
      %v1617 = vmul.f32 %v1601, %v1585
      %v1618 = vmul.f32 %v1602, %v1586
      %v1619 = vmul.f32 %v1603, %v1587
      %v1620 = vmul.f32 %v1604, %v1588
      %v1621 = vmul.f32 %v1605, %v1589
      %v1622 = vmul.f32 %v1606, %v1590
      %v1623 = vmul.f32 %v1607, %v1591
      %v1624 = vmul.f32 %v1608, %v1592
      %v1625 = vmul.f32 %v1609, %v1593
      %v1626 = vmul.f32 %v1610, %v1594
      %v1627 = vmul.f32 %v1611, %v1595
      %v1628 = vmul.f32 %v1612, %v1596
      %v1629 = vmul.f32 %v1613, %v1597
      %v1630 = vmul.f32 %v1614, %v1598
      %v1631 = vmul.f32 %v1615, %v1599
      %v1632 = vmul.f32 %v1616, %v1600
      %v1633 = vmul.f32 %v1522, %v190
      %v1634 = vmul.f32 %v1524, %v191
      %v1635 = vmul.f32 %v1526, %v192
      %v1636 = vmul.f32 %v1528, %v193
      %v1637 = vmul.f32 %v1530, %v194
      %v1638 = vmul.f32 %v1532, %v195
      %v1639 = vmul.f32 %v1534, %v196
      %v1640 = vmul.f32 %v1536, %v197
      %v1641 = vmul.f32 %v1538, %v198
      %v1642 = vmul.f32 %v1540, %v199
      %v1643 = vmul.f32 %v1542, %v200
      %v1644 = vmul.f32 %v1544, %v201
      %v1645 = vmul.f32 %v1546, %v202
      %v1646 = vmul.f32 %v1548, %v203
      %v1647 = vmul.f32 %v1550, %v204
      %v1648 = vmul.f32 %v1552, %v205
      %v1649 = vadd.f32 %v1617, %v1633
      %v1650 = vadd.f32 %v1618, %v1634
      %v1651 = vadd.f32 %v1619, %v1635
      %v1652 = vadd.f32 %v1620, %v1636
      %v1653 = vadd.f32 %v1621, %v1637
      %v1654 = vadd.f32 %v1622, %v1638
      %v1655 = vadd.f32 %v1623, %v1639
      %v1656 = vadd.f32 %v1624, %v1640
      %v1657 = vadd.f32 %v1625, %v1641
      %v1658 = vadd.f32 %v1626, %v1642
      %v1659 = vadd.f32 %v1627, %v1643
      %v1660 = vadd.f32 %v1628, %v1644
      %v1661 = vadd.f32 %v1629, %v1645
      %v1662 = vadd.f32 %v1630, %v1646
      %v1663 = vadd.f32 %v1631, %v1647
      %v1664 = vadd.f32 %v1632, %v1648
      %1665 = vst [vmem:[#allocation2] sm:$0xff] %v1649
      %1666 = vst [vmem:[#allocation2 + $0x8] sm:$0xff] %v1650
      %1667 = vst [vmem:[#allocation2 + $0x10] sm:$0xff] %v1651
      %1668 = vst [vmem:[#allocation2 + $0x18] sm:$0xff] %v1652
      %1669 = vst [vmem:[#allocation2 + $0x20] sm:$0xff] %v1653
      %1670 = vst [vmem:[#allocation2 + $0x28] sm:$0xff] %v1654
      %1671 = vst [vmem:[#allocation2 + $0x30] sm:$0xff] %v1655
      %1672 = vst [vmem:[#allocation2 + $0x38] sm:$0xff] %v1656
      %1673 = vst [vmem:[#allocation2 + $0x40] sm:$0xff] %v1657
      %1674 = vst [vmem:[#allocation2 + $0x48] sm:$0xff] %v1658
      %1675 = vst [vmem:[#allocation2 + $0x50] sm:$0xff] %v1659
      %1676 = vst [vmem:[#allocation2 + $0x58] sm:$0xff] %v1660
      %1677 = vst [vmem:[#allocation2 + $0x60] sm:$0xff] %v1661
      %1678 = vst [vmem:[#allocation2 + $0x68] sm:$0xff] %v1662
      %1679 = vst [vmem:[#allocation2 + $0x70] sm:$0xff] %v1663
      %1680 = vst [vmem:[#allocation2 + $0x78] sm:$0xff] %v1664
    $region86: #{tpu_custom_call.1} parent=1 // loop_footer
      %s189 = sadd.s32 1, %s185
    $region87: #{tpu_custom_call.1} parent=1 // loop_footer_branch
      %184 = sbr.rel target = $region83
    $region88: #{tpu_custom_call.1} parent=1 // loop_exit
      _
    %v1681 = vld [vmem:[#allocation2] sm:$0xff]
    %v1682 = vld [vmem:[#allocation2 + $0x8] sm:$0xff]
    %v1683 = vld [vmem:[#allocation2 + $0x10] sm:$0xff]
    %v1684 = vld [vmem:[#allocation2 + $0x18] sm:$0xff]
    %v1685 = vld [vmem:[#allocation2 + $0x20] sm:$0xff]
    %v1686 = vld [vmem:[#allocation2 + $0x28] sm:$0xff]
    %v1687 = vld [vmem:[#allocation2 + $0x30] sm:$0xff]
    %v1688 = vld [vmem:[#allocation2 + $0x38] sm:$0xff]
    %v1689 = vld [vmem:[#allocation2 + $0x40] sm:$0xff]
    %v1690 = vld [vmem:[#allocation2 + $0x48] sm:$0xff]
    %v1691 = vld [vmem:[#allocation2 + $0x50] sm:$0xff]
    %v1692 = vld [vmem:[#allocation2 + $0x58] sm:$0xff]
    %v1693 = vld [vmem:[#allocation2 + $0x60] sm:$0xff]
    %v1694 = vld [vmem:[#allocation2 + $0x68] sm:$0xff]
    %v1695 = vld [vmem:[#allocation2 + $0x70] sm:$0xff]
    %v1696 = vld [vmem:[#allocation2 + $0x78] sm:$0xff]
    %v1697 = vmax.f32 %v1681, 0.0
    %v1698 = vmax.f32 %v1682, 0.0
    %v1699 = vmax.f32 %v1683, 0.0
    %v1700 = vmax.f32 %v1684, 0.0
    %v1701 = vmax.f32 %v1685, 0.0
    %v1702 = vmax.f32 %v1686, 0.0
    %v1703 = vmax.f32 %v1687, 0.0
    %v1704 = vmax.f32 %v1688, 0.0
    %v1705 = vmax.f32 %v1689, 0.0
    %v1706 = vmax.f32 %v1690, 0.0
    %v1707 = vmax.f32 %v1691, 0.0
    %v1708 = vmax.f32 %v1692, 0.0
    %v1709 = vmax.f32 %v1693, 0.0
    %v1710 = vmax.f32 %v1694, 0.0
    %v1711 = vmax.f32 %v1695, 0.0
    %v1712 = vmax.f32 %v1696, 0.0
    %1713 = vst [vmem:[#allocation2] sm:$0xff] %v1697
    %1714 = vst [vmem:[#allocation2 + $0x8] sm:$0xff] %v1698
    %1715 = vst [vmem:[#allocation2 + $0x10] sm:$0xff] %v1699
    %1716 = vst [vmem:[#allocation2 + $0x18] sm:$0xff] %v1700
    %1717 = vst [vmem:[#allocation2 + $0x20] sm:$0xff] %v1701
    %1718 = vst [vmem:[#allocation2 + $0x28] sm:$0xff] %v1702
    %1719 = vst [vmem:[#allocation2 + $0x30] sm:$0xff] %v1703
    %1720 = vst [vmem:[#allocation2 + $0x38] sm:$0xff] %v1704
    %1721 = vst [vmem:[#allocation2 + $0x40] sm:$0xff] %v1705
    %1722 = vst [vmem:[#allocation2 + $0x48] sm:$0xff] %v1706
    %1723 = vst [vmem:[#allocation2 + $0x50] sm:$0xff] %v1707
    %1724 = vst [vmem:[#allocation2 + $0x58] sm:$0xff] %v1708
    %1725 = vst [vmem:[#allocation2 + $0x60] sm:$0xff] %v1709
    %1726 = vst [vmem:[#allocation2 + $0x68] sm:$0xff] %v1710
    %1727 = vst [vmem:[#allocation2 + $0x70] sm:$0xff] %v1711
    %1728 = vst [vmem:[#allocation2 + $0x78] sm:$0xff] %v1712
    loop: start=0, step=1, limit=4
    $region89: #{tpu_custom_call.1} parent=1 // loop_pre_header
      _
    $region90: #{tpu_custom_call.1} parent=1 // loop_header
      %s1730 = sphi 0, %s1734
      %p1731 = scmp.ge.s32.totalorder %s1730, 4
    $region91: #{tpu_custom_call.1} parent=1 // loop_header_branch
      %1733 = sbr.rel (%p1731) target = $region95
    $region92: #{tpu_custom_call.1} parent=1 // loop_body
      %v1735 = vld [vmem:[#allocation2] sm:$0xff]
      %v1736 = vld [vmem:[#allocation2 + $0x8] sm:$0xff]
      %v1737 = vld [vmem:[#allocation2 + $0x10] sm:$0xff]
      %v1738 = vld [vmem:[#allocation2 + $0x18] sm:$0xff]
      %v1739 = vld [vmem:[#allocation2 + $0x20] sm:$0xff]
      %v1740 = vld [vmem:[#allocation2 + $0x28] sm:$0xff]
      %v1741 = vld [vmem:[#allocation2 + $0x30] sm:$0xff]
      %v1742 = vld [vmem:[#allocation2 + $0x38] sm:$0xff]
      %v1743 = vld [vmem:[#allocation2 + $0x40] sm:$0xff]
      %v1744 = vld [vmem:[#allocation2 + $0x48] sm:$0xff]
      %v1745 = vld [vmem:[#allocation2 + $0x50] sm:$0xff]
      %v1746 = vld [vmem:[#allocation2 + $0x58] sm:$0xff]
      %v1747 = vld [vmem:[#allocation2 + $0x60] sm:$0xff]
      %v1748 = vld [vmem:[#allocation2 + $0x68] sm:$0xff]
      %v1749 = vld [vmem:[#allocation2 + $0x70] sm:$0xff]
      %v1750 = vld [vmem:[#allocation2 + $0x78] sm:$0xff]
      %v1751 = vpack.c.bf16 %v1736, %v1735
      %v1752 = vpack.c.bf16 %v1738, %v1737
      %v1753 = vpack.c.bf16 %v1740, %v1739
      %v1754 = vpack.c.bf16 %v1742, %v1741
      %v1755 = vpack.c.bf16 %v1744, %v1743
      %v1756 = vpack.c.bf16 %v1746, %v1745
      %v1757 = vpack.c.bf16 %v1748, %v1747
      %v1758 = vpack.c.bf16 %v1750, %v1749
      %s1759 = smul.u32 %s1730, 16
      %s1760 = smul.addr %s1759, 4
      %s1761 = scalar_lea.vmem [#allocation12], %s1760
      %v1762 = vld [vmem:[%s1761] sm:$0xf]
      %v1763 = vld [vmem:[%s1761 + $0x4] sm:$0xf]
      %v1764 = vld [vmem:[%s1761 + $0x8] sm:$0xf]
      %v1765 = vld [vmem:[%s1761 + $0xc] sm:$0xf]
      %v1766 = vld [vmem:[%s1761 + $0x10] sm:$0xf]
      %v1767 = vld [vmem:[%s1761 + $0x14] sm:$0xf]
      %v1768 = vld [vmem:[%s1761 + $0x18] sm:$0xf]
      %v1769 = vld [vmem:[%s1761 + $0x1c] sm:$0xf]
      %v1770 = vld [vmem:[%s1761 + $0x20] sm:$0xf]
      %v1771 = vld [vmem:[%s1761 + $0x24] sm:$0xf]
      %v1772 = vld [vmem:[%s1761 + $0x28] sm:$0xf]
      %v1773 = vld [vmem:[%s1761 + $0x2c] sm:$0xf]
      %v1774 = vld [vmem:[%s1761 + $0x30] sm:$0xf]
      %v1775 = vld [vmem:[%s1761 + $0x34] sm:$0xf]
      %v1776 = vld [vmem:[%s1761 + $0x38] sm:$0xf]
      %v1777 = vld [vmem:[%s1761 + $0x3c] sm:$0xf]
      %v1794 = vunpack.c.l.b16 %v1762
      %v1795 = vunpack.c.l.b16 %v1763
      %v1796 = vunpack.c.l.b16 %v1764
      %v1797 = vunpack.c.l.b16 %v1765
      %v1798 = vunpack.c.l.b16 %v1766
      %v1799 = vunpack.c.l.b16 %v1767
      %v1800 = vunpack.c.l.b16 %v1768
      %v1801 = vunpack.c.l.b16 %v1769
      %v1802 = vunpack.c.l.b16 %v1770
      %v1803 = vunpack.c.l.b16 %v1771
      %v1804 = vunpack.c.l.b16 %v1772
      %v1805 = vunpack.c.l.b16 %v1773
      %v1806 = vunpack.c.l.b16 %v1774
      %v1807 = vunpack.c.l.b16 %v1775
      %v1808 = vunpack.c.l.b16 %v1776
      %v1809 = vunpack.c.l.b16 %v1777
      %v1810 = vpack.c.b16 %v1795, %v1794
      %v1811 = vpack.c.b16 %v1797, %v1796
      %v1812 = vpack.c.b16 %v1799, %v1798
      %v1813 = vpack.c.b16 %v1801, %v1800
      %v1814 = vpack.c.b16 %v1803, %v1802
      %v1815 = vpack.c.b16 %v1805, %v1804
      %v1816 = vpack.c.b16 %v1807, %v1806
      %v1817 = vpack.c.b16 %v1809, %v1808
      %1826 = vmatprep.subr.bf16.mxu0 0
      %1827 = vmatpush1.bf16.msra.mxu0 %v1817
      %1828 = vmatprep.subr.bf16.mxu0 0
      %1829 = vmatpush1.bf16.msra.mxu0 %v1816
      %1830 = vmatprep.subr.bf16.mxu0 0
      %1831 = vmatpush1.bf16.msra.mxu0 %v1815
      %1832 = vmatprep.subr.bf16.mxu0 0
      %1833 = vmatpush1.bf16.msra.mxu0 %v1814
      %1834 = vmatprep.subr.bf16.mxu0 0
      %1835 = vmatpush1.bf16.msra.mxu0 %v1813
      %1836 = vmatprep.subr.bf16.mxu0 0
      %1837 = vmatpush1.bf16.msra.mxu0 %v1812
      %1838 = vmatprep.subr.bf16.mxu0 0
      %1839 = vmatpush1.bf16.msra.mxu0 %v1811
      %1840 = vmatprep.subr.bf16.mxu0 0
      %1841 = vmatpush1.bf16.msra.mxu0 %v1810
      %1842 = vmatprep.subr.bf16.mxu0 0
      %1843 = vmatpush2.bf16.msra.mxu0 0
      %1844 = vmatprep.subr.bf16.mxu0 0
      %1845 = vmatpush2.bf16.msra.mxu0 0
      %1846 = vmatprep.subr.bf16.mxu0 0
      %1847 = vmatpush2.bf16.msra.mxu0 0
      %1848 = vmatprep.subr.bf16.mxu0 0
      %1849 = vmatpush2.bf16.msra.mxu0 0
      %1850 = vmatprep.subr.bf16.mxu0 0
      %1851 = vmatpush2.bf16.msra.mxu0 0
      %1852 = vmatprep.subr.bf16.mxu0 0
      %1853 = vmatpush2.bf16.msra.mxu0 0
      %1854 = vmatprep.subr.bf16.mxu0 0
      %1855 = vmatpush2.bf16.msra.mxu0 0
      %1856 = vmatprep.subr.bf16.mxu0 0
      %1857 = vmatpush2.bf16.msra.mxu0 0
      %1858 = vmatprep.mubr.bf16.mxu0 0
      %1859 = vmatmul.mubr.bf16.gmra.mxu0 %v1751
      %v1860 = vpop.f32.mrf.mxu0
      %v1861 = vadd.f32 0.0, %v1860
      %v1862 = vpop.f32.mrf.mxu0
      %v1863 = vpop.f32.mrf.mxu0
      %v1864 = vadd.f32 0.0, %v1863
      %v1865 = vpop.f32.mrf.mxu0
      %1866 = vmatprep.mubr.bf16.mxu0 0
      %1867 = vmatmul.mubr.bf16.gmra.mxu0 %v1752
      %v1868 = vpop.f32.mrf.mxu0
      %v1869 = vadd.f32 0.0, %v1868
      %v1870 = vpop.f32.mrf.mxu0
      %v1871 = vpop.f32.mrf.mxu0
      %v1872 = vadd.f32 0.0, %v1871
      %v1873 = vpop.f32.mrf.mxu0
      %1874 = vmatprep.mubr.bf16.mxu0 0
      %1875 = vmatmul.mubr.bf16.gmra.mxu0 %v1753
      %v1876 = vpop.f32.mrf.mxu0
      %v1877 = vadd.f32 0.0, %v1876
      %v1878 = vpop.f32.mrf.mxu0
      %v1879 = vpop.f32.mrf.mxu0
      %v1880 = vadd.f32 0.0, %v1879
      %v1881 = vpop.f32.mrf.mxu0
      %1882 = vmatprep.mubr.bf16.mxu0 0
      %1883 = vmatmul.mubr.bf16.gmra.mxu0 %v1754
      %v1884 = vpop.f32.mrf.mxu0
      %v1885 = vadd.f32 0.0, %v1884
      %v1886 = vpop.f32.mrf.mxu0
      %v1887 = vpop.f32.mrf.mxu0
      %v1888 = vadd.f32 0.0, %v1887
      %v1889 = vpop.f32.mrf.mxu0
      %1890 = vmatprep.mubr.bf16.mxu0 0
      %1891 = vmatmul.mubr.bf16.gmra.mxu0 %v1755
      %v1892 = vpop.f32.mrf.mxu0
      %v1893 = vadd.f32 0.0, %v1892
      %v1894 = vpop.f32.mrf.mxu0
      %v1895 = vpop.f32.mrf.mxu0
      %v1896 = vadd.f32 0.0, %v1895
      %v1897 = vpop.f32.mrf.mxu0
      %1898 = vmatprep.mubr.bf16.mxu0 0
      %1899 = vmatmul.mubr.bf16.gmra.mxu0 %v1756
      %v1900 = vpop.f32.mrf.mxu0
      %v1901 = vadd.f32 0.0, %v1900
      %v1902 = vpop.f32.mrf.mxu0
      %v1903 = vpop.f32.mrf.mxu0
      %v1904 = vadd.f32 0.0, %v1903
      %v1905 = vpop.f32.mrf.mxu0
      %1906 = vmatprep.mubr.bf16.mxu0 0
      %1907 = vmatmul.mubr.bf16.gmra.mxu0 %v1757
      %v1908 = vpop.f32.mrf.mxu0
      %v1909 = vadd.f32 0.0, %v1908
      %v1910 = vpop.f32.mrf.mxu0
      %v1911 = vpop.f32.mrf.mxu0
      %v1912 = vadd.f32 0.0, %v1911
      %v1913 = vpop.f32.mrf.mxu0
      %1914 = vmatprep.mubr.bf16.mxu0 0
      %1915 = vmatmul.mubr.bf16.gmra.mxu0 %v1758
      %v1916 = vpop.f32.mrf.mxu0
      %v1917 = vadd.f32 0.0, %v1916
      %v1918 = vpop.f32.mrf.mxu0
      %v1919 = vpop.f32.mrf.mxu0
      %v1920 = vadd.f32 0.0, %v1919
      %v1921 = vpop.f32.mrf.mxu0
      %1922 = vdwg.mxu0
      %v1923 = vld [vmem:[#allocation3] sm:$0xf]
      %v1924 = vld [vmem:[#allocation3 + $0x4] sm:$0xf]
      %v1925 = vld [vmem:[#allocation3 + $0x8] sm:$0xf]
      %v1926 = vld [vmem:[#allocation3 + $0xc] sm:$0xf]
      %v1927 = vld [vmem:[#allocation3 + $0x10] sm:$0xf]
      %v1928 = vld [vmem:[#allocation3 + $0x14] sm:$0xf]
      %v1929 = vld [vmem:[#allocation3 + $0x18] sm:$0xf]
      %v1930 = vld [vmem:[#allocation3 + $0x1c] sm:$0xf]
      %v1931 = vld [vmem:[#allocation3 + $0x20] sm:$0xf]
      %v1932 = vld [vmem:[#allocation3 + $0x24] sm:$0xf]
      %v1933 = vld [vmem:[#allocation3 + $0x28] sm:$0xf]
      %v1934 = vld [vmem:[#allocation3 + $0x2c] sm:$0xf]
      %v1935 = vld [vmem:[#allocation3 + $0x30] sm:$0xf]
      %v1936 = vld [vmem:[#allocation3 + $0x34] sm:$0xf]
      %v1937 = vld [vmem:[#allocation3 + $0x38] sm:$0xf]
      %v1938 = vld [vmem:[#allocation3 + $0x3c] sm:$0xf]
      %v1939 = vpack.c.bf16 %v1864, %v1861
      %v1940 = vpack.c.bf16 %v1872, %v1869
      %v1941 = vpack.c.bf16 %v1880, %v1877
      %v1942 = vpack.c.bf16 %v1888, %v1885
      %v1943 = vpack.c.bf16 %v1896, %v1893
      %v1944 = vpack.c.bf16 %v1904, %v1901
      %v1945 = vpack.c.bf16 %v1912, %v1909
      %v1946 = vpack.c.bf16 %v1920, %v1917
      %v1963 = vunpack.c.l.b16 %v1923
      %v1964 = vunpack.c.l.b16 %v1924
      %v1965 = vunpack.c.l.b16 %v1925
      %v1966 = vunpack.c.l.b16 %v1926
      %v1967 = vunpack.c.l.b16 %v1927
      %v1968 = vunpack.c.l.b16 %v1928
      %v1969 = vunpack.c.l.b16 %v1929
      %v1970 = vunpack.c.l.b16 %v1930
      %v1971 = vunpack.c.l.b16 %v1931
      %v1972 = vunpack.c.l.b16 %v1932
      %v1973 = vunpack.c.l.b16 %v1933
      %v1974 = vunpack.c.l.b16 %v1934
      %v1975 = vunpack.c.l.b16 %v1935
      %v1976 = vunpack.c.l.b16 %v1936
      %v1977 = vunpack.c.l.b16 %v1937
      %v1978 = vunpack.c.l.b16 %v1938
      %v1979 = vpack.c.b16 %v1964, %v1963
      %v1980 = vpack.c.b16 %v1966, %v1965
      %v1981 = vpack.c.b16 %v1968, %v1967
      %v1982 = vpack.c.b16 %v1970, %v1969
      %v1983 = vpack.c.b16 %v1972, %v1971
      %v1984 = vpack.c.b16 %v1974, %v1973
      %v1985 = vpack.c.b16 %v1976, %v1975
      %v1986 = vpack.c.b16 %v1978, %v1977
      %1995 = vmatprep.subr.bf16.mxu0 0
      %1996 = vmatpush1.bf16.msra.mxu0 %v1946
      %1997 = vmatprep.subr.bf16.mxu0 0
      %1998 = vmatpush1.bf16.msra.mxu0 %v1945
      %1999 = vmatprep.subr.bf16.mxu0 0
      %2000 = vmatpush1.bf16.msra.mxu0 %v1944
      %2001 = vmatprep.subr.bf16.mxu0 0
      %2002 = vmatpush1.bf16.msra.mxu0 %v1943
      %2003 = vmatprep.subr.bf16.mxu0 0
      %2004 = vmatpush1.bf16.msra.mxu0 %v1942
      %2005 = vmatprep.subr.bf16.mxu0 0
      %2006 = vmatpush1.bf16.msra.mxu0 %v1941
      %2007 = vmatprep.subr.bf16.mxu0 0
      %2008 = vmatpush1.bf16.msra.mxu0 %v1940
      %2009 = vmatprep.subr.bf16.mxu0 0
      %2010 = vmatpush1.bf16.msra.mxu0 %v1939
      %2011 = vmatprep.subr.bf16.mxu0 0
      %2012 = vmatpush2.bf16.msra.mxu0 0
      %2013 = vmatprep.subr.bf16.mxu0 0
      %2014 = vmatpush2.bf16.msra.mxu0 0
      %2015 = vmatprep.subr.bf16.mxu0 0
      %2016 = vmatpush2.bf16.msra.mxu0 0
      %2017 = vmatprep.subr.bf16.mxu0 0
      %2018 = vmatpush2.bf16.msra.mxu0 0
      %2019 = vmatprep.subr.bf16.mxu0 0
      %2020 = vmatpush2.bf16.msra.mxu0 0
      %2021 = vmatprep.subr.bf16.mxu0 0
      %2022 = vmatpush2.bf16.msra.mxu0 0
      %2023 = vmatprep.subr.bf16.mxu0 0
      %2024 = vmatpush2.bf16.msra.mxu0 0
      %2025 = vmatprep.subr.bf16.mxu0 0
      %2026 = vmatpush2.bf16.msra.mxu0 0
      %2027 = vmatprep.mubr.bf16.mxu0 0
      %2028 = vmatmul.mubr.bf16.gmra.mxu0 %v1979
      %v2029 = vpop.f32.mrf.mxu0
      %v2030 = vadd.f32 0.0, %v2029
      %v2031 = vpop.f32.mrf.mxu0
      %v2032 = vpop.f32.mrf.mxu0
      %v2033 = vadd.f32 0.0, %v2032
      %v2034 = vpop.f32.mrf.mxu0
      %2035 = vmatprep.mubr.bf16.mxu0 0
      %2036 = vmatmul.mubr.bf16.gmra.mxu0 %v1980
      %v2037 = vpop.f32.mrf.mxu0
      %v2038 = vadd.f32 0.0, %v2037
      %v2039 = vpop.f32.mrf.mxu0
      %v2040 = vpop.f32.mrf.mxu0
      %v2041 = vadd.f32 0.0, %v2040
      %v2042 = vpop.f32.mrf.mxu0
      %2043 = vmatprep.mubr.bf16.mxu0 0
      %2044 = vmatmul.mubr.bf16.gmra.mxu0 %v1981
      %v2045 = vpop.f32.mrf.mxu0
      %v2046 = vadd.f32 0.0, %v2045
      %v2047 = vpop.f32.mrf.mxu0
      %v2048 = vpop.f32.mrf.mxu0
      %v2049 = vadd.f32 0.0, %v2048
      %v2050 = vpop.f32.mrf.mxu0
      %2051 = vmatprep.mubr.bf16.mxu0 0
      %2052 = vmatmul.mubr.bf16.gmra.mxu0 %v1982
      %v2053 = vpop.f32.mrf.mxu0
      %v2054 = vadd.f32 0.0, %v2053
      %v2055 = vpop.f32.mrf.mxu0
      %v2056 = vpop.f32.mrf.mxu0
      %v2057 = vadd.f32 0.0, %v2056
      %v2058 = vpop.f32.mrf.mxu0
      %2059 = vmatprep.mubr.bf16.mxu0 0
      %2060 = vmatmul.mubr.bf16.gmra.mxu0 %v1983
      %v2061 = vpop.f32.mrf.mxu0
      %v2062 = vadd.f32 0.0, %v2061
      %v2063 = vpop.f32.mrf.mxu0
      %v2064 = vpop.f32.mrf.mxu0
      %v2065 = vadd.f32 0.0, %v2064
      %v2066 = vpop.f32.mrf.mxu0
      %2067 = vmatprep.mubr.bf16.mxu0 0
      %2068 = vmatmul.mubr.bf16.gmra.mxu0 %v1984
      %v2069 = vpop.f32.mrf.mxu0
      %v2070 = vadd.f32 0.0, %v2069
      %v2071 = vpop.f32.mrf.mxu0
      %v2072 = vpop.f32.mrf.mxu0
      %v2073 = vadd.f32 0.0, %v2072
      %v2074 = vpop.f32.mrf.mxu0
      %2075 = vmatprep.mubr.bf16.mxu0 0
      %2076 = vmatmul.mubr.bf16.gmra.mxu0 %v1985
      %v2077 = vpop.f32.mrf.mxu0
      %v2078 = vadd.f32 0.0, %v2077
      %v2079 = vpop.f32.mrf.mxu0
      %v2080 = vpop.f32.mrf.mxu0
      %v2081 = vadd.f32 0.0, %v2080
      %v2082 = vpop.f32.mrf.mxu0
      %2083 = vmatprep.mubr.bf16.mxu0 0
      %2084 = vmatmul.mubr.bf16.gmra.mxu0 %v1986
      %v2085 = vpop.f32.mrf.mxu0
      %v2086 = vadd.f32 0.0, %v2085
      %v2087 = vpop.f32.mrf.mxu0
      %v2088 = vpop.f32.mrf.mxu0
      %v2089 = vadd.f32 0.0, %v2088
      %v2090 = vpop.f32.mrf.mxu0
      %2091 = vdwg.mxu0
      %v2092 = vpack.c.bf16 %v2033, %v2030
      %v2093 = vpack.c.bf16 %v2041, %v2038
      %v2094 = vpack.c.bf16 %v2049, %v2046
      %v2095 = vpack.c.bf16 %v2057, %v2054
      %v2096 = vpack.c.bf16 %v2065, %v2062
      %v2097 = vpack.c.bf16 %v2073, %v2070
      %v2098 = vpack.c.bf16 %v2081, %v2078
      %v2099 = vpack.c.bf16 %v2089, %v2086
      %v2100 = vld [vmem:[#allocation14] sm:$0xff]
      %v2101 = vld [vmem:[#allocation14 + $0x8] sm:$0xf]
      %v2102 = vld [vmem:[#allocation14 + $0xc] sm:$0xff]
      %v2103 = vld [vmem:[#allocation14 + $0x14] sm:$0xf]
      %v2104 = vld [vmem:[#allocation14 + $0x18] sm:$0xff]
      %v2105 = vld [vmem:[#allocation14 + $0x20] sm:$0xf]
      %v2106 = vld [vmem:[#allocation14 + $0x24] sm:$0xff]
      %v2107 = vld [vmem:[#allocation14 + $0x2c] sm:$0xf]
      %v2108 = vld [vmem:[#allocation14 + $0x30] sm:$0xff]
      %v2109 = vld [vmem:[#allocation14 + $0x38] sm:$0xf]
      %v2110 = vld [vmem:[#allocation14 + $0x3c] sm:$0xff]
      %v2111 = vld [vmem:[#allocation14 + $0x44] sm:$0xf]
      %v2112 = vld [vmem:[#allocation14 + $0x48] sm:$0xff]
      %v2113 = vld [vmem:[#allocation14 + $0x50] sm:$0xf]
      %v2114 = vld [vmem:[#allocation14 + $0x54] sm:$0xff]
      %v2115 = vld [vmem:[#allocation14 + $0x5c] sm:$0xf]
      %v2116 = vld [vmem:[#allocation14 + $0x60] sm:$0xff]
      %v2117 = vld [vmem:[#allocation14 + $0x68] sm:$0xf]
      %v2118 = vld [vmem:[#allocation14 + $0x6c] sm:$0xff]
      %v2119 = vld [vmem:[#allocation14 + $0x74] sm:$0xf]
      %v2120 = vld [vmem:[#allocation14 + $0x78] sm:$0xff]
      %v2121 = vld [vmem:[#allocation14 + $0x80] sm:$0xf]
      %v2122 = vld [vmem:[#allocation14 + $0x84] sm:$0xff]
      %v2123 = vld [vmem:[#allocation14 + $0x8c] sm:$0xf]
      %v2124 = vld [vmem:[#allocation14 + $0x90] sm:$0xff]
      %v2125 = vld [vmem:[#allocation14 + $0x98] sm:$0xf]
      %v2126 = vld [vmem:[#allocation14 + $0x9c] sm:$0xff]
      %v2127 = vld [vmem:[#allocation14 + $0xa4] sm:$0xf]
      %v2128 = vld [vmem:[#allocation14 + $0xa8] sm:$0xff]
      %v2129 = vld [vmem:[#allocation14 + $0xb0] sm:$0xf]
      %v2130 = vld [vmem:[#allocation14 + $0xb4] sm:$0xff]
      %v2131 = vld [vmem:[#allocation14 + $0xbc] sm:$0xf]
      %v2132 = vld [vmem:[%s10] sm:$0x7]
      %v2134 = vlaneseq
      %v2135 = vshrl.u32 %v2134, 7
      %v2136 = vsub.s32 0, %v2135
      %v2137 = vrot.slane %v2132, %v2136
      %v2138 = vlaneseq
      %v2139 = vshrl.u32 %v2138, 7
      %v2140 = vsub.s32 1, %v2139
      %v2141 = vrot.slane %v2132, %v2140
      %v2142 = vlaneseq
      %v2143 = vshrl.u32 %v2142, 7
      %v2144 = vsub.s32 2, %v2143
      %v2145 = vrot.slane %v2132, %v2144
      %v2181 = vunpack.c.l.b16 %v2100
      %v2182 = vunpack.c.h.b16 %v2100
      %v2183 = vunpack.c.l.b16 %v2101
      %v2184 = vunpack.c.l.b16 %v2102
      %v2185 = vunpack.c.h.b16 %v2102
      %v2186 = vunpack.c.l.b16 %v2103
      %v2187 = vunpack.c.l.b16 %v2104
      %v2188 = vunpack.c.h.b16 %v2104
      %v2189 = vunpack.c.l.b16 %v2105
      %v2190 = vunpack.c.l.b16 %v2106
      %v2191 = vunpack.c.h.b16 %v2106
      %v2192 = vunpack.c.l.b16 %v2107
      %v2193 = vunpack.c.l.b16 %v2108
      %v2194 = vunpack.c.h.b16 %v2108
      %v2195 = vunpack.c.l.b16 %v2109
      %v2196 = vunpack.c.l.b16 %v2110
      %v2197 = vunpack.c.h.b16 %v2110
      %v2198 = vunpack.c.l.b16 %v2111
      %v2199 = vunpack.c.l.b16 %v2112
      %v2200 = vunpack.c.h.b16 %v2112
      %v2201 = vunpack.c.l.b16 %v2113
      %v2202 = vunpack.c.l.b16 %v2114
      %v2203 = vunpack.c.h.b16 %v2114
      %v2204 = vunpack.c.l.b16 %v2115
      %v2205 = vunpack.c.l.b16 %v2116
      %v2206 = vunpack.c.h.b16 %v2116
      %v2207 = vunpack.c.l.b16 %v2117
      %v2208 = vunpack.c.l.b16 %v2118
      %v2209 = vunpack.c.h.b16 %v2118
      %v2210 = vunpack.c.l.b16 %v2119
      %v2211 = vunpack.c.l.b16 %v2120
      %v2212 = vunpack.c.h.b16 %v2120
      %v2213 = vunpack.c.l.b16 %v2121
      %v2214 = vunpack.c.l.b16 %v2122
      %v2215 = vunpack.c.h.b16 %v2122
      %v2216 = vunpack.c.l.b16 %v2123
      %v2217 = vunpack.c.l.b16 %v2124
      %v2218 = vunpack.c.h.b16 %v2124
      %v2219 = vunpack.c.l.b16 %v2125
      %v2220 = vunpack.c.l.b16 %v2126
      %v2221 = vunpack.c.h.b16 %v2126
      %v2222 = vunpack.c.l.b16 %v2127
      %v2223 = vunpack.c.l.b16 %v2128
      %v2224 = vunpack.c.h.b16 %v2128
      %v2225 = vunpack.c.l.b16 %v2129
      %v2226 = vunpack.c.l.b16 %v2130
      %v2227 = vunpack.c.h.b16 %v2130
      %v2228 = vunpack.c.l.b16 %v2131
      %v2229 = vpack.c.b16 %v2184, %v2181
      %v2230 = vpack.c.b16 %v2185, %v2182
      %v2231 = vpack.c.b16 %v2186, %v2183
      %v2232 = vpack.c.b16 %v2190, %v2187
      %v2233 = vpack.c.b16 %v2191, %v2188
      %v2234 = vpack.c.b16 %v2192, %v2189
      %v2235 = vpack.c.b16 %v2196, %v2193
      %v2236 = vpack.c.b16 %v2197, %v2194
      %v2237 = vpack.c.b16 %v2198, %v2195
      %v2238 = vpack.c.b16 %v2202, %v2199
      %v2239 = vpack.c.b16 %v2203, %v2200
      %v2240 = vpack.c.b16 %v2204, %v2201
      %v2241 = vpack.c.b16 %v2208, %v2205
      %v2242 = vpack.c.b16 %v2209, %v2206
      %v2243 = vpack.c.b16 %v2210, %v2207
      %v2244 = vpack.c.b16 %v2214, %v2211
      %v2245 = vpack.c.b16 %v2215, %v2212
      %v2246 = vpack.c.b16 %v2216, %v2213
      %v2247 = vpack.c.b16 %v2220, %v2217
      %v2248 = vpack.c.b16 %v2221, %v2218
      %v2249 = vpack.c.b16 %v2222, %v2219
      %v2250 = vpack.c.b16 %v2226, %v2223
      %v2251 = vpack.c.b16 %v2227, %v2224
      %v2252 = vpack.c.b16 %v2228, %v2225
      %2277 = vmatprep.subr.bf16.mxu0 %v2251
      %2278 = vmatpush1.bf16.msra.mxu0 %v2250
      %2279 = vmatprep.subr.bf16.mxu0 %v2248
      %2280 = vmatpush1.bf16.msra.mxu0 %v2247
      %2281 = vmatprep.subr.bf16.mxu0 %v2245
      %2282 = vmatpush1.bf16.msra.mxu0 %v2244
      %2283 = vmatprep.subr.bf16.mxu0 %v2242
      %2284 = vmatpush1.bf16.msra.mxu0 %v2241
      %2285 = vmatprep.subr.bf16.mxu0 %v2239
      %2286 = vmatpush1.bf16.msra.mxu0 %v2238
      %2287 = vmatprep.subr.bf16.mxu0 %v2236
      %2288 = vmatpush1.bf16.msra.mxu0 %v2235
      %2289 = vmatprep.subr.bf16.mxu0 %v2233
      %2290 = vmatpush1.bf16.msra.mxu0 %v2232
      %2291 = vmatprep.subr.bf16.mxu0 %v2230
      %2292 = vmatpush1.bf16.msra.mxu0 %v2229
      %2293 = vmatprep.subr.bf16.mxu0 0
      %2294 = vmatpush2.bf16.msra.mxu0 0
      %2295 = vmatprep.subr.bf16.mxu0 0
      %2296 = vmatpush2.bf16.msra.mxu0 0
      %2297 = vmatprep.subr.bf16.mxu0 0
      %2298 = vmatpush2.bf16.msra.mxu0 0
      %2299 = vmatprep.subr.bf16.mxu0 0
      %2300 = vmatpush2.bf16.msra.mxu0 0
      %2301 = vmatprep.subr.bf16.mxu0 0
      %2302 = vmatpush2.bf16.msra.mxu0 0
      %2303 = vmatprep.subr.bf16.mxu0 0
      %2304 = vmatpush2.bf16.msra.mxu0 0
      %2305 = vmatprep.subr.bf16.mxu0 0
      %2306 = vmatpush2.bf16.msra.mxu0 0
      %2307 = vmatprep.subr.bf16.mxu0 0
      %2308 = vmatpush2.bf16.msra.mxu0 0
      %2309 = vmatprep.mubr.bf16.mxu0 0
      %2310 = vmatmul.mubr.bf16.gmra.mxu0 %v2092
      %v2311 = vpop.f32.mrf.mxu0
      %v2312 = vadd.f32 %v2137, %v2311
      %v2313 = vpop.f32.mrf.mxu0
      %v2314 = vadd.f32 %v2141, %v2313
      %v2315 = vpop.f32.mrf.mxu0
      %v2316 = vadd.f32 %v2137, %v2315
      %v2317 = vpop.f32.mrf.mxu0
      %v2318 = vadd.f32 %v2141, %v2317
      %2319 = vmatprep.mubr.bf16.mxu0 0
      %2320 = vmatmul.mubr.bf16.gmra.mxu0 %v2093
      %v2321 = vpop.f32.mrf.mxu0
      %v2322 = vadd.f32 %v2137, %v2321
      %v2323 = vpop.f32.mrf.mxu0
      %v2324 = vadd.f32 %v2141, %v2323
      %v2325 = vpop.f32.mrf.mxu0
      %v2326 = vadd.f32 %v2137, %v2325
      %v2327 = vpop.f32.mrf.mxu0
      %v2328 = vadd.f32 %v2141, %v2327
      %2329 = vmatprep.mubr.bf16.mxu0 0
      %2330 = vmatmul.mubr.bf16.gmra.mxu0 %v2094
      %v2331 = vpop.f32.mrf.mxu0
      %v2332 = vadd.f32 %v2137, %v2331
      %v2333 = vpop.f32.mrf.mxu0
      %v2334 = vadd.f32 %v2141, %v2333
      %v2335 = vpop.f32.mrf.mxu0
      %v2336 = vadd.f32 %v2137, %v2335
      %v2337 = vpop.f32.mrf.mxu0
      %v2338 = vadd.f32 %v2141, %v2337
      %2339 = vmatprep.mubr.bf16.mxu0 0
      %2340 = vmatmul.mubr.bf16.gmra.mxu0 %v2095
      %v2341 = vpop.f32.mrf.mxu0
      %v2342 = vadd.f32 %v2137, %v2341
      %v2343 = vpop.f32.mrf.mxu0
      %v2344 = vadd.f32 %v2141, %v2343
      %v2345 = vpop.f32.mrf.mxu0
      %v2346 = vadd.f32 %v2137, %v2345
      %v2347 = vpop.f32.mrf.mxu0
      %v2348 = vadd.f32 %v2141, %v2347
      %2349 = vmatprep.mubr.bf16.mxu0 0
      %2350 = vmatmul.mubr.bf16.gmra.mxu0 %v2096
      %v2351 = vpop.f32.mrf.mxu0
      %v2352 = vadd.f32 %v2137, %v2351
      %v2353 = vpop.f32.mrf.mxu0
      %v2354 = vadd.f32 %v2141, %v2353
      %v2355 = vpop.f32.mrf.mxu0
      %v2356 = vadd.f32 %v2137, %v2355
      %v2357 = vpop.f32.mrf.mxu0
      %v2358 = vadd.f32 %v2141, %v2357
      %2359 = vmatprep.mubr.bf16.mxu0 0
      %2360 = vmatmul.mubr.bf16.gmra.mxu0 %v2097
      %v2361 = vpop.f32.mrf.mxu0
      %v2362 = vadd.f32 %v2137, %v2361
      %v2363 = vpop.f32.mrf.mxu0
      %v2364 = vadd.f32 %v2141, %v2363
      %v2365 = vpop.f32.mrf.mxu0
      %v2366 = vadd.f32 %v2137, %v2365
      %v2367 = vpop.f32.mrf.mxu0
      %v2368 = vadd.f32 %v2141, %v2367
      %2369 = vmatprep.mubr.bf16.mxu0 0
      %2370 = vmatmul.mubr.bf16.gmra.mxu0 %v2098
      %v2371 = vpop.f32.mrf.mxu0
      %v2372 = vadd.f32 %v2137, %v2371
      %v2373 = vpop.f32.mrf.mxu0
      %v2374 = vadd.f32 %v2141, %v2373
      %v2375 = vpop.f32.mrf.mxu0
      %v2376 = vadd.f32 %v2137, %v2375
      %v2377 = vpop.f32.mrf.mxu0
      %v2378 = vadd.f32 %v2141, %v2377
      %2379 = vmatprep.mubr.bf16.mxu0 0
      %2380 = vmatmul.mubr.bf16.gmra.mxu0 %v2099
      %v2381 = vpop.f32.mrf.mxu0
      %v2382 = vadd.f32 %v2137, %v2381
      %v2383 = vpop.f32.mrf.mxu0
      %v2384 = vadd.f32 %v2141, %v2383
      %v2385 = vpop.f32.mrf.mxu0
      %v2386 = vadd.f32 %v2137, %v2385
      %v2387 = vpop.f32.mrf.mxu0
      %v2388 = vadd.f32 %v2141, %v2387
      %2389 = vdwg.mxu0
      %2390 = vmatprep.subr.bf16.mxu0 0
      %2391 = vmatpush1.bf16.msra.mxu0 %v2252
      %2392 = vmatprep.subr.bf16.mxu0 0
      %2393 = vmatpush1.bf16.msra.mxu0 %v2249
      %2394 = vmatprep.subr.bf16.mxu0 0
      %2395 = vmatpush1.bf16.msra.mxu0 %v2246
      %2396 = vmatprep.subr.bf16.mxu0 0
      %2397 = vmatpush1.bf16.msra.mxu0 %v2243
      %2398 = vmatprep.subr.bf16.mxu0 0
      %2399 = vmatpush1.bf16.msra.mxu0 %v2240
      %2400 = vmatprep.subr.bf16.mxu0 0
      %2401 = vmatpush1.bf16.msra.mxu0 %v2237
      %2402 = vmatprep.subr.bf16.mxu0 0
      %2403 = vmatpush1.bf16.msra.mxu0 %v2234
      %2404 = vmatprep.subr.bf16.mxu0 0
      %2405 = vmatpush1.bf16.msra.mxu0 %v2231
      %2406 = vmatprep.subr.bf16.mxu0 0
      %2407 = vmatpush2.bf16.msra.mxu0 0
      %2408 = vmatprep.subr.bf16.mxu0 0
      %2409 = vmatpush2.bf16.msra.mxu0 0
      %2410 = vmatprep.subr.bf16.mxu0 0
      %2411 = vmatpush2.bf16.msra.mxu0 0
      %2412 = vmatprep.subr.bf16.mxu0 0
      %2413 = vmatpush2.bf16.msra.mxu0 0
      %2414 = vmatprep.subr.bf16.mxu0 0
      %2415 = vmatpush2.bf16.msra.mxu0 0
      %2416 = vmatprep.subr.bf16.mxu0 0
      %2417 = vmatpush2.bf16.msra.mxu0 0
      %2418 = vmatprep.subr.bf16.mxu0 0
      %2419 = vmatpush2.bf16.msra.mxu0 0
      %2420 = vmatprep.subr.bf16.mxu0 0
      %2421 = vmatpush2.bf16.msra.mxu0 0
      %2422 = vmatprep.mubr.bf16.mxu0 0
      %2423 = vmatmul.mubr.bf16.gmra.mxu0 %v2092
      %v2424 = vpop.f32.mrf.mxu0
      %v2425 = vadd.f32 %v2145, %v2424
      %v2426 = vpop.f32.mrf.mxu0
      %v2427 = vpop.f32.mrf.mxu0
      %v2428 = vadd.f32 %v2145, %v2427
      %v2429 = vpop.f32.mrf.mxu0
      %2430 = vmatprep.mubr.bf16.mxu0 0
      %2431 = vmatmul.mubr.bf16.gmra.mxu0 %v2093
      %v2432 = vpop.f32.mrf.mxu0
      %v2433 = vadd.f32 %v2145, %v2432
      %v2434 = vpop.f32.mrf.mxu0
      %v2435 = vpop.f32.mrf.mxu0
      %v2436 = vadd.f32 %v2145, %v2435
      %v2437 = vpop.f32.mrf.mxu0
      %2438 = vmatprep.mubr.bf16.mxu0 0
      %2439 = vmatmul.mubr.bf16.gmra.mxu0 %v2094
      %v2440 = vpop.f32.mrf.mxu0
      %v2441 = vadd.f32 %v2145, %v2440
      %v2442 = vpop.f32.mrf.mxu0
      %v2443 = vpop.f32.mrf.mxu0
      %v2444 = vadd.f32 %v2145, %v2443
      %v2445 = vpop.f32.mrf.mxu0
      %2446 = vmatprep.mubr.bf16.mxu0 0
      %2447 = vmatmul.mubr.bf16.gmra.mxu0 %v2095
      %v2448 = vpop.f32.mrf.mxu0
      %v2449 = vadd.f32 %v2145, %v2448
      %v2450 = vpop.f32.mrf.mxu0
      %v2451 = vpop.f32.mrf.mxu0
      %v2452 = vadd.f32 %v2145, %v2451
      %v2453 = vpop.f32.mrf.mxu0
      %2454 = vmatprep.mubr.bf16.mxu0 0
      %2455 = vmatmul.mubr.bf16.gmra.mxu0 %v2096
      %v2456 = vpop.f32.mrf.mxu0
      %v2457 = vadd.f32 %v2145, %v2456
      %v2458 = vpop.f32.mrf.mxu0
      %v2459 = vpop.f32.mrf.mxu0
      %v2460 = vadd.f32 %v2145, %v2459
      %v2461 = vpop.f32.mrf.mxu0
      %2462 = vmatprep.mubr.bf16.mxu0 0
      %2463 = vmatmul.mubr.bf16.gmra.mxu0 %v2097
      %v2464 = vpop.f32.mrf.mxu0
      %v2465 = vadd.f32 %v2145, %v2464
      %v2466 = vpop.f32.mrf.mxu0
      %v2467 = vpop.f32.mrf.mxu0
      %v2468 = vadd.f32 %v2145, %v2467
      %v2469 = vpop.f32.mrf.mxu0
      %2470 = vmatprep.mubr.bf16.mxu0 0
      %2471 = vmatmul.mubr.bf16.gmra.mxu0 %v2098
      %v2472 = vpop.f32.mrf.mxu0
      %v2473 = vadd.f32 %v2145, %v2472
      %v2474 = vpop.f32.mrf.mxu0
      %v2475 = vpop.f32.mrf.mxu0
      %v2476 = vadd.f32 %v2145, %v2475
      %v2477 = vpop.f32.mrf.mxu0
      %2478 = vmatprep.mubr.bf16.mxu0 0
      %2479 = vmatmul.mubr.bf16.gmra.mxu0 %v2099
      %v2480 = vpop.f32.mrf.mxu0
      %v2481 = vadd.f32 %v2145, %v2480
      %v2482 = vpop.f32.mrf.mxu0
      %v2483 = vpop.f32.mrf.mxu0
      %v2484 = vadd.f32 %v2145, %v2483
      %v2485 = vpop.f32.mrf.mxu0
      %2486 = vdwg.mxu0
      %v2487 = vld [vmem:[#allocation15] sm:$0xff]
      %v2488 = vld [vmem:[#allocation15 + $0x8] sm:$0xf]
      %v2489 = vld [vmem:[#allocation15 + $0xc] sm:$0xff]
      %v2490 = vld [vmem:[#allocation15 + $0x14] sm:$0xf]
      %v2491 = vld [vmem:[#allocation15 + $0x18] sm:$0xff]
      %v2492 = vld [vmem:[#allocation15 + $0x20] sm:$0xf]
      %v2493 = vld [vmem:[#allocation15 + $0x24] sm:$0xff]
      %v2494 = vld [vmem:[#allocation15 + $0x2c] sm:$0xf]
      %v2495 = vld [vmem:[#allocation15 + $0x30] sm:$0xff]
      %v2496 = vld [vmem:[#allocation15 + $0x38] sm:$0xf]
      %v2497 = vld [vmem:[#allocation15 + $0x3c] sm:$0xff]
      %v2498 = vld [vmem:[#allocation15 + $0x44] sm:$0xf]
      %v2499 = vld [vmem:[#allocation15 + $0x48] sm:$0xff]
      %v2500 = vld [vmem:[#allocation15 + $0x50] sm:$0xf]
      %v2501 = vld [vmem:[#allocation15 + $0x54] sm:$0xff]
      %v2502 = vld [vmem:[#allocation15 + $0x5c] sm:$0xf]
      %v2503 = vld [vmem:[#allocation15 + $0x60] sm:$0xff]
      %v2504 = vld [vmem:[#allocation15 + $0x68] sm:$0xf]
      %v2505 = vld [vmem:[#allocation15 + $0x6c] sm:$0xff]
      %v2506 = vld [vmem:[#allocation15 + $0x74] sm:$0xf]
      %v2507 = vld [vmem:[#allocation15 + $0x78] sm:$0xff]
      %v2508 = vld [vmem:[#allocation15 + $0x80] sm:$0xf]
      %v2509 = vld [vmem:[#allocation15 + $0x84] sm:$0xff]
      %v2510 = vld [vmem:[#allocation15 + $0x8c] sm:$0xf]
      %v2511 = vld [vmem:[#allocation15 + $0x90] sm:$0xff]
      %v2512 = vld [vmem:[#allocation15 + $0x98] sm:$0xf]
      %v2513 = vld [vmem:[#allocation15 + $0x9c] sm:$0xff]
      %v2514 = vld [vmem:[#allocation15 + $0xa4] sm:$0xf]
      %v2515 = vld [vmem:[#allocation15 + $0xa8] sm:$0xff]
      %v2516 = vld [vmem:[#allocation15 + $0xb0] sm:$0xf]
      %v2517 = vld [vmem:[#allocation15 + $0xb4] sm:$0xff]
      %v2518 = vld [vmem:[#allocation15 + $0xbc] sm:$0xf]
      %v2519 = vld [vmem:[%s11] sm:$0x7]
      %v2521 = vlaneseq
      %v2522 = vshrl.u32 %v2521, 7
      %v2523 = vsub.s32 0, %v2522
      %v2524 = vrot.slane %v2519, %v2523
      %v2525 = vlaneseq
      %v2526 = vshrl.u32 %v2525, 7
      %v2527 = vsub.s32 1, %v2526
      %v2528 = vrot.slane %v2519, %v2527
      %v2529 = vlaneseq
      %v2530 = vshrl.u32 %v2529, 7
      %v2531 = vsub.s32 2, %v2530
      %v2532 = vrot.slane %v2519, %v2531
      %v2568 = vunpack.c.l.b16 %v2487
      %v2569 = vunpack.c.h.b16 %v2487
      %v2570 = vunpack.c.l.b16 %v2488
      %v2571 = vunpack.c.l.b16 %v2489
      %v2572 = vunpack.c.h.b16 %v2489
      %v2573 = vunpack.c.l.b16 %v2490
      %v2574 = vunpack.c.l.b16 %v2491
      %v2575 = vunpack.c.h.b16 %v2491
      %v2576 = vunpack.c.l.b16 %v2492
      %v2577 = vunpack.c.l.b16 %v2493
      %v2578 = vunpack.c.h.b16 %v2493
      %v2579 = vunpack.c.l.b16 %v2494
      %v2580 = vunpack.c.l.b16 %v2495
      %v2581 = vunpack.c.h.b16 %v2495
      %v2582 = vunpack.c.l.b16 %v2496
      %v2583 = vunpack.c.l.b16 %v2497
      %v2584 = vunpack.c.h.b16 %v2497
      %v2585 = vunpack.c.l.b16 %v2498
      %v2586 = vunpack.c.l.b16 %v2499
      %v2587 = vunpack.c.h.b16 %v2499
      %v2588 = vunpack.c.l.b16 %v2500
      %v2589 = vunpack.c.l.b16 %v2501
      %v2590 = vunpack.c.h.b16 %v2501
      %v2591 = vunpack.c.l.b16 %v2502
      %v2592 = vunpack.c.l.b16 %v2503
      %v2593 = vunpack.c.h.b16 %v2503
      %v2594 = vunpack.c.l.b16 %v2504
      %v2595 = vunpack.c.l.b16 %v2505
      %v2596 = vunpack.c.h.b16 %v2505
      %v2597 = vunpack.c.l.b16 %v2506
      %v2598 = vunpack.c.l.b16 %v2507
      %v2599 = vunpack.c.h.b16 %v2507
      %v2600 = vunpack.c.l.b16 %v2508
      %v2601 = vunpack.c.l.b16 %v2509
      %v2602 = vunpack.c.h.b16 %v2509
      %v2603 = vunpack.c.l.b16 %v2510
      %v2604 = vunpack.c.l.b16 %v2511
      %v2605 = vunpack.c.h.b16 %v2511
      %v2606 = vunpack.c.l.b16 %v2512
      %v2607 = vunpack.c.l.b16 %v2513
      %v2608 = vunpack.c.h.b16 %v2513
      %v2609 = vunpack.c.l.b16 %v2514
      %v2610 = vunpack.c.l.b16 %v2515
      %v2611 = vunpack.c.h.b16 %v2515
      %v2612 = vunpack.c.l.b16 %v2516
      %v2613 = vunpack.c.l.b16 %v2517
      %v2614 = vunpack.c.h.b16 %v2517
      %v2615 = vunpack.c.l.b16 %v2518
      %v2616 = vpack.c.b16 %v2571, %v2568
      %v2617 = vpack.c.b16 %v2572, %v2569
      %v2618 = vpack.c.b16 %v2573, %v2570
      %v2619 = vpack.c.b16 %v2577, %v2574
      %v2620 = vpack.c.b16 %v2578, %v2575
      %v2621 = vpack.c.b16 %v2579, %v2576
      %v2622 = vpack.c.b16 %v2583, %v2580
      %v2623 = vpack.c.b16 %v2584, %v2581
      %v2624 = vpack.c.b16 %v2585, %v2582
      %v2625 = vpack.c.b16 %v2589, %v2586
      %v2626 = vpack.c.b16 %v2590, %v2587
      %v2627 = vpack.c.b16 %v2591, %v2588
      %v2628 = vpack.c.b16 %v2595, %v2592
      %v2629 = vpack.c.b16 %v2596, %v2593
      %v2630 = vpack.c.b16 %v2597, %v2594
      %v2631 = vpack.c.b16 %v2601, %v2598
      %v2632 = vpack.c.b16 %v2602, %v2599
      %v2633 = vpack.c.b16 %v2603, %v2600
      %v2634 = vpack.c.b16 %v2607, %v2604
      %v2635 = vpack.c.b16 %v2608, %v2605
      %v2636 = vpack.c.b16 %v2609, %v2606
      %v2637 = vpack.c.b16 %v2613, %v2610
      %v2638 = vpack.c.b16 %v2614, %v2611
      %v2639 = vpack.c.b16 %v2615, %v2612
      %2664 = vmatprep.subr.bf16.mxu0 %v2638
      %2665 = vmatpush1.bf16.msra.mxu0 %v2637
      %2666 = vmatprep.subr.bf16.mxu0 %v2635
      %2667 = vmatpush1.bf16.msra.mxu0 %v2634
      %2668 = vmatprep.subr.bf16.mxu0 %v2632
      %2669 = vmatpush1.bf16.msra.mxu0 %v2631
      %2670 = vmatprep.subr.bf16.mxu0 %v2629
      %2671 = vmatpush1.bf16.msra.mxu0 %v2628
      %2672 = vmatprep.subr.bf16.mxu0 %v2626
      %2673 = vmatpush1.bf16.msra.mxu0 %v2625
      %2674 = vmatprep.subr.bf16.mxu0 %v2623
      %2675 = vmatpush1.bf16.msra.mxu0 %v2622
      %2676 = vmatprep.subr.bf16.mxu0 %v2620
      %2677 = vmatpush1.bf16.msra.mxu0 %v2619
      %2678 = vmatprep.subr.bf16.mxu0 %v2617
      %2679 = vmatpush1.bf16.msra.mxu0 %v2616
      %2680 = vmatprep.subr.bf16.mxu0 0
      %2681 = vmatpush2.bf16.msra.mxu0 0
      %2682 = vmatprep.subr.bf16.mxu0 0
      %2683 = vmatpush2.bf16.msra.mxu0 0
      %2684 = vmatprep.subr.bf16.mxu0 0
      %2685 = vmatpush2.bf16.msra.mxu0 0
      %2686 = vmatprep.subr.bf16.mxu0 0
      %2687 = vmatpush2.bf16.msra.mxu0 0
      %2688 = vmatprep.subr.bf16.mxu0 0
      %2689 = vmatpush2.bf16.msra.mxu0 0
      %2690 = vmatprep.subr.bf16.mxu0 0
      %2691 = vmatpush2.bf16.msra.mxu0 0
      %2692 = vmatprep.subr.bf16.mxu0 0
      %2693 = vmatpush2.bf16.msra.mxu0 0
      %2694 = vmatprep.subr.bf16.mxu0 0
      %2695 = vmatpush2.bf16.msra.mxu0 0
      %2696 = vmatprep.mubr.bf16.mxu0 0
      %2697 = vmatmul.mubr.bf16.gmra.mxu0 %v1751
      %v2698 = vpop.f32.mrf.mxu0
      %v2699 = vadd.f32 %v2524, %v2698
      %v2700 = vpop.f32.mrf.mxu0
      %v2701 = vadd.f32 %v2528, %v2700
      %v2702 = vpop.f32.mrf.mxu0
      %v2703 = vadd.f32 %v2524, %v2702
      %v2704 = vpop.f32.mrf.mxu0
      %v2705 = vadd.f32 %v2528, %v2704
      %2706 = vmatprep.mubr.bf16.mxu0 0
      %2707 = vmatmul.mubr.bf16.gmra.mxu0 %v1752
      %v2708 = vpop.f32.mrf.mxu0
      %v2709 = vadd.f32 %v2524, %v2708
      %v2710 = vpop.f32.mrf.mxu0
      %v2711 = vadd.f32 %v2528, %v2710
      %v2712 = vpop.f32.mrf.mxu0
      %v2713 = vadd.f32 %v2524, %v2712
      %v2714 = vpop.f32.mrf.mxu0
      %v2715 = vadd.f32 %v2528, %v2714
      %2716 = vmatprep.mubr.bf16.mxu0 0
      %2717 = vmatmul.mubr.bf16.gmra.mxu0 %v1753
      %v2718 = vpop.f32.mrf.mxu0
      %v2719 = vadd.f32 %v2524, %v2718
      %v2720 = vpop.f32.mrf.mxu0
      %v2721 = vadd.f32 %v2528, %v2720
      %v2722 = vpop.f32.mrf.mxu0
      %v2723 = vadd.f32 %v2524, %v2722
      %v2724 = vpop.f32.mrf.mxu0
      %v2725 = vadd.f32 %v2528, %v2724
      %2726 = vmatprep.mubr.bf16.mxu0 0
      %2727 = vmatmul.mubr.bf16.gmra.mxu0 %v1754
      %v2728 = vpop.f32.mrf.mxu0
      %v2729 = vadd.f32 %v2524, %v2728
      %v2730 = vpop.f32.mrf.mxu0
      %v2731 = vadd.f32 %v2528, %v2730
      %v2732 = vpop.f32.mrf.mxu0
      %v2733 = vadd.f32 %v2524, %v2732
      %v2734 = vpop.f32.mrf.mxu0
      %v2735 = vadd.f32 %v2528, %v2734
      %2736 = vmatprep.mubr.bf16.mxu0 0
      %2737 = vmatmul.mubr.bf16.gmra.mxu0 %v1755
      %v2738 = vpop.f32.mrf.mxu0
      %v2739 = vadd.f32 %v2524, %v2738
      %v2740 = vpop.f32.mrf.mxu0
      %v2741 = vadd.f32 %v2528, %v2740
      %v2742 = vpop.f32.mrf.mxu0
      %v2743 = vadd.f32 %v2524, %v2742
      %v2744 = vpop.f32.mrf.mxu0
      %v2745 = vadd.f32 %v2528, %v2744
      %2746 = vmatprep.mubr.bf16.mxu0 0
      %2747 = vmatmul.mubr.bf16.gmra.mxu0 %v1756
      %v2748 = vpop.f32.mrf.mxu0
      %v2749 = vadd.f32 %v2524, %v2748
      %v2750 = vpop.f32.mrf.mxu0
      %v2751 = vadd.f32 %v2528, %v2750
      %v2752 = vpop.f32.mrf.mxu0
      %v2753 = vadd.f32 %v2524, %v2752
      %v2754 = vpop.f32.mrf.mxu0
      %v2755 = vadd.f32 %v2528, %v2754
      %2756 = vmatprep.mubr.bf16.mxu0 0
      %2757 = vmatmul.mubr.bf16.gmra.mxu0 %v1757
      %v2758 = vpop.f32.mrf.mxu0
      %v2759 = vadd.f32 %v2524, %v2758
      %v2760 = vpop.f32.mrf.mxu0
      %v2761 = vadd.f32 %v2528, %v2760
      %v2762 = vpop.f32.mrf.mxu0
      %v2763 = vadd.f32 %v2524, %v2762
      %v2764 = vpop.f32.mrf.mxu0
      %v2765 = vadd.f32 %v2528, %v2764
      %2766 = vmatprep.mubr.bf16.mxu0 0
      %2767 = vmatmul.mubr.bf16.gmra.mxu0 %v1758
      %v2768 = vpop.f32.mrf.mxu0
      %v2769 = vadd.f32 %v2524, %v2768
      %v2770 = vpop.f32.mrf.mxu0
      %v2771 = vadd.f32 %v2528, %v2770
      %v2772 = vpop.f32.mrf.mxu0
      %v2773 = vadd.f32 %v2524, %v2772
      %v2774 = vpop.f32.mrf.mxu0
      %v2775 = vadd.f32 %v2528, %v2774
      %2776 = vdwg.mxu0
      %2777 = vmatprep.subr.bf16.mxu0 0
      %2778 = vmatpush1.bf16.msra.mxu0 %v2639
      %2779 = vmatprep.subr.bf16.mxu0 0
      %2780 = vmatpush1.bf16.msra.mxu0 %v2636
      %2781 = vmatprep.subr.bf16.mxu0 0
      %2782 = vmatpush1.bf16.msra.mxu0 %v2633
      %2783 = vmatprep.subr.bf16.mxu0 0
      %2784 = vmatpush1.bf16.msra.mxu0 %v2630
      %2785 = vmatprep.subr.bf16.mxu0 0
      %2786 = vmatpush1.bf16.msra.mxu0 %v2627
      %2787 = vmatprep.subr.bf16.mxu0 0
      %2788 = vmatpush1.bf16.msra.mxu0 %v2624
      %2789 = vmatprep.subr.bf16.mxu0 0
      %2790 = vmatpush1.bf16.msra.mxu0 %v2621
      %2791 = vmatprep.subr.bf16.mxu0 0
      %2792 = vmatpush1.bf16.msra.mxu0 %v2618
      %2793 = vmatprep.subr.bf16.mxu0 0
      %2794 = vmatpush2.bf16.msra.mxu0 0
      %2795 = vmatprep.subr.bf16.mxu0 0
      %2796 = vmatpush2.bf16.msra.mxu0 0
      %2797 = vmatprep.subr.bf16.mxu0 0
      %2798 = vmatpush2.bf16.msra.mxu0 0
      %2799 = vmatprep.subr.bf16.mxu0 0
      %2800 = vmatpush2.bf16.msra.mxu0 0
      %2801 = vmatprep.subr.bf16.mxu0 0
      %2802 = vmatpush2.bf16.msra.mxu0 0
      %2803 = vmatprep.subr.bf16.mxu0 0
      %2804 = vmatpush2.bf16.msra.mxu0 0
      %2805 = vmatprep.subr.bf16.mxu0 0
      %2806 = vmatpush2.bf16.msra.mxu0 0
      %2807 = vmatprep.subr.bf16.mxu0 0
      %2808 = vmatpush2.bf16.msra.mxu0 0
      %2809 = vmatprep.mubr.bf16.mxu0 0
      %2810 = vmatmul.mubr.bf16.gmra.mxu0 %v1751
      %v2811 = vpop.f32.mrf.mxu0
      %v2812 = vadd.f32 %v2532, %v2811
      %v2813 = vpop.f32.mrf.mxu0
      %v2814 = vpop.f32.mrf.mxu0
      %v2815 = vadd.f32 %v2532, %v2814
      %v2816 = vpop.f32.mrf.mxu0
      %2817 = vmatprep.mubr.bf16.mxu0 0
      %2818 = vmatmul.mubr.bf16.gmra.mxu0 %v1752
      %v2819 = vpop.f32.mrf.mxu0
      %v2820 = vadd.f32 %v2532, %v2819
      %v2821 = vpop.f32.mrf.mxu0
      %v2822 = vpop.f32.mrf.mxu0
      %v2823 = vadd.f32 %v2532, %v2822
      %v2824 = vpop.f32.mrf.mxu0
      %2825 = vmatprep.mubr.bf16.mxu0 0
      %2826 = vmatmul.mubr.bf16.gmra.mxu0 %v1753
      %v2827 = vpop.f32.mrf.mxu0
      %v2828 = vadd.f32 %v2532, %v2827
      %v2829 = vpop.f32.mrf.mxu0
      %v2830 = vpop.f32.mrf.mxu0
      %v2831 = vadd.f32 %v2532, %v2830
      %v2832 = vpop.f32.mrf.mxu0
      %2833 = vmatprep.mubr.bf16.mxu0 0
      %2834 = vmatmul.mubr.bf16.gmra.mxu0 %v1754
      %v2835 = vpop.f32.mrf.mxu0
      %v2836 = vadd.f32 %v2532, %v2835
      %v2837 = vpop.f32.mrf.mxu0
      %v2838 = vpop.f32.mrf.mxu0
      %v2839 = vadd.f32 %v2532, %v2838
      %v2840 = vpop.f32.mrf.mxu0
      %2841 = vmatprep.mubr.bf16.mxu0 0
      %2842 = vmatmul.mubr.bf16.gmra.mxu0 %v1755
      %v2843 = vpop.f32.mrf.mxu0
      %v2844 = vadd.f32 %v2532, %v2843
      %v2845 = vpop.f32.mrf.mxu0
      %v2846 = vpop.f32.mrf.mxu0
      %v2847 = vadd.f32 %v2532, %v2846
      %v2848 = vpop.f32.mrf.mxu0
      %2849 = vmatprep.mubr.bf16.mxu0 0
      %2850 = vmatmul.mubr.bf16.gmra.mxu0 %v1756
      %v2851 = vpop.f32.mrf.mxu0
      %v2852 = vadd.f32 %v2532, %v2851
      %v2853 = vpop.f32.mrf.mxu0
      %v2854 = vpop.f32.mrf.mxu0
      %v2855 = vadd.f32 %v2532, %v2854
      %v2856 = vpop.f32.mrf.mxu0
      %2857 = vmatprep.mubr.bf16.mxu0 0
      %2858 = vmatmul.mubr.bf16.gmra.mxu0 %v1757
      %v2859 = vpop.f32.mrf.mxu0
      %v2860 = vadd.f32 %v2532, %v2859
      %v2861 = vpop.f32.mrf.mxu0
      %v2862 = vpop.f32.mrf.mxu0
      %v2863 = vadd.f32 %v2532, %v2862
      %v2864 = vpop.f32.mrf.mxu0
      %2865 = vmatprep.mubr.bf16.mxu0 0
      %2866 = vmatmul.mubr.bf16.gmra.mxu0 %v1758
      %v2867 = vpop.f32.mrf.mxu0
      %v2868 = vadd.f32 %v2532, %v2867
      %v2869 = vpop.f32.mrf.mxu0
      %v2870 = vpop.f32.mrf.mxu0
      %v2871 = vadd.f32 %v2532, %v2870
      %v2872 = vpop.f32.mrf.mxu0
      %2873 = vdwg.mxu0
      %v2874 = vadd.f32 %v2312, %v2699
      %v2875 = vadd.f32 %v2316, %v2703
      %v2876 = vadd.f32 %v2322, %v2709
      %v2877 = vadd.f32 %v2326, %v2713
      %v2878 = vadd.f32 %v2332, %v2719
      %v2879 = vadd.f32 %v2336, %v2723
      %v2880 = vadd.f32 %v2342, %v2729
      %v2881 = vadd.f32 %v2346, %v2733
      %v2882 = vadd.f32 %v2352, %v2739
      %v2883 = vadd.f32 %v2356, %v2743
      %v2884 = vadd.f32 %v2362, %v2749
      %v2885 = vadd.f32 %v2366, %v2753
      %v2886 = vadd.f32 %v2372, %v2759
      %v2887 = vadd.f32 %v2376, %v2763
      %v2888 = vadd.f32 %v2382, %v2769
      %v2889 = vadd.f32 %v2386, %v2773
      %v2890 = vxor.u32 %v2874, 2147483648
      %v2891 = vxor.u32 %v2875, 2147483648
      %v2892 = vxor.u32 %v2876, 2147483648
      %v2893 = vxor.u32 %v2877, 2147483648
      %v2894 = vxor.u32 %v2878, 2147483648
      %v2895 = vxor.u32 %v2879, 2147483648
      %v2896 = vxor.u32 %v2880, 2147483648
      %v2897 = vxor.u32 %v2881, 2147483648
      %v2898 = vxor.u32 %v2882, 2147483648
      %v2899 = vxor.u32 %v2883, 2147483648
      %v2900 = vxor.u32 %v2884, 2147483648
      %v2901 = vxor.u32 %v2885, 2147483648
      %v2902 = vxor.u32 %v2886, 2147483648
      %v2903 = vxor.u32 %v2887, 2147483648
      %v2904 = vxor.u32 %v2888, 2147483648
      %v2905 = vxor.u32 %v2889, 2147483648
      %v2906 = vmul.f32 %v2890, 1.442695
      %v2907 = vpow.pop %v2906
      %v2908 = vmul.f32 %v2891, 1.442695
      %v2909 = vpow.pop %v2908
      %v2910 = vmul.f32 %v2892, 1.442695
      %v2911 = vpow.pop %v2910
      %v2912 = vmul.f32 %v2893, 1.442695
      %v2913 = vpow.pop %v2912
      %v2914 = vmul.f32 %v2894, 1.442695
      %v2915 = vpow.pop %v2914
      %v2916 = vmul.f32 %v2895, 1.442695
      %v2917 = vpow.pop %v2916
      %v2918 = vmul.f32 %v2896, 1.442695
      %v2919 = vpow.pop %v2918
      %v2920 = vmul.f32 %v2897, 1.442695
      %v2921 = vpow.pop %v2920
      %v2922 = vmul.f32 %v2898, 1.442695
      %v2923 = vpow.pop %v2922
      %v2924 = vmul.f32 %v2899, 1.442695
      %v2925 = vpow.pop %v2924
      %v2926 = vmul.f32 %v2900, 1.442695
      %v2927 = vpow.pop %v2926
      %v2928 = vmul.f32 %v2901, 1.442695
      %v2929 = vpow.pop %v2928
      %v2930 = vmul.f32 %v2902, 1.442695
      %v2931 = vpow.pop %v2930
      %v2932 = vmul.f32 %v2903, 1.442695
      %v2933 = vpow.pop %v2932
      %v2934 = vmul.f32 %v2904, 1.442695
      %v2935 = vpow.pop %v2934
      %v2936 = vmul.f32 %v2905, 1.442695
      %v2937 = vpow.pop %v2936
      %v2938 = vadd.f32 %v2907, 1.0
      %v2939 = vadd.f32 %v2909, 1.0
      %v2940 = vadd.f32 %v2911, 1.0
      %v2941 = vadd.f32 %v2913, 1.0
      %v2942 = vadd.f32 %v2915, 1.0
      %v2943 = vadd.f32 %v2917, 1.0
      %v2944 = vadd.f32 %v2919, 1.0
      %v2945 = vadd.f32 %v2921, 1.0
      %v2946 = vadd.f32 %v2923, 1.0
      %v2947 = vadd.f32 %v2925, 1.0
      %v2948 = vadd.f32 %v2927, 1.0
      %v2949 = vadd.f32 %v2929, 1.0
      %v2950 = vadd.f32 %v2931, 1.0
      %v2951 = vadd.f32 %v2933, 1.0
      %v2952 = vadd.f32 %v2935, 1.0
      %v2953 = vadd.f32 %v2937, 1.0
      %v2954 = vrcp.pop %v2938
      %v2955 = vmul.f32 1.0, %v2954
      %v2956 = vrcp.pop %v2939
      %v2957 = vmul.f32 1.0, %v2956
      %v2958 = vrcp.pop %v2940
      %v2959 = vmul.f32 1.0, %v2958
      %v2960 = vrcp.pop %v2941
      %v2961 = vmul.f32 1.0, %v2960
      %v2962 = vrcp.pop %v2942
      %v2963 = vmul.f32 1.0, %v2962
      %v2964 = vrcp.pop %v2943
      %v2965 = vmul.f32 1.0, %v2964
      %v2966 = vrcp.pop %v2944
      %v2967 = vmul.f32 1.0, %v2966
      %v2968 = vrcp.pop %v2945
      %v2969 = vmul.f32 1.0, %v2968
      %v2970 = vrcp.pop %v2946
      %v2971 = vmul.f32 1.0, %v2970
      %v2972 = vrcp.pop %v2947
      %v2973 = vmul.f32 1.0, %v2972
      %v2974 = vrcp.pop %v2948
      %v2975 = vmul.f32 1.0, %v2974
      %v2976 = vrcp.pop %v2949
      %v2977 = vmul.f32 1.0, %v2976
      %v2978 = vrcp.pop %v2950
      %v2979 = vmul.f32 1.0, %v2978
      %v2980 = vrcp.pop %v2951
      %v2981 = vmul.f32 1.0, %v2980
      %v2982 = vrcp.pop %v2952
      %v2983 = vmul.f32 1.0, %v2982
      %v2984 = vrcp.pop %v2953
      %v2985 = vmul.f32 1.0, %v2984
      %v2986 = vadd.f32 %v2314, %v2701
      %v2987 = vadd.f32 %v2318, %v2705
      %v2988 = vadd.f32 %v2324, %v2711
      %v2989 = vadd.f32 %v2328, %v2715
      %v2990 = vadd.f32 %v2334, %v2721
      %v2991 = vadd.f32 %v2338, %v2725
      %v2992 = vadd.f32 %v2344, %v2731
      %v2993 = vadd.f32 %v2348, %v2735
      %v2994 = vadd.f32 %v2354, %v2741
      %v2995 = vadd.f32 %v2358, %v2745
      %v2996 = vadd.f32 %v2364, %v2751
      %v2997 = vadd.f32 %v2368, %v2755
      %v2998 = vadd.f32 %v2374, %v2761
      %v2999 = vadd.f32 %v2378, %v2765
      %v3000 = vadd.f32 %v2384, %v2771
      %v3001 = vadd.f32 %v2388, %v2775
      %v3002 = vxor.u32 %v2986, 2147483648
      %v3003 = vxor.u32 %v2987, 2147483648
      %v3004 = vxor.u32 %v2988, 2147483648
      %v3005 = vxor.u32 %v2989, 2147483648
      %v3006 = vxor.u32 %v2990, 2147483648
      %v3007 = vxor.u32 %v2991, 2147483648
      %v3008 = vxor.u32 %v2992, 2147483648
      %v3009 = vxor.u32 %v2993, 2147483648
      %v3010 = vxor.u32 %v2994, 2147483648
      %v3011 = vxor.u32 %v2995, 2147483648
      %v3012 = vxor.u32 %v2996, 2147483648
      %v3013 = vxor.u32 %v2997, 2147483648
      %v3014 = vxor.u32 %v2998, 2147483648
      %v3015 = vxor.u32 %v2999, 2147483648
      %v3016 = vxor.u32 %v3000, 2147483648
      %v3017 = vxor.u32 %v3001, 2147483648
      %v3018 = vmul.f32 %v3002, 1.442695
      %v3019 = vpow.pop %v3018
      %v3020 = vmul.f32 %v3003, 1.442695
      %v3021 = vpow.pop %v3020
      %v3022 = vmul.f32 %v3004, 1.442695
      %v3023 = vpow.pop %v3022
      %v3024 = vmul.f32 %v3005, 1.442695
      %v3025 = vpow.pop %v3024
      %v3026 = vmul.f32 %v3006, 1.442695
      %v3027 = vpow.pop %v3026
      %v3028 = vmul.f32 %v3007, 1.442695
      %v3029 = vpow.pop %v3028
      %v3030 = vmul.f32 %v3008, 1.442695
      %v3031 = vpow.pop %v3030
      %v3032 = vmul.f32 %v3009, 1.442695
      %v3033 = vpow.pop %v3032
      %v3034 = vmul.f32 %v3010, 1.442695
      %v3035 = vpow.pop %v3034
      %v3036 = vmul.f32 %v3011, 1.442695
      %v3037 = vpow.pop %v3036
      %v3038 = vmul.f32 %v3012, 1.442695
      %v3039 = vpow.pop %v3038
      %v3040 = vmul.f32 %v3013, 1.442695
      %v3041 = vpow.pop %v3040
      %v3042 = vmul.f32 %v3014, 1.442695
      %v3043 = vpow.pop %v3042
      %v3044 = vmul.f32 %v3015, 1.442695
      %v3045 = vpow.pop %v3044
      %v3046 = vmul.f32 %v3016, 1.442695
      %v3047 = vpow.pop %v3046
      %v3048 = vmul.f32 %v3017, 1.442695
      %v3049 = vpow.pop %v3048
      %v3050 = vadd.f32 %v3019, 1.0
      %v3051 = vadd.f32 %v3021, 1.0
      %v3052 = vadd.f32 %v3023, 1.0
      %v3053 = vadd.f32 %v3025, 1.0
      %v3054 = vadd.f32 %v3027, 1.0
      %v3055 = vadd.f32 %v3029, 1.0
      %v3056 = vadd.f32 %v3031, 1.0
      %v3057 = vadd.f32 %v3033, 1.0
      %v3058 = vadd.f32 %v3035, 1.0
      %v3059 = vadd.f32 %v3037, 1.0
      %v3060 = vadd.f32 %v3039, 1.0
      %v3061 = vadd.f32 %v3041, 1.0
      %v3062 = vadd.f32 %v3043, 1.0
      %v3063 = vadd.f32 %v3045, 1.0
      %v3064 = vadd.f32 %v3047, 1.0
      %v3065 = vadd.f32 %v3049, 1.0
      %v3066 = vrcp.pop %v3050
      %v3067 = vmul.f32 1.0, %v3066
      %v3068 = vrcp.pop %v3051
      %v3069 = vmul.f32 1.0, %v3068
      %v3070 = vrcp.pop %v3052
      %v3071 = vmul.f32 1.0, %v3070
      %v3072 = vrcp.pop %v3053
      %v3073 = vmul.f32 1.0, %v3072
      %v3074 = vrcp.pop %v3054
      %v3075 = vmul.f32 1.0, %v3074
      %v3076 = vrcp.pop %v3055
      %v3077 = vmul.f32 1.0, %v3076
      %v3078 = vrcp.pop %v3056
      %v3079 = vmul.f32 1.0, %v3078
      %v3080 = vrcp.pop %v3057
      %v3081 = vmul.f32 1.0, %v3080
      %v3082 = vrcp.pop %v3058
      %v3083 = vmul.f32 1.0, %v3082
      %v3084 = vrcp.pop %v3059
      %v3085 = vmul.f32 1.0, %v3084
      %v3086 = vrcp.pop %v3060
      %v3087 = vmul.f32 1.0, %v3086
      %v3088 = vrcp.pop %v3061
      %v3089 = vmul.f32 1.0, %v3088
      %v3090 = vrcp.pop %v3062
      %v3091 = vmul.f32 1.0, %v3090
      %v3092 = vrcp.pop %v3063
      %v3093 = vmul.f32 1.0, %v3092
      %v3094 = vrcp.pop %v3064
      %v3095 = vmul.f32 1.0, %v3094
      %v3096 = vrcp.pop %v3065
      %v3097 = vmul.f32 1.0, %v3096
      %v3098 = vmul.f32 %v2955, %v2812
      %v3099 = vmul.f32 %v2957, %v2815
      %v3100 = vmul.f32 %v2959, %v2820
      %v3101 = vmul.f32 %v2961, %v2823
      %v3102 = vmul.f32 %v2963, %v2828
      %v3103 = vmul.f32 %v2965, %v2831
      %v3104 = vmul.f32 %v2967, %v2836
      %v3105 = vmul.f32 %v2969, %v2839
      %v3106 = vmul.f32 %v2971, %v2844
      %v3107 = vmul.f32 %v2973, %v2847
      %v3108 = vmul.f32 %v2975, %v2852
      %v3109 = vmul.f32 %v2977, %v2855
      %v3110 = vmul.f32 %v2979, %v2860
      %v3111 = vmul.f32 %v2981, %v2863
      %v3112 = vmul.f32 %v2983, %v2868
      %v3113 = vmul.f32 %v2985, %v2871
      %v3114 = vadd.f32 %v2425, %v3098
      %v3115 = vadd.f32 %v2428, %v3099
      %v3116 = vadd.f32 %v2433, %v3100
      %v3117 = vadd.f32 %v2436, %v3101
      %v3118 = vadd.f32 %v2441, %v3102
      %v3119 = vadd.f32 %v2444, %v3103
      %v3120 = vadd.f32 %v2449, %v3104
      %v3121 = vadd.f32 %v2452, %v3105
      %v3122 = vadd.f32 %v2457, %v3106
      %v3123 = vadd.f32 %v2460, %v3107
      %v3124 = vadd.f32 %v2465, %v3108
      %v3125 = vadd.f32 %v2468, %v3109
      %v3126 = vadd.f32 %v2473, %v3110
      %v3127 = vadd.f32 %v2476, %v3111
      %v3128 = vadd.f32 %v2481, %v3112
      %v3129 = vadd.f32 %v2484, %v3113
      %v3130 = vtanh.pop %v3114
      %v3131 = vtanh.pop %v3115
      %v3132 = vtanh.pop %v3116
      %v3133 = vtanh.pop %v3117
      %v3134 = vtanh.pop %v3118
      %v3135 = vtanh.pop %v3119
      %v3136 = vtanh.pop %v3120
      %v3137 = vtanh.pop %v3121
      %v3138 = vtanh.pop %v3122
      %v3139 = vtanh.pop %v3123
      %v3140 = vtanh.pop %v3124
      %v3141 = vtanh.pop %v3125
      %v3142 = vtanh.pop %v3126
      %v3143 = vtanh.pop %v3127
      %v3144 = vtanh.pop %v3128
      %v3145 = vtanh.pop %v3129
      %v3146 = vsub.f32 1.0, %v3067
      %v3147 = vsub.f32 1.0, %v3069
      %v3148 = vsub.f32 1.0, %v3071
      %v3149 = vsub.f32 1.0, %v3073
      %v3150 = vsub.f32 1.0, %v3075
      %v3151 = vsub.f32 1.0, %v3077
      %v3152 = vsub.f32 1.0, %v3079
      %v3153 = vsub.f32 1.0, %v3081
      %v3154 = vsub.f32 1.0, %v3083
      %v3155 = vsub.f32 1.0, %v3085
      %v3156 = vsub.f32 1.0, %v3087
      %v3157 = vsub.f32 1.0, %v3089
      %v3158 = vsub.f32 1.0, %v3091
      %v3159 = vsub.f32 1.0, %v3093
      %v3160 = vsub.f32 1.0, %v3095
      %v3161 = vsub.f32 1.0, %v3097
      %v3162 = vmul.f32 %v3146, %v3130
      %v3163 = vmul.f32 %v3147, %v3131
      %v3164 = vmul.f32 %v3148, %v3132
      %v3165 = vmul.f32 %v3149, %v3133
      %v3166 = vmul.f32 %v3150, %v3134
      %v3167 = vmul.f32 %v3151, %v3135
      %v3168 = vmul.f32 %v3152, %v3136
      %v3169 = vmul.f32 %v3153, %v3137
      %v3170 = vmul.f32 %v3154, %v3138
      %v3171 = vmul.f32 %v3155, %v3139
      %v3172 = vmul.f32 %v3156, %v3140
      %v3173 = vmul.f32 %v3157, %v3141
      %v3174 = vmul.f32 %v3158, %v3142
      %v3175 = vmul.f32 %v3159, %v3143
      %v3176 = vmul.f32 %v3160, %v3144
      %v3177 = vmul.f32 %v3161, %v3145
      %v3178 = vmul.f32 %v3067, %v1735
      %v3179 = vmul.f32 %v3069, %v1736
      %v3180 = vmul.f32 %v3071, %v1737
      %v3181 = vmul.f32 %v3073, %v1738
      %v3182 = vmul.f32 %v3075, %v1739
      %v3183 = vmul.f32 %v3077, %v1740
      %v3184 = vmul.f32 %v3079, %v1741
      %v3185 = vmul.f32 %v3081, %v1742
      %v3186 = vmul.f32 %v3083, %v1743
      %v3187 = vmul.f32 %v3085, %v1744
      %v3188 = vmul.f32 %v3087, %v1745
      %v3189 = vmul.f32 %v3089, %v1746
      %v3190 = vmul.f32 %v3091, %v1747
      %v3191 = vmul.f32 %v3093, %v1748
      %v3192 = vmul.f32 %v3095, %v1749
      %v3193 = vmul.f32 %v3097, %v1750
      %v3194 = vadd.f32 %v3162, %v3178
      %v3195 = vadd.f32 %v3163, %v3179
      %v3196 = vadd.f32 %v3164, %v3180
      %v3197 = vadd.f32 %v3165, %v3181
      %v3198 = vadd.f32 %v3166, %v3182
      %v3199 = vadd.f32 %v3167, %v3183
      %v3200 = vadd.f32 %v3168, %v3184
      %v3201 = vadd.f32 %v3169, %v3185
      %v3202 = vadd.f32 %v3170, %v3186
      %v3203 = vadd.f32 %v3171, %v3187
      %v3204 = vadd.f32 %v3172, %v3188
      %v3205 = vadd.f32 %v3173, %v3189
      %v3206 = vadd.f32 %v3174, %v3190
      %v3207 = vadd.f32 %v3175, %v3191
      %v3208 = vadd.f32 %v3176, %v3192
      %v3209 = vadd.f32 %v3177, %v3193
      %3210 = vst [vmem:[#allocation2] sm:$0xff] %v3194
      %3211 = vst [vmem:[#allocation2 + $0x8] sm:$0xff] %v3195
      %3212 = vst [vmem:[#allocation2 + $0x10] sm:$0xff] %v3196
      %3213 = vst [vmem:[#allocation2 + $0x18] sm:$0xff] %v3197
      %3214 = vst [vmem:[#allocation2 + $0x20] sm:$0xff] %v3198
      %3215 = vst [vmem:[#allocation2 + $0x28] sm:$0xff] %v3199
      %3216 = vst [vmem:[#allocation2 + $0x30] sm:$0xff] %v3200
      %3217 = vst [vmem:[#allocation2 + $0x38] sm:$0xff] %v3201
      %3218 = vst [vmem:[#allocation2 + $0x40] sm:$0xff] %v3202
      %3219 = vst [vmem:[#allocation2 + $0x48] sm:$0xff] %v3203
      %3220 = vst [vmem:[#allocation2 + $0x50] sm:$0xff] %v3204
      %3221 = vst [vmem:[#allocation2 + $0x58] sm:$0xff] %v3205
      %3222 = vst [vmem:[#allocation2 + $0x60] sm:$0xff] %v3206
      %3223 = vst [vmem:[#allocation2 + $0x68] sm:$0xff] %v3207
      %3224 = vst [vmem:[#allocation2 + $0x70] sm:$0xff] %v3208
      %3225 = vst [vmem:[#allocation2 + $0x78] sm:$0xff] %v3209
    $region93: #{tpu_custom_call.1} parent=1 // loop_footer
      %s1734 = sadd.s32 1, %s1730
    $region94: #{tpu_custom_call.1} parent=1 // loop_footer_branch
      %1729 = sbr.rel target = $region90
    $region95: #{tpu_custom_call.1} parent=1 // loop_exit
      _
    %v3226 = vld [vmem:[#allocation2] sm:$0xff]
    %v3227 = vld [vmem:[#allocation2 + $0x8] sm:$0xff]
    %v3228 = vld [vmem:[#allocation2 + $0x10] sm:$0xff]
    %v3229 = vld [vmem:[#allocation2 + $0x18] sm:$0xff]
    %v3230 = vld [vmem:[#allocation2 + $0x20] sm:$0xff]
    %v3231 = vld [vmem:[#allocation2 + $0x28] sm:$0xff]
    %v3232 = vld [vmem:[#allocation2 + $0x30] sm:$0xff]
    %v3233 = vld [vmem:[#allocation2 + $0x38] sm:$0xff]
    %v3234 = vld [vmem:[#allocation2 + $0x40] sm:$0xff]
    %v3235 = vld [vmem:[#allocation2 + $0x48] sm:$0xff]
    %v3236 = vld [vmem:[#allocation2 + $0x50] sm:$0xff]
    %v3237 = vld [vmem:[#allocation2 + $0x58] sm:$0xff]
    %v3238 = vld [vmem:[#allocation2 + $0x60] sm:$0xff]
    %v3239 = vld [vmem:[#allocation2 + $0x68] sm:$0xff]
    %v3240 = vld [vmem:[#allocation2 + $0x70] sm:$0xff]
    %v3241 = vld [vmem:[#allocation2 + $0x78] sm:$0xff]
    %v3242 = vlaneseq
    %v3243 = vand.u32 %v3242, 127
    %vm3244 = vcmp.lt.s32.totalorder %v3243, 16
    %v3245 = vsel %vm3244, %v3226, -1e+30
    %v3246 = vsel %vm3244, %v3227, -1e+30
    %v3247 = vsel %vm3244, %v3228, -1e+30
    %v3248 = vsel %vm3244, %v3229, -1e+30
    %v3249 = vsel %vm3244, %v3230, -1e+30
    %v3250 = vsel %vm3244, %v3231, -1e+30
    %v3251 = vsel %vm3244, %v3232, -1e+30
    %v3252 = vsel %vm3244, %v3233, -1e+30
    %v3253 = vsel %vm3244, %v3234, -1e+30
    %v3254 = vsel %vm3244, %v3235, -1e+30
    %v3255 = vsel %vm3244, %v3236, -1e+30
    %v3256 = vsel %vm3244, %v3237, -1e+30
    %v3257 = vsel %vm3244, %v3238, -1e+30
    %v3258 = vsel %vm3244, %v3239, -1e+30
    %v3259 = vsel %vm3244, %v3240, -1e+30
    %v3260 = vsel %vm3244, %v3241, -1e+30
    %3261 = vmax.xlane.f32.xlu0 %v3245
    %v3262 = vpop.xlane.xlu0 %3261
    %3263 = vmax.xlane.f32.xlu0 %v3246
    %v3264 = vpop.xlane.xlu0 %3263
    %3265 = vmax.xlane.f32.xlu0 %v3247
    %v3266 = vpop.xlane.xlu0 %3265
    %3267 = vmax.xlane.f32.xlu0 %v3248
    %v3268 = vpop.xlane.xlu0 %3267
    %3269 = vmax.xlane.f32.xlu0 %v3249
    %v3270 = vpop.xlane.xlu0 %3269
    %3271 = vmax.xlane.f32.xlu0 %v3250
    %v3272 = vpop.xlane.xlu0 %3271
    %3273 = vmax.xlane.f32.xlu0 %v3251
    %v3274 = vpop.xlane.xlu0 %3273
    %3275 = vmax.xlane.f32.xlu0 %v3252
    %v3276 = vpop.xlane.xlu0 %3275
    %3277 = vmax.xlane.f32.xlu0 %v3253
    %v3278 = vpop.xlane.xlu0 %3277
    %3279 = vmax.xlane.f32.xlu0 %v3254
    %v3280 = vpop.xlane.xlu0 %3279
    %3281 = vmax.xlane.f32.xlu0 %v3255
    %v3282 = vpop.xlane.xlu0 %3281
    %3283 = vmax.xlane.f32.xlu0 %v3256
    %v3284 = vpop.xlane.xlu0 %3283
    %3285 = vmax.xlane.f32.xlu0 %v3257
    %v3286 = vpop.xlane.xlu0 %3285
    %3287 = vmax.xlane.f32.xlu0 %v3258
    %v3288 = vpop.xlane.xlu0 %3287
    %3289 = vmax.xlane.f32.xlu0 %v3259
    %v3290 = vpop.xlane.xlu0 %3289
    %3291 = vmax.xlane.f32.xlu0 %v3260
    %v3292 = vpop.xlane.xlu0 %3291
    %v3293 = vsub.f32 %v3226, %v3262
    %v3294 = vsub.f32 %v3227, %v3264
    %v3295 = vsub.f32 %v3228, %v3266
    %v3296 = vsub.f32 %v3229, %v3268
    %v3297 = vsub.f32 %v3230, %v3270
    %v3298 = vsub.f32 %v3231, %v3272
    %v3299 = vsub.f32 %v3232, %v3274
    %v3300 = vsub.f32 %v3233, %v3276
    %v3301 = vsub.f32 %v3234, %v3278
    %v3302 = vsub.f32 %v3235, %v3280
    %v3303 = vsub.f32 %v3236, %v3282
    %v3304 = vsub.f32 %v3237, %v3284
    %v3305 = vsub.f32 %v3238, %v3286
    %v3306 = vsub.f32 %v3239, %v3288
    %v3307 = vsub.f32 %v3240, %v3290
    %v3308 = vsub.f32 %v3241, %v3292
    %v3309 = vmul.f32 %v3293, 1.442695
    %v3310 = vpow.pop %v3309
    %v3311 = vmul.f32 %v3294, 1.442695
    %v3312 = vpow.pop %v3311
    %v3313 = vmul.f32 %v3295, 1.442695
    %v3314 = vpow.pop %v3313
    %v3315 = vmul.f32 %v3296, 1.442695
    %v3316 = vpow.pop %v3315
    %v3317 = vmul.f32 %v3297, 1.442695
    %v3318 = vpow.pop %v3317
    %v3319 = vmul.f32 %v3298, 1.442695
    %v3320 = vpow.pop %v3319
    %v3321 = vmul.f32 %v3299, 1.442695
    %v3322 = vpow.pop %v3321
    %v3323 = vmul.f32 %v3300, 1.442695
    %v3324 = vpow.pop %v3323
    %v3325 = vmul.f32 %v3301, 1.442695
    %v3326 = vpow.pop %v3325
    %v3327 = vmul.f32 %v3302, 1.442695
    %v3328 = vpow.pop %v3327
    %v3329 = vmul.f32 %v3303, 1.442695
    %v3330 = vpow.pop %v3329
    %v3331 = vmul.f32 %v3304, 1.442695
    %v3332 = vpow.pop %v3331
    %v3333 = vmul.f32 %v3305, 1.442695
    %v3334 = vpow.pop %v3333
    %v3335 = vmul.f32 %v3306, 1.442695
    %v3336 = vpow.pop %v3335
    %v3337 = vmul.f32 %v3307, 1.442695
    %v3338 = vpow.pop %v3337
    %v3339 = vmul.f32 %v3308, 1.442695
    %v3340 = vpow.pop %v3339
    %v3341 = vsel %vm3244, %v3310, 0.0
    %v3342 = vsel %vm3244, %v3312, 0.0
    %v3343 = vsel %vm3244, %v3314, 0.0
    %v3344 = vsel %vm3244, %v3316, 0.0
    %v3345 = vsel %vm3244, %v3318, 0.0
    %v3346 = vsel %vm3244, %v3320, 0.0
    %v3347 = vsel %vm3244, %v3322, 0.0
    %v3348 = vsel %vm3244, %v3324, 0.0
    %v3349 = vsel %vm3244, %v3326, 0.0
    %v3350 = vsel %vm3244, %v3328, 0.0
    %v3351 = vsel %vm3244, %v3330, 0.0
    %v3352 = vsel %vm3244, %v3332, 0.0
    %v3353 = vsel %vm3244, %v3334, 0.0
    %v3354 = vsel %vm3244, %v3336, 0.0
    %v3355 = vsel %vm3244, %v3338, 0.0
    %v3356 = vsel %vm3244, %v3340, 0.0
    %3357 = vadd.xlane.f32.xlu0 %v3341
    %v3358 = vpop.xlane.xlu0 %3357
    %3359 = vadd.xlane.f32.xlu0 %v3342
    %v3360 = vpop.xlane.xlu0 %3359
    %3361 = vadd.xlane.f32.xlu0 %v3343
    %v3362 = vpop.xlane.xlu0 %3361
    %3363 = vadd.xlane.f32.xlu0 %v3344
    %v3364 = vpop.xlane.xlu0 %3363
    %3365 = vadd.xlane.f32.xlu0 %v3345
    %v3366 = vpop.xlane.xlu0 %3365
    %3367 = vadd.xlane.f32.xlu0 %v3346
    %v3368 = vpop.xlane.xlu0 %3367
    %3369 = vadd.xlane.f32.xlu0 %v3347
    %v3370 = vpop.xlane.xlu0 %3369
    %3371 = vadd.xlane.f32.xlu0 %v3348
    %v3372 = vpop.xlane.xlu0 %3371
    %3373 = vadd.xlane.f32.xlu0 %v3349
    %v3374 = vpop.xlane.xlu0 %3373
    %3375 = vadd.xlane.f32.xlu0 %v3350
    %v3376 = vpop.xlane.xlu0 %3375
    %3377 = vadd.xlane.f32.xlu0 %v3351
    %v3378 = vpop.xlane.xlu0 %3377
    %3379 = vadd.xlane.f32.xlu0 %v3352
    %v3380 = vpop.xlane.xlu0 %3379
    %3381 = vadd.xlane.f32.xlu0 %v3353
    %v3382 = vpop.xlane.xlu0 %3381
    %3383 = vadd.xlane.f32.xlu0 %v3354
    %v3384 = vpop.xlane.xlu0 %3383
    %3385 = vadd.xlane.f32.xlu0 %v3355
    %v3386 = vpop.xlane.xlu0 %3385
    %3387 = vadd.xlane.f32.xlu0 %v3356
    %v3388 = vpop.xlane.xlu0 %3387
    %v3389 = vlog2.pop %v3358
    %v3390 = vmul.f32 %v3389, 0.6931472
    %v3391 = vlog2.pop %v3360
    %v3392 = vmul.f32 %v3391, 0.6931472
    %v3393 = vlog2.pop %v3362
    %v3394 = vmul.f32 %v3393, 0.6931472
    %v3395 = vlog2.pop %v3364
    %v3396 = vmul.f32 %v3395, 0.6931472
    %v3397 = vlog2.pop %v3366
    %v3398 = vmul.f32 %v3397, 0.6931472
    %v3399 = vlog2.pop %v3368
    %v3400 = vmul.f32 %v3399, 0.6931472
    %v3401 = vlog2.pop %v3370
    %v3402 = vmul.f32 %v3401, 0.6931472
    %v3403 = vlog2.pop %v3372
    %v3404 = vmul.f32 %v3403, 0.6931472
    %v3405 = vlog2.pop %v3374
    %v3406 = vmul.f32 %v3405, 0.6931472
    %v3407 = vlog2.pop %v3376
    %v3408 = vmul.f32 %v3407, 0.6931472
    %v3409 = vlog2.pop %v3378
    %v3410 = vmul.f32 %v3409, 0.6931472
    %v3411 = vlog2.pop %v3380
    %v3412 = vmul.f32 %v3411, 0.6931472
    %v3413 = vlog2.pop %v3382
    %v3414 = vmul.f32 %v3413, 0.6931472
    %v3415 = vlog2.pop %v3384
    %v3416 = vmul.f32 %v3415, 0.6931472
    %v3417 = vlog2.pop %v3386
    %v3418 = vmul.f32 %v3417, 0.6931472
    %v3419 = vlog2.pop %v3388
    %v3420 = vmul.f32 %v3419, 0.6931472
    %v3421 = vsub.f32 %v3293, %v3390
    %v3422 = vsub.f32 %v3294, %v3392
    %v3423 = vsub.f32 %v3295, %v3394
    %v3424 = vsub.f32 %v3296, %v3396
    %v3425 = vsub.f32 %v3297, %v3398
    %v3426 = vsub.f32 %v3298, %v3400
    %v3427 = vsub.f32 %v3299, %v3402
    %v3428 = vsub.f32 %v3300, %v3404
    %v3429 = vsub.f32 %v3301, %v3406
    %v3430 = vsub.f32 %v3302, %v3408
    %v3431 = vsub.f32 %v3303, %v3410
    %v3432 = vsub.f32 %v3304, %v3412
    %v3433 = vsub.f32 %v3305, %v3414
    %v3434 = vsub.f32 %v3306, %v3416
    %v3435 = vsub.f32 %v3307, %v3418
    %v3436 = vsub.f32 %v3308, %v3420
    %3437 = vst [vmem:[#allocation17] sm:$0xff] %v3421
    %3438 = vst [vmem:[#allocation17 + $0x8] sm:$0xff] %v3422
    %3439 = vst [vmem:[#allocation17 + $0x10] sm:$0xff] %v3423
    %3440 = vst [vmem:[#allocation17 + $0x18] sm:$0xff] %v3424
    %3441 = vst [vmem:[#allocation17 + $0x20] sm:$0xff] %v3425
    %3442 = vst [vmem:[#allocation17 + $0x28] sm:$0xff] %v3426
    %3443 = vst [vmem:[#allocation17 + $0x30] sm:$0xff] %v3427
    %3444 = vst [vmem:[#allocation17 + $0x38] sm:$0xff] %v3428
    %3445 = vst [vmem:[#allocation17 + $0x40] sm:$0xff] %v3429
    %3446 = vst [vmem:[#allocation17 + $0x48] sm:$0xff] %v3430
    %3447 = vst [vmem:[#allocation17 + $0x50] sm:$0xff] %v3431
    %3448 = vst [vmem:[#allocation17 + $0x58] sm:$0xff] %v3432
    %3449 = vst [vmem:[#allocation17 + $0x60] sm:$0xff] %v3433
    %3450 = vst [vmem:[#allocation17 + $0x68] sm:$0xff] %v3434
    %3451 = vst [vmem:[#allocation17 + $0x70] sm:$0xff] %v3435
    %3452 = vst [vmem:[#allocation17 + $0x78] sm:$0xff] %v3436
    // Predicated region
    $region96: #{tpu_custom_call.1} parent=1 // pred_check
      _
    $region97: #{tpu_custom_call.1} parent=1 // pred_check_branch
      %3454 = sbr.rel (0) target = $region99
    $region98: #{tpu_custom_call.1} parent=1 // pred_region
      %s3456 = ssub.s32 2048, 2048
      %3457 = vsyncadd [#allocation5], %s3456
      %s3458 = sshll.u32 [#allocation17], 4
      %s3459 = int_to_ptr.vmem [resolvable:$true] %s3458
      %3464 = dma.vmem_to_hbm [thread:$0]  %s3459, 2048, %s12, [#allocation5], 128, 128, 8
    $region99: #{tpu_custom_call.1} parent=1 // pred_fallthru
      _
    // Predicated region
    $region100: #{tpu_custom_call.1} parent=1 // pred_check
      _
    $region101: #{tpu_custom_call.1} parent=1 // pred_check_branch
      %3466 = sbr.rel (0) target = $region103
    $region102: #{tpu_custom_call.1} parent=1 // pred_region
      %3467 = dma.done [#allocation5], 2048
    $region103: #{tpu_custom_call.1} parent=1 // pred_fallthru
      _
    %3468 = vsyncpa [#allocation4], 1
    %3469 = vsyncpa [#allocation7], 1
    %3470 = vsyncpa [#allocation10], 1
    %3471 = vsyncpa [#allocation13], 1
    %3472 = vsyncpa [#allocation16], 1
    %3473 = vsyncpa [#allocation5], 1

</llo_original>
